<compile_context>
chip_gen: v7x
topology: tpu7x:2x2x1
jax: 0.10.0
libtpu: 0.0.40
codegen_flags: <defaults>
</compile_context>

<pallas_src>
import jax
import jax.numpy as jnp
from jax.experimental import pallas as pl
from jax.experimental.pallas import tpu as pltpu


def _linear_kernel(x_ref, w_ref, b_ref, o_ref):
    # Single-shot: full-K dot for this output-column tile, f32 accumulation
    # on the MXU, bias add, then one cast+store (lane-dense 256-wide output).
    acc = jnp.dot(x_ref[...], w_ref[...], preferred_element_type=jnp.float32)
    o_ref[...] = (acc + b_ref[...]).astype(o_ref.dtype)


def linear_pallas(x, w_t, b, *, tn=256):
    """Compute y = x @ w_t + b.

    x:   (..., K)  activations
    w_t: (K, N)    weight stored transposed (K-major) -> no runtime transpose
    b:   (N,)      bias
    """
    lead_shape = x.shape[:-1]
    K = x.shape[-1]
    N = w_t.shape[1]
    M = 1
    for d in lead_shape:
        M *= d
    x2d = x.reshape(M, K)
    b2d = b.reshape(1, N)

    # Column-tile size: keep it a multiple of 128 (lane width); fall back to
    # the full N if N is small or not divisible.
    if N % tn != 0 or N < tn:
        tn = N
    grid = (N // tn,)  # no K tiling: the whole reduction is done in one dot

    dtype_bytes = jnp.dtype(x.dtype).itemsize
    # Each operand is now touched exactly once (x index_map is constant across
    # the single grid axis, so Pallas does not re-DMA it per N tile).
    cost = pl.CostEstimate(
        flops=2 * M * K * N,
        bytes_accessed=(M * K + K * N + N + M * N) * dtype_bytes,
        transcendentals=0,
    )

    out2d = pl.pallas_call(
        _linear_kernel,
        out_shape=jax.ShapeDtypeStruct((M, N), x.dtype),
        grid_spec=pltpu.PrefetchScalarGridSpec(
            num_scalar_prefetch=0,
            grid=grid,
            in_specs=[
                pl.BlockSpec((M, K), lambda j: (0, 0)),   # full activations (fetched once)
                pl.BlockSpec((K, tn), lambda j: (0, j)),  # weight column tile
                pl.BlockSpec((1, tn), lambda j: (0, j)),  # bias tile
            ],
            out_specs=pl.BlockSpec((M, tn), lambda j: (0, j)),
        ),
        compiler_params=pltpu.CompilerParams(
            # Single parallel axis: v7x's two TensorCores each take one of the
            # two 256-wide column tiles; harmless (sequential) on v5e/v6e.
            dimension_semantics=("parallel",),
        ),
        cost_estimate=cost,
    )(x2d, w_t, b2d)

    return out2d.reshape(*lead_shape, N)


class LinearModule:
    """Mirror of torch module M: Linear(in_features=2048, out_features=512)."""

    def __init__(self, key, in_features=2048, out_features=512, dtype=jnp.float32):
        kw, kb = jax.random.split(key)
        # Deterministic init mimicking torch's uniform(-1/sqrt(fan_in), 1/sqrt(fan_in)).
        bound = 1.0 / (in_features ** 0.5)
        # Stored already transposed as (K, N) so __call__ does no transpose.
        self.weight_t = jax.random.uniform(
            kw, (in_features, out_features), dtype, minval=-bound, maxval=bound
        )
        self.bias = jax.random.uniform(
            kb, (out_features,), dtype, minval=-bound, maxval=bound
        )

    def __call__(self, x):
        # torch Linear: y = x @ W.T + b ; weight_t is already W.T.
        return linear_pallas(x, self.weight_t, self.bias)


if __name__ == "__main__":
    key = jax.random.PRNGKey(0)
    k_x, k_p = jax.random.split(key)

    # Input shape implied by the module's forward: [1, 14, 14, 2048]
    x = jax.random.normal(k_x, (1, 14, 14, 2048), dtype=jnp.float32)

    model = LinearModule(k_p)
    out = model(x)
    out = jax.block_until_ready(out)

    # Cross-check against plain JAX reference.
    ref = x @ model.weight_t + model.bias
    assert out.shape == (1, 14, 14, 512), out.shape
    assert jnp.allclose(out, ref, atol=1e-4, rtol=1e-4), "mismatch vs reference"

    print("KERNEL_OK")
</pallas_src>

<mosaic_0001>
module attributes {stable_mosaic.version = 11 : i64} {
  func.func @_linear_kernel(%arg0: i32, %arg1: memref<196x2048xf32, #tpu.memory_space<vmem>>, %arg2: memref<2048x256xf32, #tpu.memory_space<vmem>>, %arg3: memref<1x256xf32, #tpu.memory_space<vmem>>, %arg4: memref<196x256xf32, #tpu.memory_space<vmem>>) attributes {dimension_semantics = [#tpu.dimension_semantics<parallel>], iteration_bounds = array<i64: 2>, scalar_prefetch = 0 : i64, scratch_operands = 0 : i64, tpu.core_type = #tpu.core_type<tc>, window_params = [{pipeline_mode = #tpu.pipeline_mode<synchronous>, transform_indices = @transform_0, window_bounds = array<i64: 196, 2048>}, {transform_indices = @transform_1, window_bounds = array<i64: 2048, 256>}, {transform_indices = @transform_2, window_bounds = array<i64: 1, 256>}, {transform_indices = @transform_3, window_bounds = array<i64: 196, 256>}]} {
    %c0 = arith.constant 0 : index
    %c0_0 = arith.constant 0 : index
    %0 = vector.load %arg1[%c0, %c0_0] : memref<196x2048xf32, #tpu.memory_space<vmem>>, vector<196x2048xf32>
    %c0_1 = arith.constant 0 : index
    %c0_2 = arith.constant 0 : index
    %1 = vector.load %arg2[%c0_1, %c0_2] : memref<2048x256xf32, #tpu.memory_space<vmem>>, vector<2048x256xf32>
    %cst = arith.constant dense<0.000000e+00> : vector<196x256xf32>
    %2 = tpu.matmul %0, %1, %cst {dimension_numbers = #tpu.dot_dimension_numbers<[1], [0], [0], [1], [0, 0, 1, 1], [], []>} : vector<196x2048xf32>, vector<2048x256xf32>, vector<196x256xf32> -> vector<196x256xf32>
    %c0_3 = arith.constant 0 : index
    %c0_4 = arith.constant 0 : index
    %3 = vector.load %arg3[%c0_3, %c0_4] : memref<1x256xf32, #tpu.memory_space<vmem>>, vector<1x256xf32>
    %4 = vector.broadcast %3 : vector<1x256xf32> to vector<196x256xf32>
    %5 = arith.addf %2, %4 : vector<196x256xf32>
    %c0_5 = arith.constant 0 : index
    %c0_6 = arith.constant 0 : index
    %6 = vector.load %arg4[%c0_5, %c0_6] : memref<196x256xf32, #tpu.memory_space<vmem>>, vector<196x256xf32>
    tpu.vector_store %arg4[%c0_5, %c0_6], %5 {strides = array<i32>} : memref<196x256xf32, #tpu.memory_space<vmem>>, vector<196x256xf32>,
    return
  }
  func.func @transform_0(%arg0: i32) -> (i32, i32) {
    %c0_i32 = arith.constant 0 : i32
    %c0_i32_0 = arith.constant 0 : i32
    %c0_i32_1 = arith.constant 0 : i32
    return %c0_i32, %c0_i32_0 : i32, i32
  }
  func.func @transform_1(%arg0: i32) -> (i32, i32) {
    %c0_i32 = arith.constant 0 : i32
    %c0_i32_0 = arith.constant 0 : i32
    return %c0_i32, %arg0 : i32, i32
  }
  func.func @transform_2(%arg0: i32) -> (i32, i32) {
    %c0_i32 = arith.constant 0 : i32
    %c0_i32_0 = arith.constant 0 : i32
    return %c0_i32, %arg0 : i32, i32
  }
  func.func @transform_3(%arg0: i32) -> (i32, i32) {
    %c0_i32 = arith.constant 0 : i32
    %c0_i32_0 = arith.constant 0 : i32
    return %c0_i32, %arg0 : i32, i32
  }
}

</mosaic_0001>

<llo_original>
// kernel: tpu_custom_call.1
$region0: #{tpu_custom_call.1}
  #allocation0 [shape = 'u32[]', space=smem, size = 0x4, offset = 0x4, fixed_abs, tag = 'smem constant byte address 0x4 - core index']
  #allocation1 [shape = 'u32[144,128]{1,0:T(1,128)}', space=vmem, size = 0x12000, scoped, tag = 'internal scratch']
  %s0 = inlined_call_operand.hbm [shape: f32[196,2048], index: 0, kind: input, shape index: {}]
  %s1 = inlined_call_operand.hbm [shape: f32[2048,512], index: 1, kind: input, shape index: {}]
  %s2 = inlined_call_operand.hbm [shape: f32[1,512], index: 2, kind: input, shape index: {}]
  %s3 = inlined_call_operand.hbm [shape: f32[196,512], index: 3, kind: output, shape index: {}]
  %s4 = sld [smem:[#allocation0]]
  $region57: #{tpu_custom_call.1} parent=0
    _
  %s6 = ssub.s32 1, %s4
  %s7 = scalar_select 0, %s6, %s4
  $region1: #{tpu_custom_call.1} parent=0
    #allocation2 [shape = 'u8[1638400]{0}', space=vmem, size = 0x190000, scoped, tag = 'input window, operand 0, single buffered']
    #allocation3 [shape = 's32[2]{0}', space=sflag, size = 0x8, scoped, tag = 'scoped memory for tpu_custom_call.1']
    #allocation4 [shape = 's32[2]{0}', space=sflag, size = 0x8, scoped, tag = 'scoped memory for tpu_custom_call.1']
    #allocation5 [shape = 'u8[4194304]{0}', space=vmem, size = 0x400000, scoped, tag = 'input window, operand 1']
    #allocation6 [shape = 's32[2]{0}', space=sflag, size = 0x8, scoped, tag = 'scoped memory for tpu_custom_call.1']
    #allocation7 [shape = 'u8[2048]{0}', space=vmem, size = 0x800, scoped, tag = 'input window, operand 2']
    #allocation8 [shape = 'u8[409600]{0}', space=vmem, size = 0x64000, scoped, tag = 'output window, operand 0']
    %8 = vsyncpa [#allocation3], 0
    %9 = vsyncpa [#allocation6], 0
    %s10 = scalar_lea.sflag [#allocation6], 1
    %11 = vsyncpa %s10, 0
    %12 = vsyncpa [#allocation4], 0
    %s13 = scalar_lea.sflag [#allocation4], 1
    %14 = vsyncpa %s13, 0
    loop: start=0, step=1, limit=4
    $region2: #{tpu_custom_call.1} parent=1 // loop_pre_header
      _
    $region3: #{tpu_custom_call.1} parent=1 // loop_header
      %s16 = sphi 0, %s20
      %p17 = scmp.ge.s32.totalorder %s16, 4
      %s24 = sphi 0, %s24
      %s26 = sphi 0, %s24
      %s27 = sphi 0, %s26
      %s41 = sphi 0, %s27
      %s47 = sphi 0, %s49
      %s50 = sphi 0, %s47
      %s51 = sphi 0, %s50
      %s67 = sphi 0, %s51
      %s73 = sphi 0, %s75
      %s76 = sphi 0, %s73
      %s77 = sphi 0, %s76
      %s93 = sphi 0, %s77
      %s99 = sphi 0, %s101
      %s102 = sphi 0, %s99
      %s103 = sphi 0, %s102
      %s119 = sphi 0, %s103
    $region4: #{tpu_custom_call.1} parent=1 // loop_header_branch
      %19 = sbr.rel (%p17) target = $region8
    $region5: #{tpu_custom_call.1} parent=1 // loop_body
      %s21 = ssub.s32 %s16, 1
      %s22 = ssub.s32 %s16, 2
      %s23 = sadd.s32 %s16, 1
      %s25 = sadd.s32 %s24, 1
      %p28 = scmp.eq.s32.totalorder %s16, 1
      %p29 = scmp.ne.s32.totalorder %s24, %s26
      %p30 = scmp.eq.s32.totalorder %s16, 0
      %p31 = por %p29, %p30
      %p32 = scmp.ne.s32.totalorder %s24, %s26
      %p33 = scmp.eq.s32.totalorder %s21, 1
      %p34 = por %p32, %p33
      %p35 = scmp.ne.s32.totalorder %s26, %s27
      %p36 = scmp.eq.s32.totalorder %s21, 0
      %p37 = por %p35, %p36
      %p38 = scmp.ne.s32.totalorder %s26, %s27
      %p39 = scmp.eq.s32.totalorder %s22, 1
      %p40 = por %p38, %p39
      %p42 = scmp.ne.s32.totalorder %s27, %s41
      %p43 = scmp.eq.s32.totalorder %s22, 0
      %p44 = por %p42, %p43
      %s45 = ssub.s32 %s16, %s23
      %p46 = scmp.eq.s32.totalorder %s45, 0
      %s48 = sadd.s32 %s47, 1
      %s49 = scalar_select %p46, %s47, %s48
      %p52 = pneg %p46
      %p53 = scmp.eq.s32.totalorder %s16, 1
      %p54 = por %p52, %p53
      %p55 = scmp.ne.s32.totalorder %s47, %s50
      %p56 = scmp.eq.s32.totalorder %s16, 0
      %p57 = por %p55, %p56
      %p58 = scmp.ne.s32.totalorder %s47, %s50
      %p59 = scmp.eq.s32.totalorder %s21, 1
      %p60 = por %p58, %p59
      %p61 = scmp.ne.s32.totalorder %s50, %s51
      %p62 = scmp.eq.s32.totalorder %s21, 0
      %p63 = por %p61, %p62
      %p64 = scmp.ne.s32.totalorder %s50, %s51
      %p65 = scmp.eq.s32.totalorder %s22, 1
      %p66 = por %p64, %p65
      %p68 = scmp.ne.s32.totalorder %s51, %s67
      %p69 = scmp.eq.s32.totalorder %s22, 0
      %p70 = por %p68, %p69
      %s71 = ssub.s32 %s16, %s23
      %p72 = scmp.eq.s32.totalorder %s71, 0
      %s74 = sadd.s32 %s73, 1
      %s75 = scalar_select %p72, %s73, %s74
      %p78 = pneg %p72
      %p79 = scmp.eq.s32.totalorder %s16, 1
      %p80 = por %p78, %p79
      %p81 = scmp.ne.s32.totalorder %s73, %s76
      %p82 = scmp.eq.s32.totalorder %s16, 0
      %p83 = por %p81, %p82
      %p84 = scmp.ne.s32.totalorder %s73, %s76
      %p85 = scmp.eq.s32.totalorder %s21, 1
      %p86 = por %p84, %p85
      %p87 = scmp.ne.s32.totalorder %s76, %s77
      %p88 = scmp.eq.s32.totalorder %s21, 0
      %p89 = por %p87, %p88
      %p90 = scmp.ne.s32.totalorder %s76, %s77
      %p91 = scmp.eq.s32.totalorder %s22, 1
      %p92 = por %p90, %p91
      %p94 = scmp.ne.s32.totalorder %s77, %s93
      %p95 = scmp.eq.s32.totalorder %s22, 0
      %p96 = por %p94, %p95
      %s97 = ssub.s32 %s16, %s23
      %p98 = scmp.eq.s32.totalorder %s97, 0
      %s100 = sadd.s32 %s99, 1
      %s101 = scalar_select %p98, %s99, %s100
      %p104 = pneg %p98
      %p105 = scmp.eq.s32.totalorder %s16, 1
      %p106 = por %p104, %p105
      %p107 = scmp.ne.s32.totalorder %s99, %s102
      %p108 = scmp.eq.s32.totalorder %s16, 0
      %p109 = por %p107, %p108
      %p110 = scmp.ne.s32.totalorder %s99, %s102
      %p111 = scmp.eq.s32.totalorder %s21, 1
      %p112 = por %p110, %p111
      %p113 = scmp.ne.s32.totalorder %s102, %s103
      %p114 = scmp.eq.s32.totalorder %s21, 0
      %p115 = por %p113, %p114
      %p116 = scmp.ne.s32.totalorder %s102, %s103
      %p117 = scmp.eq.s32.totalorder %s22, 1
      %p118 = por %p116, %p117
      %p120 = scmp.ne.s32.totalorder %s103, %s119
      %p121 = scmp.eq.s32.totalorder %s22, 0
      %p122 = por %p120, %p121
      %p123 = scmp.le.s32.totalorder 1, %s16
      %p124 = scmp.lt.s32.totalorder %s16, 3
      %p125 = pnand %p123, %p124
      %p126 = pneg %p125
      // Predicated region
      $region9: #{tpu_custom_call.1} parent=5 // pred_check
        _
      $region10: #{tpu_custom_call.1} parent=5 // pred_check_branch
        %128 = sbr.rel (%p125) target = $region12
      $region11: #{tpu_custom_call.1} parent=5 // pred_region
        %s129 = ssub.s32 %s16, 1
        // Predicated region
        $region13: #{tpu_custom_call.1} parent=11 // pred_check
          %p130 = pneg %p37
        $region14: #{tpu_custom_call.1} parent=11 // pred_check_branch
          %132 = sbr.rel (%p130) target = $region16
        $region15: #{tpu_custom_call.1} parent=11 // pred_region
          %s134 = ssub.s32 51200, 51200
          %135 = vsyncadd [#allocation3], %s134
          %s136 = sshll.u32 [#allocation2], 4
          %s137 = int_to_ptr.vmem [resolvable:$true] %s136
          %142 = dma.hbm_to_vmem [thread:$0]  %s0, 51200, %s137, [#allocation3], 2048, 2048, 128
        $region16: #{tpu_custom_call.1} parent=11 // pred_fallthru
          _
      $region12: #{tpu_custom_call.1} parent=5 // pred_fallthru
        _
      %p143 = scmp.lt.s32.totalorder %s16, 2
      // Predicated region
      $region17: #{tpu_custom_call.1} parent=5 // pred_check
        %p144 = pneg %p143
      $region18: #{tpu_custom_call.1} parent=5 // pred_check_branch
        %146 = sbr.rel (%p144) target = $region20
      $region19: #{tpu_custom_call.1} parent=5 // pred_region
        // Predicated region
        $region21: #{tpu_custom_call.1} parent=19 // pred_check
          %p147 = pneg %p57
        $region22: #{tpu_custom_call.1} parent=19 // pred_check_branch
          %149 = sbr.rel (%p147) target = $region24
        $region23: #{tpu_custom_call.1} parent=19 // pred_region
          %s150 = sand.u32 %s16, 1
          %s151 = scalar_lea.sflag [#allocation6], %s150
          %s152 = sand.u32 %s47, 1
          %s153 = smul.addr %s152, 4096
          %s154 = scalar_lea.vmem [#allocation5], %s153
          %s155 = smul.u32 2, %s16
          %s157 = ssub.s32 65536, 65536
          %158 = vsyncadd %s151, %s157
          %s159 = smul.addr %s155, 128
          %s160 = scalar_lea.hbm %s1, %s159
          %s161 = sshll.u32 %s154, 4
          %s162 = int_to_ptr.vmem [resolvable:$true] %s161
          %167 = dma.hbm_to_vmem [thread:$0]  %s160, 65536, %s162, %s151, 512, 256, 16
        $region24: #{tpu_custom_call.1} parent=19 // pred_fallthru
          _
        // Predicated region
        $region25: #{tpu_custom_call.1} parent=19 // pred_check
          %p168 = pneg %p83
        $region26: #{tpu_custom_call.1} parent=19 // pred_check_branch
          %170 = sbr.rel (%p168) target = $region28
        $region27: #{tpu_custom_call.1} parent=19 // pred_region
          %s171 = sand.u32 %s16, 1
          %s172 = scalar_lea.sflag [#allocation6], %s171
          %s173 = sand.u32 %s73, 1
          %s174 = smul.addr %s173, 2
          %s175 = scalar_lea.vmem [#allocation7], %s174
          %s176 = smul.u32 2, %s16
          %s178 = ssub.s32 32, 32
          %179 = vsyncadd %s172, %s178
          %s180 = smul.addr %s176, 16
          %s181 = scalar_lea.hbm %s2, %s180
          %s183 = sshll.u32 %s175, 4
          %s184 = int_to_ptr.vmem [resolvable:$true] %s183
          %186 = dma.hbm_to_vmem [thread:$0]  %s181, 32, %s184, %s172
        $region28: #{tpu_custom_call.1} parent=19 // pred_fallthru
          _
      $region20: #{tpu_custom_call.1} parent=5 // pred_fallthru
        _
      %p187 = scmp.le.s32.totalorder 1, %s16
      %p188 = scmp.lt.s32.totalorder %s16, 3
      %p189 = pnand %p187, %p188
      %p190 = pneg %p189
      // Predicated region
      $region29: #{tpu_custom_call.1} parent=5 // pred_check
        _
      $region30: #{tpu_custom_call.1} parent=5 // pred_check_branch
        %192 = sbr.rel (%p189) target = $region32
      $region31: #{tpu_custom_call.1} parent=5 // pred_region
        %s193 = ssub.s32 %s16, 1
        // Predicated region
        $region33: #{tpu_custom_call.1} parent=31 // pred_check
          %p194 = pneg %p37
        $region34: #{tpu_custom_call.1} parent=31 // pred_check_branch
          %196 = sbr.rel (%p194) target = $region36
        $region35: #{tpu_custom_call.1} parent=31 // pred_region
          %197 = dma.done [#allocation3], 51200
        $region36: #{tpu_custom_call.1} parent=31 // pred_fallthru
          _
        %s198 = sand.u32 %s21, 1
        %s199 = scalar_lea.sflag [#allocation6], %s198
        %s200 = sand.u32 %s50, 1
        %s201 = smul.addr %s200, 4096
        %s202 = scalar_lea.vmem [#allocation5], %s201
        // Predicated region
        $region37: #{tpu_custom_call.1} parent=31 // pred_check
          %p203 = pneg %p63
        $region38: #{tpu_custom_call.1} parent=31 // pred_check_branch
          %205 = sbr.rel (%p203) target = $region40
        $region39: #{tpu_custom_call.1} parent=31 // pred_region
          %206 = dma.done %s199, 65536
        $region40: #{tpu_custom_call.1} parent=31 // pred_fallthru
          _
        %s207 = sand.u32 %s21, 1
        %s208 = scalar_lea.sflag [#allocation6], %s207
        %s209 = sand.u32 %s76, 1
        %s210 = smul.addr %s209, 2
        %s211 = scalar_lea.vmem [#allocation7], %s210
        // Predicated region
        $region41: #{tpu_custom_call.1} parent=31 // pred_check
          %p212 = pneg %p89
        $region42: #{tpu_custom_call.1} parent=31 // pred_check_branch
          %214 = sbr.rel (%p212) target = $region44
        $region43: #{tpu_custom_call.1} parent=31 // pred_region
          %215 = dma.done %s208, 32
        $region44: #{tpu_custom_call.1} parent=31 // pred_fallthru
          _
        %p216 = pneg %p37
        %p217 = pneg %p34
        %s218 = sand.u32 %s21, 1
        %s219 = scalar_lea.sflag [#allocation6], %s218
        %s220 = sand.u32 %s50, 1
        %s221 = smul.addr %s220, 4096
        %s222 = scalar_lea.vmem [#allocation5], %s221
        %p223 = pneg %p63
        %p224 = pneg %p60
        %s225 = sand.u32 %s21, 1
        %s226 = scalar_lea.sflag [#allocation6], %s225
        %s227 = sand.u32 %s76, 1
        %s228 = smul.addr %s227, 2
        %s229 = scalar_lea.vmem [#allocation7], %s228
        %p230 = pneg %p89
        %p231 = pneg %p86
        %p232 = pneg %p115
        %p233 = pneg %p112
        %s234 = sand.u32 %s102, 1
        %s235 = scalar_lea.sflag [#allocation4], %s234
        %s236 = sand.u32 %s102, 1
        %s237 = smul.addr %s236, 400
        %s238 = scalar_lea.vmem [#allocation8], %s237
        %s239 = smul.u32 2, %s21
        %s240 = smul.u32 2, %s21
        %s241 = smul.u32 2, %s21
        %v242 = vld [vmem:[#allocation2] sm:$0xff]
        %v243 = vld [vmem:[#allocation2 + $0x8] sm:$0xff]
        %v244 = vld [vmem:[#allocation2 + $0x10] sm:$0xff]
        %v245 = vld [vmem:[#allocation2 + $0x18] sm:$0xff]
        %v246 = vld [vmem:[#allocation2 + $0x20] sm:$0xff]
        %v247 = vld [vmem:[#allocation2 + $0x28] sm:$0xff]
        %v248 = vld [vmem:[#allocation2 + $0x30] sm:$0xff]
        %v249 = vld [vmem:[#allocation2 + $0x38] sm:$0xff]
        %v250 = vld [vmem:[#allocation2 + $0x40] sm:$0xff]
        %v251 = vld [vmem:[#allocation2 + $0x48] sm:$0xff]
        %v252 = vld [vmem:[#allocation2 + $0x50] sm:$0xff]
        %v253 = vld [vmem:[#allocation2 + $0x58] sm:$0xff]
        %v254 = vld [vmem:[#allocation2 + $0x60] sm:$0xff]
        %v255 = vld [vmem:[#allocation2 + $0x68] sm:$0xff]
        %v256 = vld [vmem:[#allocation2 + $0x70] sm:$0xff]
        %v257 = vld [vmem:[#allocation2 + $0x78] sm:$0xff]
        %v258 = vld [vmem:[#allocation2 + $0x80] sm:$0xff]
        %v259 = vld [vmem:[#allocation2 + $0x88] sm:$0xff]
        %v260 = vld [vmem:[#allocation2 + $0x90] sm:$0xff]
        %v261 = vld [vmem:[#allocation2 + $0x98] sm:$0xff]
        %v262 = vld [vmem:[#allocation2 + $0xa0] sm:$0xff]
        %v263 = vld [vmem:[#allocation2 + $0xa8] sm:$0xff]
        %v264 = vld [vmem:[#allocation2 + $0xb0] sm:$0xff]
        %v265 = vld [vmem:[#allocation2 + $0xb8] sm:$0xff]
        %v266 = vld [vmem:[#allocation2 + $0xc0] sm:$0xff]
        %v267 = vld [vmem:[#allocation2 + $0xc8] sm:$0xff]
        %v268 = vld [vmem:[#allocation2 + $0xd0] sm:$0xff]
        %v269 = vld [vmem:[#allocation2 + $0xd8] sm:$0xff]
        %v270 = vld [vmem:[#allocation2 + $0xe0] sm:$0xff]
        %v271 = vld [vmem:[#allocation2 + $0xe8] sm:$0xff]
        %v272 = vld [vmem:[#allocation2 + $0xf0] sm:$0xff]
        %v273 = vld [vmem:[#allocation2 + $0xf8] sm:$0xff]
        %v274 = vld [vmem:[#allocation2 + $0x100] sm:$0xff]
        %v275 = vld [vmem:[#allocation2 + $0x108] sm:$0xff]
        %v276 = vld [vmem:[#allocation2 + $0x110] sm:$0xff]
        %v277 = vld [vmem:[#allocation2 + $0x118] sm:$0xff]
        %v278 = vld [vmem:[#allocation2 + $0x120] sm:$0xff]
        %v279 = vld [vmem:[#allocation2 + $0x128] sm:$0xff]
        %v280 = vld [vmem:[#allocation2 + $0x130] sm:$0xff]
        %v281 = vld [vmem:[#allocation2 + $0x138] sm:$0xff]
        %v282 = vld [vmem:[#allocation2 + $0x140] sm:$0xff]
        %v283 = vld [vmem:[#allocation2 + $0x148] sm:$0xff]
        %v284 = vld [vmem:[#allocation2 + $0x150] sm:$0xff]
        %v285 = vld [vmem:[#allocation2 + $0x158] sm:$0xff]
        %v286 = vld [vmem:[#allocation2 + $0x160] sm:$0xff]
        %v287 = vld [vmem:[#allocation2 + $0x168] sm:$0xff]
        %v288 = vld [vmem:[#allocation2 + $0x170] sm:$0xff]
        %v289 = vld [vmem:[#allocation2 + $0x178] sm:$0xff]
        %v290 = vld [vmem:[#allocation2 + $0x180] sm:$0xff]
        %v291 = vld [vmem:[#allocation2 + $0x188] sm:$0xff]
        %v292 = vld [vmem:[#allocation2 + $0x190] sm:$0xff]
        %v293 = vld [vmem:[#allocation2 + $0x198] sm:$0xff]
        %v294 = vld [vmem:[#allocation2 + $0x1a0] sm:$0xff]
        %v295 = vld [vmem:[#allocation2 + $0x1a8] sm:$0xff]
        %v296 = vld [vmem:[#allocation2 + $0x1b0] sm:$0xff]
        %v297 = vld [vmem:[#allocation2 + $0x1b8] sm:$0xff]
        %v298 = vld [vmem:[#allocation2 + $0x1c0] sm:$0xff]
        %v299 = vld [vmem:[#allocation2 + $0x1c8] sm:$0xff]
        %v300 = vld [vmem:[#allocation2 + $0x1d0] sm:$0xff]
        %v301 = vld [vmem:[#allocation2 + $0x1d8] sm:$0xff]
        %v302 = vld [vmem:[#allocation2 + $0x1e0] sm:$0xff]
        %v303 = vld [vmem:[#allocation2 + $0x1e8] sm:$0xff]
        %v304 = vld [vmem:[#allocation2 + $0x1f0] sm:$0xff]
        %v305 = vld [vmem:[#allocation2 + $0x1f8] sm:$0xff]
        %v306 = vld [vmem:[#allocation2 + $0x200] sm:$0xff]
        %v307 = vld [vmem:[#allocation2 + $0x208] sm:$0xff]
        %v308 = vld [vmem:[#allocation2 + $0x210] sm:$0xff]
        %v309 = vld [vmem:[#allocation2 + $0x218] sm:$0xff]
        %v310 = vld [vmem:[#allocation2 + $0x220] sm:$0xff]
        %v311 = vld [vmem:[#allocation2 + $0x228] sm:$0xff]
        %v312 = vld [vmem:[#allocation2 + $0x230] sm:$0xff]
        %v313 = vld [vmem:[#allocation2 + $0x238] sm:$0xff]
        %v314 = vld [vmem:[#allocation2 + $0x240] sm:$0xff]
        %v315 = vld [vmem:[#allocation2 + $0x248] sm:$0xff]
        %v316 = vld [vmem:[#allocation2 + $0x250] sm:$0xff]
        %v317 = vld [vmem:[#allocation2 + $0x258] sm:$0xff]
        %v318 = vld [vmem:[#allocation2 + $0x260] sm:$0xff]
        %v319 = vld [vmem:[#allocation2 + $0x268] sm:$0xff]
        %v320 = vld [vmem:[#allocation2 + $0x270] sm:$0xff]
        %v321 = vld [vmem:[#allocation2 + $0x278] sm:$0xff]
        %v322 = vld [vmem:[#allocation2 + $0x280] sm:$0xff]
        %v323 = vld [vmem:[#allocation2 + $0x288] sm:$0xff]
        %v324 = vld [vmem:[#allocation2 + $0x290] sm:$0xff]
        %v325 = vld [vmem:[#allocation2 + $0x298] sm:$0xff]
        %v326 = vld [vmem:[#allocation2 + $0x2a0] sm:$0xff]
        %v327 = vld [vmem:[#allocation2 + $0x2a8] sm:$0xff]
        %v328 = vld [vmem:[#allocation2 + $0x2b0] sm:$0xff]
        %v329 = vld [vmem:[#allocation2 + $0x2b8] sm:$0xff]
        %v330 = vld [vmem:[#allocation2 + $0x2c0] sm:$0xff]
        %v331 = vld [vmem:[#allocation2 + $0x2c8] sm:$0xff]
        %v332 = vld [vmem:[#allocation2 + $0x2d0] sm:$0xff]
        %v333 = vld [vmem:[#allocation2 + $0x2d8] sm:$0xff]
        %v334 = vld [vmem:[#allocation2 + $0x2e0] sm:$0xff]
        %v335 = vld [vmem:[#allocation2 + $0x2e8] sm:$0xff]
        %v336 = vld [vmem:[#allocation2 + $0x2f0] sm:$0xff]
        %v337 = vld [vmem:[#allocation2 + $0x2f8] sm:$0xff]
        %v338 = vld [vmem:[#allocation2 + $0x300] sm:$0xff]
        %v339 = vld [vmem:[#allocation2 + $0x308] sm:$0xff]
        %v340 = vld [vmem:[#allocation2 + $0x310] sm:$0xff]
        %v341 = vld [vmem:[#allocation2 + $0x318] sm:$0xff]
        %v342 = vld [vmem:[#allocation2 + $0x320] sm:$0xff]
        %v343 = vld [vmem:[#allocation2 + $0x328] sm:$0xff]
        %v344 = vld [vmem:[#allocation2 + $0x330] sm:$0xff]
        %v345 = vld [vmem:[#allocation2 + $0x338] sm:$0xff]
        %v346 = vld [vmem:[#allocation2 + $0x340] sm:$0xff]
        %v347 = vld [vmem:[#allocation2 + $0x348] sm:$0xff]
        %v348 = vld [vmem:[#allocation2 + $0x350] sm:$0xff]
        %v349 = vld [vmem:[#allocation2 + $0x358] sm:$0xff]
        %v350 = vld [vmem:[#allocation2 + $0x360] sm:$0xff]
        %v351 = vld [vmem:[#allocation2 + $0x368] sm:$0xff]
        %v352 = vld [vmem:[#allocation2 + $0x370] sm:$0xff]
        %v353 = vld [vmem:[#allocation2 + $0x378] sm:$0xff]
        %v354 = vld [vmem:[#allocation2 + $0x380] sm:$0xff]
        %v355 = vld [vmem:[#allocation2 + $0x388] sm:$0xff]
        %v356 = vld [vmem:[#allocation2 + $0x390] sm:$0xff]
        %v357 = vld [vmem:[#allocation2 + $0x398] sm:$0xff]
        %v358 = vld [vmem:[#allocation2 + $0x3a0] sm:$0xff]
        %v359 = vld [vmem:[#allocation2 + $0x3a8] sm:$0xff]
        %v360 = vld [vmem:[#allocation2 + $0x3b0] sm:$0xff]
        %v361 = vld [vmem:[#allocation2 + $0x3b8] sm:$0xff]
        %v362 = vld [vmem:[#allocation2 + $0x3c0] sm:$0xff]
        %v363 = vld [vmem:[#allocation2 + $0x3c8] sm:$0xff]
        %v364 = vld [vmem:[#allocation2 + $0x3d0] sm:$0xff]
        %v365 = vld [vmem:[#allocation2 + $0x3d8] sm:$0xff]
        %v366 = vld [vmem:[#allocation2 + $0x3e0] sm:$0xff]
        %v367 = vld [vmem:[#allocation2 + $0x3e8] sm:$0xff]
        %v368 = vld [vmem:[#allocation2 + $0x3f0] sm:$0xff]
        %v369 = vld [vmem:[#allocation2 + $0x3f8] sm:$0xff]
        %v370 = vld [vmem:[#allocation2 + $0x400] sm:$0xff]
        %v371 = vld [vmem:[#allocation2 + $0x408] sm:$0xff]
        %v372 = vld [vmem:[#allocation2 + $0x410] sm:$0xff]
        %v373 = vld [vmem:[#allocation2 + $0x418] sm:$0xff]
        %v374 = vld [vmem:[#allocation2 + $0x420] sm:$0xff]
        %v375 = vld [vmem:[#allocation2 + $0x428] sm:$0xff]
        %v376 = vld [vmem:[#allocation2 + $0x430] sm:$0xff]
        %v377 = vld [vmem:[#allocation2 + $0x438] sm:$0xff]
        %v378 = vld [vmem:[#allocation2 + $0x440] sm:$0xff]
        %v379 = vld [vmem:[#allocation2 + $0x448] sm:$0xff]
        %v380 = vld [vmem:[#allocation2 + $0x450] sm:$0xff]
        %v381 = vld [vmem:[#allocation2 + $0x458] sm:$0xff]
        %v382 = vld [vmem:[#allocation2 + $0x460] sm:$0xff]
        %v383 = vld [vmem:[#allocation2 + $0x468] sm:$0xff]
        %v384 = vld [vmem:[#allocation2 + $0x470] sm:$0xff]
        %v385 = vld [vmem:[#allocation2 + $0x478] sm:$0xff]
        %v386 = vld [vmem:[#allocation2 + $0x480] sm:$0xff]
        %v387 = vld [vmem:[#allocation2 + $0x488] sm:$0xff]
        %v388 = vld [vmem:[#allocation2 + $0x490] sm:$0xff]
        %v389 = vld [vmem:[#allocation2 + $0x498] sm:$0xff]
        %v390 = vld [vmem:[#allocation2 + $0x4a0] sm:$0xff]
        %v391 = vld [vmem:[#allocation2 + $0x4a8] sm:$0xff]
        %v392 = vld [vmem:[#allocation2 + $0x4b0] sm:$0xff]
        %v393 = vld [vmem:[#allocation2 + $0x4b8] sm:$0xff]
        %v394 = vld [vmem:[#allocation2 + $0x4c0] sm:$0xff]
        %v395 = vld [vmem:[#allocation2 + $0x4c8] sm:$0xff]
        %v396 = vld [vmem:[#allocation2 + $0x4d0] sm:$0xff]
        %v397 = vld [vmem:[#allocation2 + $0x4d8] sm:$0xff]
        %v398 = vld [vmem:[#allocation2 + $0x4e0] sm:$0xff]
        %v399 = vld [vmem:[#allocation2 + $0x4e8] sm:$0xff]
        %v400 = vld [vmem:[#allocation2 + $0x4f0] sm:$0xff]
        %v401 = vld [vmem:[#allocation2 + $0x4f8] sm:$0xff]
        %v402 = vld [vmem:[#allocation2 + $0x500] sm:$0xff]
        %v403 = vld [vmem:[#allocation2 + $0x508] sm:$0xff]
        %v404 = vld [vmem:[#allocation2 + $0x510] sm:$0xff]
        %v405 = vld [vmem:[#allocation2 + $0x518] sm:$0xff]
        %v406 = vld [vmem:[#allocation2 + $0x520] sm:$0xff]
        %v407 = vld [vmem:[#allocation2 + $0x528] sm:$0xff]
        %v408 = vld [vmem:[#allocation2 + $0x530] sm:$0xff]
        %v409 = vld [vmem:[#allocation2 + $0x538] sm:$0xff]
        %v410 = vld [vmem:[#allocation2 + $0x540] sm:$0xff]
        %v411 = vld [vmem:[#allocation2 + $0x548] sm:$0xff]
        %v412 = vld [vmem:[#allocation2 + $0x550] sm:$0xff]
        %v413 = vld [vmem:[#allocation2 + $0x558] sm:$0xff]
        %v414 = vld [vmem:[#allocation2 + $0x560] sm:$0xff]
        %v415 = vld [vmem:[#allocation2 + $0x568] sm:$0xff]
        %v416 = vld [vmem:[#allocation2 + $0x570] sm:$0xff]
        %v417 = vld [vmem:[#allocation2 + $0x578] sm:$0xff]
        %v418 = vld [vmem:[#allocation2 + $0x580] sm:$0xff]
        %v419 = vld [vmem:[#allocation2 + $0x588] sm:$0xff]
        %v420 = vld [vmem:[#allocation2 + $0x590] sm:$0xff]
        %v421 = vld [vmem:[#allocation2 + $0x598] sm:$0xff]
        %v422 = vld [vmem:[#allocation2 + $0x5a0] sm:$0xff]
        %v423 = vld [vmem:[#allocation2 + $0x5a8] sm:$0xff]
        %v424 = vld [vmem:[#allocation2 + $0x5b0] sm:$0xff]
        %v425 = vld [vmem:[#allocation2 + $0x5b8] sm:$0xff]
        %v426 = vld [vmem:[#allocation2 + $0x5c0] sm:$0xff]
        %v427 = vld [vmem:[#allocation2 + $0x5c8] sm:$0xff]
        %v428 = vld [vmem:[#allocation2 + $0x5d0] sm:$0xff]
        %v429 = vld [vmem:[#allocation2 + $0x5d8] sm:$0xff]
        %v430 = vld [vmem:[#allocation2 + $0x5e0] sm:$0xff]
        %v431 = vld [vmem:[#allocation2 + $0x5e8] sm:$0xff]
        %v432 = vld [vmem:[#allocation2 + $0x5f0] sm:$0xff]
        %v433 = vld [vmem:[#allocation2 + $0x5f8] sm:$0xff]
        %v434 = vld [vmem:[#allocation2 + $0x600] sm:$0xff]
        %v435 = vld [vmem:[#allocation2 + $0x608] sm:$0xff]
        %v436 = vld [vmem:[#allocation2 + $0x610] sm:$0xff]
        %v437 = vld [vmem:[#allocation2 + $0x618] sm:$0xff]
        %v438 = vld [vmem:[#allocation2 + $0x620] sm:$0xff]
        %v439 = vld [vmem:[#allocation2 + $0x628] sm:$0xff]
        %v440 = vld [vmem:[#allocation2 + $0x630] sm:$0xff]
        %v441 = vld [vmem:[#allocation2 + $0x638] sm:$0xff]
        %v442 = vld [vmem:[#allocation2 + $0x640] sm:$0xff]
        %v443 = vld [vmem:[#allocation2 + $0x648] sm:$0xff]
        %v444 = vld [vmem:[#allocation2 + $0x650] sm:$0xff]
        %v445 = vld [vmem:[#allocation2 + $0x658] sm:$0xff]
        %v446 = vld [vmem:[#allocation2 + $0x660] sm:$0xff]
        %v447 = vld [vmem:[#allocation2 + $0x668] sm:$0xff]
        %v448 = vld [vmem:[#allocation2 + $0x670] sm:$0xff]
        %v449 = vld [vmem:[#allocation2 + $0x678] sm:$0xff]
        %v450 = vld [vmem:[#allocation2 + $0x680] sm:$0xff]
        %v451 = vld [vmem:[#allocation2 + $0x688] sm:$0xff]
        %v452 = vld [vmem:[#allocation2 + $0x690] sm:$0xff]
        %v453 = vld [vmem:[#allocation2 + $0x698] sm:$0xff]
        %v454 = vld [vmem:[#allocation2 + $0x6a0] sm:$0xff]
        %v455 = vld [vmem:[#allocation2 + $0x6a8] sm:$0xff]
        %v456 = vld [vmem:[#allocation2 + $0x6b0] sm:$0xff]
        %v457 = vld [vmem:[#allocation2 + $0x6b8] sm:$0xff]
        %v458 = vld [vmem:[#allocation2 + $0x6c0] sm:$0xff]
        %v459 = vld [vmem:[#allocation2 + $0x6c8] sm:$0xff]
        %v460 = vld [vmem:[#allocation2 + $0x6d0] sm:$0xff]
        %v461 = vld [vmem:[#allocation2 + $0x6d8] sm:$0xff]
        %v462 = vld [vmem:[#allocation2 + $0x6e0] sm:$0xff]
        %v463 = vld [vmem:[#allocation2 + $0x6e8] sm:$0xff]
        %v464 = vld [vmem:[#allocation2 + $0x6f0] sm:$0xff]
        %v465 = vld [vmem:[#allocation2 + $0x6f8] sm:$0xff]
        %v466 = vld [vmem:[#allocation2 + $0x700] sm:$0xff]
        %v467 = vld [vmem:[#allocation2 + $0x708] sm:$0xff]
        %v468 = vld [vmem:[#allocation2 + $0x710] sm:$0xff]
        %v469 = vld [vmem:[#allocation2 + $0x718] sm:$0xff]
        %v470 = vld [vmem:[#allocation2 + $0x720] sm:$0xff]
        %v471 = vld [vmem:[#allocation2 + $0x728] sm:$0xff]
        %v472 = vld [vmem:[#allocation2 + $0x730] sm:$0xff]
        %v473 = vld [vmem:[#allocation2 + $0x738] sm:$0xff]
        %v474 = vld [vmem:[#allocation2 + $0x740] sm:$0xff]
        %v475 = vld [vmem:[#allocation2 + $0x748] sm:$0xff]
        %v476 = vld [vmem:[#allocation2 + $0x750] sm:$0xff]
        %v477 = vld [vmem:[#allocation2 + $0x758] sm:$0xff]
        %v478 = vld [vmem:[#allocation2 + $0x760] sm:$0xff]
        %v479 = vld [vmem:[#allocation2 + $0x768] sm:$0xff]
        %v480 = vld [vmem:[#allocation2 + $0x770] sm:$0xff]
        %v481 = vld [vmem:[#allocation2 + $0x778] sm:$0xff]
        %v482 = vld [vmem:[#allocation2 + $0x780] sm:$0xff]
        %v483 = vld [vmem:[#allocation2 + $0x788] sm:$0xff]
        %v484 = vld [vmem:[#allocation2 + $0x790] sm:$0xff]
        %v485 = vld [vmem:[#allocation2 + $0x798] sm:$0xff]
        %v486 = vld [vmem:[#allocation2 + $0x7a0] sm:$0xff]
        %v487 = vld [vmem:[#allocation2 + $0x7a8] sm:$0xff]
        %v488 = vld [vmem:[#allocation2 + $0x7b0] sm:$0xff]
        %v489 = vld [vmem:[#allocation2 + $0x7b8] sm:$0xff]
        %v490 = vld [vmem:[#allocation2 + $0x7c0] sm:$0xff]
        %v491 = vld [vmem:[#allocation2 + $0x7c8] sm:$0xff]
        %v492 = vld [vmem:[#allocation2 + $0x7d0] sm:$0xff]
        %v493 = vld [vmem:[#allocation2 + $0x7d8] sm:$0xff]
        %v494 = vld [vmem:[#allocation2 + $0x7e0] sm:$0xff]
        %v495 = vld [vmem:[#allocation2 + $0x7e8] sm:$0xff]
        %v496 = vld [vmem:[#allocation2 + $0x7f0] sm:$0xff]
        %v497 = vld [vmem:[#allocation2 + $0x7f8] sm:$0xff]
        %v498 = vld [vmem:[#allocation2 + $0x800] sm:$0xff]
        %v499 = vld [vmem:[#allocation2 + $0x808] sm:$0xff]
        %v500 = vld [vmem:[#allocation2 + $0x810] sm:$0xff]
        %v501 = vld [vmem:[#allocation2 + $0x818] sm:$0xff]
        %v502 = vld [vmem:[#allocation2 + $0x820] sm:$0xff]
        %v503 = vld [vmem:[#allocation2 + $0x828] sm:$0xff]
        %v504 = vld [vmem:[#allocation2 + $0x830] sm:$0xff]
        %v505 = vld [vmem:[#allocation2 + $0x838] sm:$0xff]
        %v506 = vld [vmem:[#allocation2 + $0x840] sm:$0xff]
        %v507 = vld [vmem:[#allocation2 + $0x848] sm:$0xff]
        %v508 = vld [vmem:[#allocation2 + $0x850] sm:$0xff]
        %v509 = vld [vmem:[#allocation2 + $0x858] sm:$0xff]
        %v510 = vld [vmem:[#allocation2 + $0x860] sm:$0xff]
        %v511 = vld [vmem:[#allocation2 + $0x868] sm:$0xff]
        %v512 = vld [vmem:[#allocation2 + $0x870] sm:$0xff]
        %v513 = vld [vmem:[#allocation2 + $0x878] sm:$0xff]
        %v514 = vld [vmem:[#allocation2 + $0x880] sm:$0xff]
        %v515 = vld [vmem:[#allocation2 + $0x888] sm:$0xff]
        %v516 = vld [vmem:[#allocation2 + $0x890] sm:$0xff]
        %v517 = vld [vmem:[#allocation2 + $0x898] sm:$0xff]
        %v518 = vld [vmem:[#allocation2 + $0x8a0] sm:$0xff]
        %v519 = vld [vmem:[#allocation2 + $0x8a8] sm:$0xff]
        %v520 = vld [vmem:[#allocation2 + $0x8b0] sm:$0xff]
        %v521 = vld [vmem:[#allocation2 + $0x8b8] sm:$0xff]
        %v522 = vld [vmem:[#allocation2 + $0x8c0] sm:$0xff]
        %v523 = vld [vmem:[#allocation2 + $0x8c8] sm:$0xff]
        %v524 = vld [vmem:[#allocation2 + $0x8d0] sm:$0xff]
        %v525 = vld [vmem:[#allocation2 + $0x8d8] sm:$0xff]
        %v526 = vld [vmem:[#allocation2 + $0x8e0] sm:$0xff]
        %v527 = vld [vmem:[#allocation2 + $0x8e8] sm:$0xff]
        %v528 = vld [vmem:[#allocation2 + $0x8f0] sm:$0xff]
        %v529 = vld [vmem:[#allocation2 + $0x8f8] sm:$0xff]
        %v530 = vld [vmem:[#allocation2 + $0x900] sm:$0xff]
        %v531 = vld [vmem:[#allocation2 + $0x908] sm:$0xff]
        %v532 = vld [vmem:[#allocation2 + $0x910] sm:$0xff]
        %v533 = vld [vmem:[#allocation2 + $0x918] sm:$0xff]
        %v534 = vld [vmem:[#allocation2 + $0x920] sm:$0xff]
        %v535 = vld [vmem:[#allocation2 + $0x928] sm:$0xff]
        %v536 = vld [vmem:[#allocation2 + $0x930] sm:$0xff]
        %v537 = vld [vmem:[#allocation2 + $0x938] sm:$0xff]
        %v538 = vld [vmem:[#allocation2 + $0x940] sm:$0xff]
        %v539 = vld [vmem:[#allocation2 + $0x948] sm:$0xff]
        %v540 = vld [vmem:[#allocation2 + $0x950] sm:$0xff]
        %v541 = vld [vmem:[#allocation2 + $0x958] sm:$0xff]
        %v542 = vld [vmem:[#allocation2 + $0x960] sm:$0xff]
        %v543 = vld [vmem:[#allocation2 + $0x968] sm:$0xff]
        %v544 = vld [vmem:[#allocation2 + $0x970] sm:$0xff]
        %v545 = vld [vmem:[#allocation2 + $0x978] sm:$0xff]
        %v546 = vld [vmem:[#allocation2 + $0x980] sm:$0xff]
        %v547 = vld [vmem:[#allocation2 + $0x988] sm:$0xff]
        %v548 = vld [vmem:[#allocation2 + $0x990] sm:$0xff]
        %v549 = vld [vmem:[#allocation2 + $0x998] sm:$0xff]
        %v550 = vld [vmem:[#allocation2 + $0x9a0] sm:$0xff]
        %v551 = vld [vmem:[#allocation2 + $0x9a8] sm:$0xff]
        %v552 = vld [vmem:[#allocation2 + $0x9b0] sm:$0xff]
        %v553 = vld [vmem:[#allocation2 + $0x9b8] sm:$0xff]
        %v554 = vld [vmem:[#allocation2 + $0x9c0] sm:$0xff]
        %v555 = vld [vmem:[#allocation2 + $0x9c8] sm:$0xff]
        %v556 = vld [vmem:[#allocation2 + $0x9d0] sm:$0xff]
        %v557 = vld [vmem:[#allocation2 + $0x9d8] sm:$0xff]
        %v558 = vld [vmem:[#allocation2 + $0x9e0] sm:$0xff]
        %v559 = vld [vmem:[#allocation2 + $0x9e8] sm:$0xff]
        %v560 = vld [vmem:[#allocation2 + $0x9f0] sm:$0xff]
        %v561 = vld [vmem:[#allocation2 + $0x9f8] sm:$0xff]
        %v562 = vld [vmem:[#allocation2 + $0xa00] sm:$0xff]
        %v563 = vld [vmem:[#allocation2 + $0xa08] sm:$0xff]
        %v564 = vld [vmem:[#allocation2 + $0xa10] sm:$0xff]
        %v565 = vld [vmem:[#allocation2 + $0xa18] sm:$0xff]
        %v566 = vld [vmem:[#allocation2 + $0xa20] sm:$0xff]
        %v567 = vld [vmem:[#allocation2 + $0xa28] sm:$0xff]
        %v568 = vld [vmem:[#allocation2 + $0xa30] sm:$0xff]
        %v569 = vld [vmem:[#allocation2 + $0xa38] sm:$0xff]
        %v570 = vld [vmem:[#allocation2 + $0xa40] sm:$0xff]
        %v571 = vld [vmem:[#allocation2 + $0xa48] sm:$0xff]
        %v572 = vld [vmem:[#allocation2 + $0xa50] sm:$0xff]
        %v573 = vld [vmem:[#allocation2 + $0xa58] sm:$0xff]
        %v574 = vld [vmem:[#allocation2 + $0xa60] sm:$0xff]
        %v575 = vld [vmem:[#allocation2 + $0xa68] sm:$0xff]
        %v576 = vld [vmem:[#allocation2 + $0xa70] sm:$0xff]
        %v577 = vld [vmem:[#allocation2 + $0xa78] sm:$0xff]
        %v578 = vld [vmem:[#allocation2 + $0xa80] sm:$0xff]
        %v579 = vld [vmem:[#allocation2 + $0xa88] sm:$0xff]
        %v580 = vld [vmem:[#allocation2 + $0xa90] sm:$0xff]
        %v581 = vld [vmem:[#allocation2 + $0xa98] sm:$0xff]
        %v582 = vld [vmem:[#allocation2 + $0xaa0] sm:$0xff]
        %v583 = vld [vmem:[#allocation2 + $0xaa8] sm:$0xff]
        %v584 = vld [vmem:[#allocation2 + $0xab0] sm:$0xff]
        %v585 = vld [vmem:[#allocation2 + $0xab8] sm:$0xff]
        %v586 = vld [vmem:[#allocation2 + $0xac0] sm:$0xff]
        %v587 = vld [vmem:[#allocation2 + $0xac8] sm:$0xff]
        %v588 = vld [vmem:[#allocation2 + $0xad0] sm:$0xff]
        %v589 = vld [vmem:[#allocation2 + $0xad8] sm:$0xff]
        %v590 = vld [vmem:[#allocation2 + $0xae0] sm:$0xff]
        %v591 = vld [vmem:[#allocation2 + $0xae8] sm:$0xff]
        %v592 = vld [vmem:[#allocation2 + $0xaf0] sm:$0xff]
        %v593 = vld [vmem:[#allocation2 + $0xaf8] sm:$0xff]
        %v594 = vld [vmem:[#allocation2 + $0xb00] sm:$0xff]
        %v595 = vld [vmem:[#allocation2 + $0xb08] sm:$0xff]
        %v596 = vld [vmem:[#allocation2 + $0xb10] sm:$0xff]
        %v597 = vld [vmem:[#allocation2 + $0xb18] sm:$0xff]
        %v598 = vld [vmem:[#allocation2 + $0xb20] sm:$0xff]
        %v599 = vld [vmem:[#allocation2 + $0xb28] sm:$0xff]
        %v600 = vld [vmem:[#allocation2 + $0xb30] sm:$0xff]
        %v601 = vld [vmem:[#allocation2 + $0xb38] sm:$0xff]
        %v602 = vld [vmem:[#allocation2 + $0xb40] sm:$0xff]
        %v603 = vld [vmem:[#allocation2 + $0xb48] sm:$0xff]
        %v604 = vld [vmem:[#allocation2 + $0xb50] sm:$0xff]
        %v605 = vld [vmem:[#allocation2 + $0xb58] sm:$0xff]
        %v606 = vld [vmem:[#allocation2 + $0xb60] sm:$0xff]
        %v607 = vld [vmem:[#allocation2 + $0xb68] sm:$0xff]
        %v608 = vld [vmem:[#allocation2 + $0xb70] sm:$0xff]
        %v609 = vld [vmem:[#allocation2 + $0xb78] sm:$0xff]
        %v610 = vld [vmem:[#allocation2 + $0xb80] sm:$0xff]
        %v611 = vld [vmem:[#allocation2 + $0xb88] sm:$0xff]
        %v612 = vld [vmem:[#allocation2 + $0xb90] sm:$0xff]
        %v613 = vld [vmem:[#allocation2 + $0xb98] sm:$0xff]
        %v614 = vld [vmem:[#allocation2 + $0xba0] sm:$0xff]
        %v615 = vld [vmem:[#allocation2 + $0xba8] sm:$0xff]
        %v616 = vld [vmem:[#allocation2 + $0xbb0] sm:$0xff]
        %v617 = vld [vmem:[#allocation2 + $0xbb8] sm:$0xff]
        %v618 = vld [vmem:[#allocation2 + $0xbc0] sm:$0xff]
        %v619 = vld [vmem:[#allocation2 + $0xbc8] sm:$0xff]
        %v620 = vld [vmem:[#allocation2 + $0xbd0] sm:$0xff]
        %v621 = vld [vmem:[#allocation2 + $0xbd8] sm:$0xff]
        %v622 = vld [vmem:[#allocation2 + $0xbe0] sm:$0xff]
        %v623 = vld [vmem:[#allocation2 + $0xbe8] sm:$0xff]
        %v624 = vld [vmem:[#allocation2 + $0xbf0] sm:$0xff]
        %v625 = vld [vmem:[#allocation2 + $0xbf8] sm:$0xff]
        %v626 = vld [vmem:[#allocation2 + $0xc00] sm:$0xf]
        %v627 = vld [vmem:[#allocation2 + $0xc08] sm:$0xf]
        %v628 = vld [vmem:[#allocation2 + $0xc10] sm:$0xf]
        %v629 = vld [vmem:[#allocation2 + $0xc18] sm:$0xf]
        %v630 = vld [vmem:[#allocation2 + $0xc20] sm:$0xf]
        %v631 = vld [vmem:[#allocation2 + $0xc28] sm:$0xf]
        %v632 = vld [vmem:[#allocation2 + $0xc30] sm:$0xf]
        %v633 = vld [vmem:[#allocation2 + $0xc38] sm:$0xf]
        %v634 = vld [vmem:[#allocation2 + $0xc40] sm:$0xf]
        %v635 = vld [vmem:[#allocation2 + $0xc48] sm:$0xf]
        %v636 = vld [vmem:[#allocation2 + $0xc50] sm:$0xf]
        %v637 = vld [vmem:[#allocation2 + $0xc58] sm:$0xf]
        %v638 = vld [vmem:[#allocation2 + $0xc60] sm:$0xf]
        %v639 = vld [vmem:[#allocation2 + $0xc68] sm:$0xf]
        %v640 = vld [vmem:[#allocation2 + $0xc70] sm:$0xf]
        %v641 = vld [vmem:[#allocation2 + $0xc78] sm:$0xf]
        %v642 = vld [vmem:[%s202] sm:$0xff]
        %v643 = vld [vmem:[%s202 + $0x8] sm:$0xff]
        %v644 = vld [vmem:[%s202 + $0x10] sm:$0xff]
        %v645 = vld [vmem:[%s202 + $0x18] sm:$0xff]
        %v646 = vld [vmem:[%s202 + $0x20] sm:$0xff]
        %v647 = vld [vmem:[%s202 + $0x28] sm:$0xff]
        %v648 = vld [vmem:[%s202 + $0x30] sm:$0xff]
        %v649 = vld [vmem:[%s202 + $0x38] sm:$0xff]
        %v650 = vld [vmem:[%s202 + $0x40] sm:$0xff]
        %v651 = vld [vmem:[%s202 + $0x48] sm:$0xff]
        %v652 = vld [vmem:[%s202 + $0x50] sm:$0xff]
        %v653 = vld [vmem:[%s202 + $0x58] sm:$0xff]
        %v654 = vld [vmem:[%s202 + $0x60] sm:$0xff]
        %v655 = vld [vmem:[%s202 + $0x68] sm:$0xff]
        %v656 = vld [vmem:[%s202 + $0x70] sm:$0xff]
        %v657 = vld [vmem:[%s202 + $0x78] sm:$0xff]
        %v658 = vld [vmem:[%s202 + $0x80] sm:$0xff]
        %v659 = vld [vmem:[%s202 + $0x88] sm:$0xff]
        %v660 = vld [vmem:[%s202 + $0x90] sm:$0xff]
        %v661 = vld [vmem:[%s202 + $0x98] sm:$0xff]
        %v662 = vld [vmem:[%s202 + $0xa0] sm:$0xff]
        %v663 = vld [vmem:[%s202 + $0xa8] sm:$0xff]
        %v664 = vld [vmem:[%s202 + $0xb0] sm:$0xff]
        %v665 = vld [vmem:[%s202 + $0xb8] sm:$0xff]
        %v666 = vld [vmem:[%s202 + $0xc0] sm:$0xff]
        %v667 = vld [vmem:[%s202 + $0xc8] sm:$0xff]
        %v668 = vld [vmem:[%s202 + $0xd0] sm:$0xff]
        %v669 = vld [vmem:[%s202 + $0xd8] sm:$0xff]
        %v670 = vld [vmem:[%s202 + $0xe0] sm:$0xff]
        %v671 = vld [vmem:[%s202 + $0xe8] sm:$0xff]
        %v672 = vld [vmem:[%s202 + $0xf0] sm:$0xff]
        %v673 = vld [vmem:[%s202 + $0xf8] sm:$0xff]
        %v674 = vld [vmem:[%s202 + $0x100] sm:$0xff]
        %v675 = vld [vmem:[%s202 + $0x108] sm:$0xff]
        %v676 = vld [vmem:[%s202 + $0x110] sm:$0xff]
        %v677 = vld [vmem:[%s202 + $0x118] sm:$0xff]
        %v678 = vld [vmem:[%s202 + $0x120] sm:$0xff]
        %v679 = vld [vmem:[%s202 + $0x128] sm:$0xff]
        %v680 = vld [vmem:[%s202 + $0x130] sm:$0xff]
        %v681 = vld [vmem:[%s202 + $0x138] sm:$0xff]
        %v682 = vld [vmem:[%s202 + $0x140] sm:$0xff]
        %v683 = vld [vmem:[%s202 + $0x148] sm:$0xff]
        %v684 = vld [vmem:[%s202 + $0x150] sm:$0xff]
        %v685 = vld [vmem:[%s202 + $0x158] sm:$0xff]
        %v686 = vld [vmem:[%s202 + $0x160] sm:$0xff]
        %v687 = vld [vmem:[%s202 + $0x168] sm:$0xff]
        %v688 = vld [vmem:[%s202 + $0x170] sm:$0xff]
        %v689 = vld [vmem:[%s202 + $0x178] sm:$0xff]
        %v690 = vld [vmem:[%s202 + $0x180] sm:$0xff]
        %v691 = vld [vmem:[%s202 + $0x188] sm:$0xff]
        %v692 = vld [vmem:[%s202 + $0x190] sm:$0xff]
        %v693 = vld [vmem:[%s202 + $0x198] sm:$0xff]
        %v694 = vld [vmem:[%s202 + $0x1a0] sm:$0xff]
        %v695 = vld [vmem:[%s202 + $0x1a8] sm:$0xff]
        %v696 = vld [vmem:[%s202 + $0x1b0] sm:$0xff]
        %v697 = vld [vmem:[%s202 + $0x1b8] sm:$0xff]
        %v698 = vld [vmem:[%s202 + $0x1c0] sm:$0xff]
        %v699 = vld [vmem:[%s202 + $0x1c8] sm:$0xff]
        %v700 = vld [vmem:[%s202 + $0x1d0] sm:$0xff]
        %v701 = vld [vmem:[%s202 + $0x1d8] sm:$0xff]
        %v702 = vld [vmem:[%s202 + $0x1e0] sm:$0xff]
        %v703 = vld [vmem:[%s202 + $0x1e8] sm:$0xff]
        %v704 = vld [vmem:[%s202 + $0x1f0] sm:$0xff]
        %v705 = vld [vmem:[%s202 + $0x1f8] sm:$0xff]
        %v706 = vld [vmem:[%s202 + $0x200] sm:$0xff]
        %v707 = vld [vmem:[%s202 + $0x208] sm:$0xff]
        %v708 = vld [vmem:[%s202 + $0x210] sm:$0xff]
        %v709 = vld [vmem:[%s202 + $0x218] sm:$0xff]
        %v710 = vld [vmem:[%s202 + $0x220] sm:$0xff]
        %v711 = vld [vmem:[%s202 + $0x228] sm:$0xff]
        %v712 = vld [vmem:[%s202 + $0x230] sm:$0xff]
        %v713 = vld [vmem:[%s202 + $0x238] sm:$0xff]
        %v714 = vld [vmem:[%s202 + $0x240] sm:$0xff]
        %v715 = vld [vmem:[%s202 + $0x248] sm:$0xff]
        %v716 = vld [vmem:[%s202 + $0x250] sm:$0xff]
        %v717 = vld [vmem:[%s202 + $0x258] sm:$0xff]
        %v718 = vld [vmem:[%s202 + $0x260] sm:$0xff]
        %v719 = vld [vmem:[%s202 + $0x268] sm:$0xff]
        %v720 = vld [vmem:[%s202 + $0x270] sm:$0xff]
        %v721 = vld [vmem:[%s202 + $0x278] sm:$0xff]
        %v722 = vld [vmem:[%s202 + $0x280] sm:$0xff]
        %v723 = vld [vmem:[%s202 + $0x288] sm:$0xff]
        %v724 = vld [vmem:[%s202 + $0x290] sm:$0xff]
        %v725 = vld [vmem:[%s202 + $0x298] sm:$0xff]
        %v726 = vld [vmem:[%s202 + $0x2a0] sm:$0xff]
        %v727 = vld [vmem:[%s202 + $0x2a8] sm:$0xff]
        %v728 = vld [vmem:[%s202 + $0x2b0] sm:$0xff]
        %v729 = vld [vmem:[%s202 + $0x2b8] sm:$0xff]
        %v730 = vld [vmem:[%s202 + $0x2c0] sm:$0xff]
        %v731 = vld [vmem:[%s202 + $0x2c8] sm:$0xff]
        %v732 = vld [vmem:[%s202 + $0x2d0] sm:$0xff]
        %v733 = vld [vmem:[%s202 + $0x2d8] sm:$0xff]
        %v734 = vld [vmem:[%s202 + $0x2e0] sm:$0xff]
        %v735 = vld [vmem:[%s202 + $0x2e8] sm:$0xff]
        %v736 = vld [vmem:[%s202 + $0x2f0] sm:$0xff]
        %v737 = vld [vmem:[%s202 + $0x2f8] sm:$0xff]
        %v738 = vld [vmem:[%s202 + $0x300] sm:$0xff]
        %v739 = vld [vmem:[%s202 + $0x308] sm:$0xff]
        %v740 = vld [vmem:[%s202 + $0x310] sm:$0xff]
        %v741 = vld [vmem:[%s202 + $0x318] sm:$0xff]
        %v742 = vld [vmem:[%s202 + $0x320] sm:$0xff]
        %v743 = vld [vmem:[%s202 + $0x328] sm:$0xff]
        %v744 = vld [vmem:[%s202 + $0x330] sm:$0xff]
        %v745 = vld [vmem:[%s202 + $0x338] sm:$0xff]
        %v746 = vld [vmem:[%s202 + $0x340] sm:$0xff]
        %v747 = vld [vmem:[%s202 + $0x348] sm:$0xff]
        %v748 = vld [vmem:[%s202 + $0x350] sm:$0xff]
        %v749 = vld [vmem:[%s202 + $0x358] sm:$0xff]
        %v750 = vld [vmem:[%s202 + $0x360] sm:$0xff]
        %v751 = vld [vmem:[%s202 + $0x368] sm:$0xff]
        %v752 = vld [vmem:[%s202 + $0x370] sm:$0xff]
        %v753 = vld [vmem:[%s202 + $0x378] sm:$0xff]
        %v754 = vld [vmem:[%s202 + $0x380] sm:$0xff]
        %v755 = vld [vmem:[%s202 + $0x388] sm:$0xff]
        %v756 = vld [vmem:[%s202 + $0x390] sm:$0xff]
        %v757 = vld [vmem:[%s202 + $0x398] sm:$0xff]
        %v758 = vld [vmem:[%s202 + $0x3a0] sm:$0xff]
        %v759 = vld [vmem:[%s202 + $0x3a8] sm:$0xff]
        %v760 = vld [vmem:[%s202 + $0x3b0] sm:$0xff]
        %v761 = vld [vmem:[%s202 + $0x3b8] sm:$0xff]
        %v762 = vld [vmem:[%s202 + $0x3c0] sm:$0xff]
        %v763 = vld [vmem:[%s202 + $0x3c8] sm:$0xff]
        %v764 = vld [vmem:[%s202 + $0x3d0] sm:$0xff]
        %v765 = vld [vmem:[%s202 + $0x3d8] sm:$0xff]
        %v766 = vld [vmem:[%s202 + $0x3e0] sm:$0xff]
        %v767 = vld [vmem:[%s202 + $0x3e8] sm:$0xff]
        %v768 = vld [vmem:[%s202 + $0x3f0] sm:$0xff]
        %v769 = vld [vmem:[%s202 + $0x3f8] sm:$0xff]
        %v770 = vld [vmem:[%s202 + $0x400] sm:$0xff]
        %v771 = vld [vmem:[%s202 + $0x408] sm:$0xff]
        %v772 = vld [vmem:[%s202 + $0x410] sm:$0xff]
        %v773 = vld [vmem:[%s202 + $0x418] sm:$0xff]
        %v774 = vld [vmem:[%s202 + $0x420] sm:$0xff]
        %v775 = vld [vmem:[%s202 + $0x428] sm:$0xff]
        %v776 = vld [vmem:[%s202 + $0x430] sm:$0xff]
        %v777 = vld [vmem:[%s202 + $0x438] sm:$0xff]
        %v778 = vld [vmem:[%s202 + $0x440] sm:$0xff]
        %v779 = vld [vmem:[%s202 + $0x448] sm:$0xff]
        %v780 = vld [vmem:[%s202 + $0x450] sm:$0xff]
        %v781 = vld [vmem:[%s202 + $0x458] sm:$0xff]
        %v782 = vld [vmem:[%s202 + $0x460] sm:$0xff]
        %v783 = vld [vmem:[%s202 + $0x468] sm:$0xff]
        %v784 = vld [vmem:[%s202 + $0x470] sm:$0xff]
        %v785 = vld [vmem:[%s202 + $0x478] sm:$0xff]
        %v786 = vld [vmem:[%s202 + $0x480] sm:$0xff]
        %v787 = vld [vmem:[%s202 + $0x488] sm:$0xff]
        %v788 = vld [vmem:[%s202 + $0x490] sm:$0xff]
        %v789 = vld [vmem:[%s202 + $0x498] sm:$0xff]
        %v790 = vld [vmem:[%s202 + $0x4a0] sm:$0xff]
        %v791 = vld [vmem:[%s202 + $0x4a8] sm:$0xff]
        %v792 = vld [vmem:[%s202 + $0x4b0] sm:$0xff]
        %v793 = vld [vmem:[%s202 + $0x4b8] sm:$0xff]
        %v794 = vld [vmem:[%s202 + $0x4c0] sm:$0xff]
        %v795 = vld [vmem:[%s202 + $0x4c8] sm:$0xff]
        %v796 = vld [vmem:[%s202 + $0x4d0] sm:$0xff]
        %v797 = vld [vmem:[%s202 + $0x4d8] sm:$0xff]
        %v798 = vld [vmem:[%s202 + $0x4e0] sm:$0xff]
        %v799 = vld [vmem:[%s202 + $0x4e8] sm:$0xff]
        %v800 = vld [vmem:[%s202 + $0x4f0] sm:$0xff]
        %v801 = vld [vmem:[%s202 + $0x4f8] sm:$0xff]
        %v802 = vld [vmem:[%s202 + $0x500] sm:$0xff]
        %v803 = vld [vmem:[%s202 + $0x508] sm:$0xff]
        %v804 = vld [vmem:[%s202 + $0x510] sm:$0xff]
        %v805 = vld [vmem:[%s202 + $0x518] sm:$0xff]
        %v806 = vld [vmem:[%s202 + $0x520] sm:$0xff]
        %v807 = vld [vmem:[%s202 + $0x528] sm:$0xff]
        %v808 = vld [vmem:[%s202 + $0x530] sm:$0xff]
        %v809 = vld [vmem:[%s202 + $0x538] sm:$0xff]
        %v810 = vld [vmem:[%s202 + $0x540] sm:$0xff]
        %v811 = vld [vmem:[%s202 + $0x548] sm:$0xff]
        %v812 = vld [vmem:[%s202 + $0x550] sm:$0xff]
        %v813 = vld [vmem:[%s202 + $0x558] sm:$0xff]
        %v814 = vld [vmem:[%s202 + $0x560] sm:$0xff]
        %v815 = vld [vmem:[%s202 + $0x568] sm:$0xff]
        %v816 = vld [vmem:[%s202 + $0x570] sm:$0xff]
        %v817 = vld [vmem:[%s202 + $0x578] sm:$0xff]
        %v818 = vld [vmem:[%s202 + $0x580] sm:$0xff]
        %v819 = vld [vmem:[%s202 + $0x588] sm:$0xff]
        %v820 = vld [vmem:[%s202 + $0x590] sm:$0xff]
        %v821 = vld [vmem:[%s202 + $0x598] sm:$0xff]
        %v822 = vld [vmem:[%s202 + $0x5a0] sm:$0xff]
        %v823 = vld [vmem:[%s202 + $0x5a8] sm:$0xff]
        %v824 = vld [vmem:[%s202 + $0x5b0] sm:$0xff]
        %v825 = vld [vmem:[%s202 + $0x5b8] sm:$0xff]
        %v826 = vld [vmem:[%s202 + $0x5c0] sm:$0xff]
        %v827 = vld [vmem:[%s202 + $0x5c8] sm:$0xff]
        %v828 = vld [vmem:[%s202 + $0x5d0] sm:$0xff]
        %v829 = vld [vmem:[%s202 + $0x5d8] sm:$0xff]
        %v830 = vld [vmem:[%s202 + $0x5e0] sm:$0xff]
        %v831 = vld [vmem:[%s202 + $0x5e8] sm:$0xff]
        %v832 = vld [vmem:[%s202 + $0x5f0] sm:$0xff]
        %v833 = vld [vmem:[%s202 + $0x5f8] sm:$0xff]
        %v834 = vld [vmem:[%s202 + $0x600] sm:$0xff]
        %v835 = vld [vmem:[%s202 + $0x608] sm:$0xff]
        %v836 = vld [vmem:[%s202 + $0x610] sm:$0xff]
        %v837 = vld [vmem:[%s202 + $0x618] sm:$0xff]
        %v838 = vld [vmem:[%s202 + $0x620] sm:$0xff]
        %v839 = vld [vmem:[%s202 + $0x628] sm:$0xff]
        %v840 = vld [vmem:[%s202 + $0x630] sm:$0xff]
        %v841 = vld [vmem:[%s202 + $0x638] sm:$0xff]
        %v842 = vld [vmem:[%s202 + $0x640] sm:$0xff]
        %v843 = vld [vmem:[%s202 + $0x648] sm:$0xff]
        %v844 = vld [vmem:[%s202 + $0x650] sm:$0xff]
        %v845 = vld [vmem:[%s202 + $0x658] sm:$0xff]
        %v846 = vld [vmem:[%s202 + $0x660] sm:$0xff]
        %v847 = vld [vmem:[%s202 + $0x668] sm:$0xff]
        %v848 = vld [vmem:[%s202 + $0x670] sm:$0xff]
        %v849 = vld [vmem:[%s202 + $0x678] sm:$0xff]
        %v850 = vld [vmem:[%s202 + $0x680] sm:$0xff]
        %v851 = vld [vmem:[%s202 + $0x688] sm:$0xff]
        %v852 = vld [vmem:[%s202 + $0x690] sm:$0xff]
        %v853 = vld [vmem:[%s202 + $0x698] sm:$0xff]
        %v854 = vld [vmem:[%s202 + $0x6a0] sm:$0xff]
        %v855 = vld [vmem:[%s202 + $0x6a8] sm:$0xff]
        %v856 = vld [vmem:[%s202 + $0x6b0] sm:$0xff]
        %v857 = vld [vmem:[%s202 + $0x6b8] sm:$0xff]
        %v858 = vld [vmem:[%s202 + $0x6c0] sm:$0xff]
        %v859 = vld [vmem:[%s202 + $0x6c8] sm:$0xff]
        %v860 = vld [vmem:[%s202 + $0x6d0] sm:$0xff]
        %v861 = vld [vmem:[%s202 + $0x6d8] sm:$0xff]
        %v862 = vld [vmem:[%s202 + $0x6e0] sm:$0xff]
        %v863 = vld [vmem:[%s202 + $0x6e8] sm:$0xff]
        %v864 = vld [vmem:[%s202 + $0x6f0] sm:$0xff]
        %v865 = vld [vmem:[%s202 + $0x6f8] sm:$0xff]
        %v866 = vld [vmem:[%s202 + $0x700] sm:$0xff]
        %v867 = vld [vmem:[%s202 + $0x708] sm:$0xff]
        %v868 = vld [vmem:[%s202 + $0x710] sm:$0xff]
        %v869 = vld [vmem:[%s202 + $0x718] sm:$0xff]
        %v870 = vld [vmem:[%s202 + $0x720] sm:$0xff]
        %v871 = vld [vmem:[%s202 + $0x728] sm:$0xff]
        %v872 = vld [vmem:[%s202 + $0x730] sm:$0xff]
        %v873 = vld [vmem:[%s202 + $0x738] sm:$0xff]
        %v874 = vld [vmem:[%s202 + $0x740] sm:$0xff]
        %v875 = vld [vmem:[%s202 + $0x748] sm:$0xff]
        %v876 = vld [vmem:[%s202 + $0x750] sm:$0xff]
        %v877 = vld [vmem:[%s202 + $0x758] sm:$0xff]
        %v878 = vld [vmem:[%s202 + $0x760] sm:$0xff]
        %v879 = vld [vmem:[%s202 + $0x768] sm:$0xff]
        %v880 = vld [vmem:[%s202 + $0x770] sm:$0xff]
        %v881 = vld [vmem:[%s202 + $0x778] sm:$0xff]
        %v882 = vld [vmem:[%s202 + $0x780] sm:$0xff]
        %v883 = vld [vmem:[%s202 + $0x788] sm:$0xff]
        %v884 = vld [vmem:[%s202 + $0x790] sm:$0xff]
        %v885 = vld [vmem:[%s202 + $0x798] sm:$0xff]
        %v886 = vld [vmem:[%s202 + $0x7a0] sm:$0xff]
        %v887 = vld [vmem:[%s202 + $0x7a8] sm:$0xff]
        %v888 = vld [vmem:[%s202 + $0x7b0] sm:$0xff]
        %v889 = vld [vmem:[%s202 + $0x7b8] sm:$0xff]
        %v890 = vld [vmem:[%s202 + $0x7c0] sm:$0xff]
        %v891 = vld [vmem:[%s202 + $0x7c8] sm:$0xff]
        %v892 = vld [vmem:[%s202 + $0x7d0] sm:$0xff]
        %v893 = vld [vmem:[%s202 + $0x7d8] sm:$0xff]
        %v894 = vld [vmem:[%s202 + $0x7e0] sm:$0xff]
        %v895 = vld [vmem:[%s202 + $0x7e8] sm:$0xff]
        %v896 = vld [vmem:[%s202 + $0x7f0] sm:$0xff]
        %v897 = vld [vmem:[%s202 + $0x7f8] sm:$0xff]
        %v898 = vld [vmem:[%s202 + $0x800] sm:$0xff]
        %v899 = vld [vmem:[%s202 + $0x808] sm:$0xff]
        %v900 = vld [vmem:[%s202 + $0x810] sm:$0xff]
        %v901 = vld [vmem:[%s202 + $0x818] sm:$0xff]
        %v902 = vld [vmem:[%s202 + $0x820] sm:$0xff]
        %v903 = vld [vmem:[%s202 + $0x828] sm:$0xff]
        %v904 = vld [vmem:[%s202 + $0x830] sm:$0xff]
        %v905 = vld [vmem:[%s202 + $0x838] sm:$0xff]
        %v906 = vld [vmem:[%s202 + $0x840] sm:$0xff]
        %v907 = vld [vmem:[%s202 + $0x848] sm:$0xff]
        %v908 = vld [vmem:[%s202 + $0x850] sm:$0xff]
        %v909 = vld [vmem:[%s202 + $0x858] sm:$0xff]
        %v910 = vld [vmem:[%s202 + $0x860] sm:$0xff]
        %v911 = vld [vmem:[%s202 + $0x868] sm:$0xff]
        %v912 = vld [vmem:[%s202 + $0x870] sm:$0xff]
        %v913 = vld [vmem:[%s202 + $0x878] sm:$0xff]
        %v914 = vld [vmem:[%s202 + $0x880] sm:$0xff]
        %v915 = vld [vmem:[%s202 + $0x888] sm:$0xff]
        %v916 = vld [vmem:[%s202 + $0x890] sm:$0xff]
        %v917 = vld [vmem:[%s202 + $0x898] sm:$0xff]
        %v918 = vld [vmem:[%s202 + $0x8a0] sm:$0xff]
        %v919 = vld [vmem:[%s202 + $0x8a8] sm:$0xff]
        %v920 = vld [vmem:[%s202 + $0x8b0] sm:$0xff]
        %v921 = vld [vmem:[%s202 + $0x8b8] sm:$0xff]
        %v922 = vld [vmem:[%s202 + $0x8c0] sm:$0xff]
        %v923 = vld [vmem:[%s202 + $0x8c8] sm:$0xff]
        %v924 = vld [vmem:[%s202 + $0x8d0] sm:$0xff]
        %v925 = vld [vmem:[%s202 + $0x8d8] sm:$0xff]
        %v926 = vld [vmem:[%s202 + $0x8e0] sm:$0xff]
        %v927 = vld [vmem:[%s202 + $0x8e8] sm:$0xff]
        %v928 = vld [vmem:[%s202 + $0x8f0] sm:$0xff]
        %v929 = vld [vmem:[%s202 + $0x8f8] sm:$0xff]
        %v930 = vld [vmem:[%s202 + $0x900] sm:$0xff]
        %v931 = vld [vmem:[%s202 + $0x908] sm:$0xff]
        %v932 = vld [vmem:[%s202 + $0x910] sm:$0xff]
        %v933 = vld [vmem:[%s202 + $0x918] sm:$0xff]
        %v934 = vld [vmem:[%s202 + $0x920] sm:$0xff]
        %v935 = vld [vmem:[%s202 + $0x928] sm:$0xff]
        %v936 = vld [vmem:[%s202 + $0x930] sm:$0xff]
        %v937 = vld [vmem:[%s202 + $0x938] sm:$0xff]
        %v938 = vld [vmem:[%s202 + $0x940] sm:$0xff]
        %v939 = vld [vmem:[%s202 + $0x948] sm:$0xff]
        %v940 = vld [vmem:[%s202 + $0x950] sm:$0xff]
        %v941 = vld [vmem:[%s202 + $0x958] sm:$0xff]
        %v942 = vld [vmem:[%s202 + $0x960] sm:$0xff]
        %v943 = vld [vmem:[%s202 + $0x968] sm:$0xff]
        %v944 = vld [vmem:[%s202 + $0x970] sm:$0xff]
        %v945 = vld [vmem:[%s202 + $0x978] sm:$0xff]
        %v946 = vld [vmem:[%s202 + $0x980] sm:$0xff]
        %v947 = vld [vmem:[%s202 + $0x988] sm:$0xff]
        %v948 = vld [vmem:[%s202 + $0x990] sm:$0xff]
        %v949 = vld [vmem:[%s202 + $0x998] sm:$0xff]
        %v950 = vld [vmem:[%s202 + $0x9a0] sm:$0xff]
        %v951 = vld [vmem:[%s202 + $0x9a8] sm:$0xff]
        %v952 = vld [vmem:[%s202 + $0x9b0] sm:$0xff]
        %v953 = vld [vmem:[%s202 + $0x9b8] sm:$0xff]
        %v954 = vld [vmem:[%s202 + $0x9c0] sm:$0xff]
        %v955 = vld [vmem:[%s202 + $0x9c8] sm:$0xff]
        %v956 = vld [vmem:[%s202 + $0x9d0] sm:$0xff]
        %v957 = vld [vmem:[%s202 + $0x9d8] sm:$0xff]
        %v958 = vld [vmem:[%s202 + $0x9e0] sm:$0xff]
        %v959 = vld [vmem:[%s202 + $0x9e8] sm:$0xff]
        %v960 = vld [vmem:[%s202 + $0x9f0] sm:$0xff]
        %v961 = vld [vmem:[%s202 + $0x9f8] sm:$0xff]
        %v962 = vld [vmem:[%s202 + $0xa00] sm:$0xff]
        %v963 = vld [vmem:[%s202 + $0xa08] sm:$0xff]
        %v964 = vld [vmem:[%s202 + $0xa10] sm:$0xff]
        %v965 = vld [vmem:[%s202 + $0xa18] sm:$0xff]
        %v966 = vld [vmem:[%s202 + $0xa20] sm:$0xff]
        %v967 = vld [vmem:[%s202 + $0xa28] sm:$0xff]
        %v968 = vld [vmem:[%s202 + $0xa30] sm:$0xff]
        %v969 = vld [vmem:[%s202 + $0xa38] sm:$0xff]
        %v970 = vld [vmem:[%s202 + $0xa40] sm:$0xff]
        %v971 = vld [vmem:[%s202 + $0xa48] sm:$0xff]
        %v972 = vld [vmem:[%s202 + $0xa50] sm:$0xff]
        %v973 = vld [vmem:[%s202 + $0xa58] sm:$0xff]
        %v974 = vld [vmem:[%s202 + $0xa60] sm:$0xff]
        %v975 = vld [vmem:[%s202 + $0xa68] sm:$0xff]
        %v976 = vld [vmem:[%s202 + $0xa70] sm:$0xff]
        %v977 = vld [vmem:[%s202 + $0xa78] sm:$0xff]
        %v978 = vld [vmem:[%s202 + $0xa80] sm:$0xff]
        %v979 = vld [vmem:[%s202 + $0xa88] sm:$0xff]
        %v980 = vld [vmem:[%s202 + $0xa90] sm:$0xff]
        %v981 = vld [vmem:[%s202 + $0xa98] sm:$0xff]
        %v982 = vld [vmem:[%s202 + $0xaa0] sm:$0xff]
        %v983 = vld [vmem:[%s202 + $0xaa8] sm:$0xff]
        %v984 = vld [vmem:[%s202 + $0xab0] sm:$0xff]
        %v985 = vld [vmem:[%s202 + $0xab8] sm:$0xff]
        %v986 = vld [vmem:[%s202 + $0xac0] sm:$0xff]
        %v987 = vld [vmem:[%s202 + $0xac8] sm:$0xff]
        %v988 = vld [vmem:[%s202 + $0xad0] sm:$0xff]
        %v989 = vld [vmem:[%s202 + $0xad8] sm:$0xff]
        %v990 = vld [vmem:[%s202 + $0xae0] sm:$0xff]
        %v991 = vld [vmem:[%s202 + $0xae8] sm:$0xff]
        %v992 = vld [vmem:[%s202 + $0xaf0] sm:$0xff]
        %v993 = vld [vmem:[%s202 + $0xaf8] sm:$0xff]
        %v994 = vld [vmem:[%s202 + $0xb00] sm:$0xff]
        %v995 = vld [vmem:[%s202 + $0xb08] sm:$0xff]
        %v996 = vld [vmem:[%s202 + $0xb10] sm:$0xff]
        %v997 = vld [vmem:[%s202 + $0xb18] sm:$0xff]
        %v998 = vld [vmem:[%s202 + $0xb20] sm:$0xff]
        %v999 = vld [vmem:[%s202 + $0xb28] sm:$0xff]
        %v1000 = vld [vmem:[%s202 + $0xb30] sm:$0xff]
        %v1001 = vld [vmem:[%s202 + $0xb38] sm:$0xff]
        %v1002 = vld [vmem:[%s202 + $0xb40] sm:$0xff]
        %v1003 = vld [vmem:[%s202 + $0xb48] sm:$0xff]
        %v1004 = vld [vmem:[%s202 + $0xb50] sm:$0xff]
        %v1005 = vld [vmem:[%s202 + $0xb58] sm:$0xff]
        %v1006 = vld [vmem:[%s202 + $0xb60] sm:$0xff]
        %v1007 = vld [vmem:[%s202 + $0xb68] sm:$0xff]
        %v1008 = vld [vmem:[%s202 + $0xb70] sm:$0xff]
        %v1009 = vld [vmem:[%s202 + $0xb78] sm:$0xff]
        %v1010 = vld [vmem:[%s202 + $0xb80] sm:$0xff]
        %v1011 = vld [vmem:[%s202 + $0xb88] sm:$0xff]
        %v1012 = vld [vmem:[%s202 + $0xb90] sm:$0xff]
        %v1013 = vld [vmem:[%s202 + $0xb98] sm:$0xff]
        %v1014 = vld [vmem:[%s202 + $0xba0] sm:$0xff]
        %v1015 = vld [vmem:[%s202 + $0xba8] sm:$0xff]
        %v1016 = vld [vmem:[%s202 + $0xbb0] sm:$0xff]
        %v1017 = vld [vmem:[%s202 + $0xbb8] sm:$0xff]
        %v1018 = vld [vmem:[%s202 + $0xbc0] sm:$0xff]
        %v1019 = vld [vmem:[%s202 + $0xbc8] sm:$0xff]
        %v1020 = vld [vmem:[%s202 + $0xbd0] sm:$0xff]
        %v1021 = vld [vmem:[%s202 + $0xbd8] sm:$0xff]
        %v1022 = vld [vmem:[%s202 + $0xbe0] sm:$0xff]
        %v1023 = vld [vmem:[%s202 + $0xbe8] sm:$0xff]
        %v1024 = vld [vmem:[%s202 + $0xbf0] sm:$0xff]
        %v1025 = vld [vmem:[%s202 + $0xbf8] sm:$0xff]
        %v1026 = vld [vmem:[%s202 + $0xc00] sm:$0xff]
        %v1027 = vld [vmem:[%s202 + $0xc08] sm:$0xff]
        %v1028 = vld [vmem:[%s202 + $0xc10] sm:$0xff]
        %v1029 = vld [vmem:[%s202 + $0xc18] sm:$0xff]
        %v1030 = vld [vmem:[%s202 + $0xc20] sm:$0xff]
        %v1031 = vld [vmem:[%s202 + $0xc28] sm:$0xff]
        %v1032 = vld [vmem:[%s202 + $0xc30] sm:$0xff]
        %v1033 = vld [vmem:[%s202 + $0xc38] sm:$0xff]
        %v1034 = vld [vmem:[%s202 + $0xc40] sm:$0xff]
        %v1035 = vld [vmem:[%s202 + $0xc48] sm:$0xff]
        %v1036 = vld [vmem:[%s202 + $0xc50] sm:$0xff]
        %v1037 = vld [vmem:[%s202 + $0xc58] sm:$0xff]
        %v1038 = vld [vmem:[%s202 + $0xc60] sm:$0xff]
        %v1039 = vld [vmem:[%s202 + $0xc68] sm:$0xff]
        %v1040 = vld [vmem:[%s202 + $0xc70] sm:$0xff]
        %v1041 = vld [vmem:[%s202 + $0xc78] sm:$0xff]
        %v1042 = vld [vmem:[%s202 + $0xc80] sm:$0xff]
        %v1043 = vld [vmem:[%s202 + $0xc88] sm:$0xff]
        %v1044 = vld [vmem:[%s202 + $0xc90] sm:$0xff]
        %v1045 = vld [vmem:[%s202 + $0xc98] sm:$0xff]
        %v1046 = vld [vmem:[%s202 + $0xca0] sm:$0xff]
        %v1047 = vld [vmem:[%s202 + $0xca8] sm:$0xff]
        %v1048 = vld [vmem:[%s202 + $0xcb0] sm:$0xff]
        %v1049 = vld [vmem:[%s202 + $0xcb8] sm:$0xff]
        %v1050 = vld [vmem:[%s202 + $0xcc0] sm:$0xff]
        %v1051 = vld [vmem:[%s202 + $0xcc8] sm:$0xff]
        %v1052 = vld [vmem:[%s202 + $0xcd0] sm:$0xff]
        %v1053 = vld [vmem:[%s202 + $0xcd8] sm:$0xff]
        %v1054 = vld [vmem:[%s202 + $0xce0] sm:$0xff]
        %v1055 = vld [vmem:[%s202 + $0xce8] sm:$0xff]
        %v1056 = vld [vmem:[%s202 + $0xcf0] sm:$0xff]
        %v1057 = vld [vmem:[%s202 + $0xcf8] sm:$0xff]
        %v1058 = vld [vmem:[%s202 + $0xd00] sm:$0xff]
        %v1059 = vld [vmem:[%s202 + $0xd08] sm:$0xff]
        %v1060 = vld [vmem:[%s202 + $0xd10] sm:$0xff]
        %v1061 = vld [vmem:[%s202 + $0xd18] sm:$0xff]
        %v1062 = vld [vmem:[%s202 + $0xd20] sm:$0xff]
        %v1063 = vld [vmem:[%s202 + $0xd28] sm:$0xff]
        %v1064 = vld [vmem:[%s202 + $0xd30] sm:$0xff]
        %v1065 = vld [vmem:[%s202 + $0xd38] sm:$0xff]
        %v1066 = vld [vmem:[%s202 + $0xd40] sm:$0xff]
        %v1067 = vld [vmem:[%s202 + $0xd48] sm:$0xff]
        %v1068 = vld [vmem:[%s202 + $0xd50] sm:$0xff]
        %v1069 = vld [vmem:[%s202 + $0xd58] sm:$0xff]
        %v1070 = vld [vmem:[%s202 + $0xd60] sm:$0xff]
        %v1071 = vld [vmem:[%s202 + $0xd68] sm:$0xff]
        %v1072 = vld [vmem:[%s202 + $0xd70] sm:$0xff]
        %v1073 = vld [vmem:[%s202 + $0xd78] sm:$0xff]
        %v1074 = vld [vmem:[%s202 + $0xd80] sm:$0xff]
        %v1075 = vld [vmem:[%s202 + $0xd88] sm:$0xff]
        %v1076 = vld [vmem:[%s202 + $0xd90] sm:$0xff]
        %v1077 = vld [vmem:[%s202 + $0xd98] sm:$0xff]
        %v1078 = vld [vmem:[%s202 + $0xda0] sm:$0xff]
        %v1079 = vld [vmem:[%s202 + $0xda8] sm:$0xff]
        %v1080 = vld [vmem:[%s202 + $0xdb0] sm:$0xff]
        %v1081 = vld [vmem:[%s202 + $0xdb8] sm:$0xff]
        %v1082 = vld [vmem:[%s202 + $0xdc0] sm:$0xff]
        %v1083 = vld [vmem:[%s202 + $0xdc8] sm:$0xff]
        %v1084 = vld [vmem:[%s202 + $0xdd0] sm:$0xff]
        %v1085 = vld [vmem:[%s202 + $0xdd8] sm:$0xff]
        %v1086 = vld [vmem:[%s202 + $0xde0] sm:$0xff]
        %v1087 = vld [vmem:[%s202 + $0xde8] sm:$0xff]
        %v1088 = vld [vmem:[%s202 + $0xdf0] sm:$0xff]
        %v1089 = vld [vmem:[%s202 + $0xdf8] sm:$0xff]
        %v1090 = vld [vmem:[%s202 + $0xe00] sm:$0xff]
        %v1091 = vld [vmem:[%s202 + $0xe08] sm:$0xff]
        %v1092 = vld [vmem:[%s202 + $0xe10] sm:$0xff]
        %v1093 = vld [vmem:[%s202 + $0xe18] sm:$0xff]
        %v1094 = vld [vmem:[%s202 + $0xe20] sm:$0xff]
        %v1095 = vld [vmem:[%s202 + $0xe28] sm:$0xff]
        %v1096 = vld [vmem:[%s202 + $0xe30] sm:$0xff]
        %v1097 = vld [vmem:[%s202 + $0xe38] sm:$0xff]
        %v1098 = vld [vmem:[%s202 + $0xe40] sm:$0xff]
        %v1099 = vld [vmem:[%s202 + $0xe48] sm:$0xff]
        %v1100 = vld [vmem:[%s202 + $0xe50] sm:$0xff]
        %v1101 = vld [vmem:[%s202 + $0xe58] sm:$0xff]
        %v1102 = vld [vmem:[%s202 + $0xe60] sm:$0xff]
        %v1103 = vld [vmem:[%s202 + $0xe68] sm:$0xff]
        %v1104 = vld [vmem:[%s202 + $0xe70] sm:$0xff]
        %v1105 = vld [vmem:[%s202 + $0xe78] sm:$0xff]
        %v1106 = vld [vmem:[%s202 + $0xe80] sm:$0xff]
        %v1107 = vld [vmem:[%s202 + $0xe88] sm:$0xff]
        %v1108 = vld [vmem:[%s202 + $0xe90] sm:$0xff]
        %v1109 = vld [vmem:[%s202 + $0xe98] sm:$0xff]
        %v1110 = vld [vmem:[%s202 + $0xea0] sm:$0xff]
        %v1111 = vld [vmem:[%s202 + $0xea8] sm:$0xff]
        %v1112 = vld [vmem:[%s202 + $0xeb0] sm:$0xff]
        %v1113 = vld [vmem:[%s202 + $0xeb8] sm:$0xff]
        %v1114 = vld [vmem:[%s202 + $0xec0] sm:$0xff]
        %v1115 = vld [vmem:[%s202 + $0xec8] sm:$0xff]
        %v1116 = vld [vmem:[%s202 + $0xed0] sm:$0xff]
        %v1117 = vld [vmem:[%s202 + $0xed8] sm:$0xff]
        %v1118 = vld [vmem:[%s202 + $0xee0] sm:$0xff]
        %v1119 = vld [vmem:[%s202 + $0xee8] sm:$0xff]
        %v1120 = vld [vmem:[%s202 + $0xef0] sm:$0xff]
        %v1121 = vld [vmem:[%s202 + $0xef8] sm:$0xff]
        %v1122 = vld [vmem:[%s202 + $0xf00] sm:$0xff]
        %v1123 = vld [vmem:[%s202 + $0xf08] sm:$0xff]
        %v1124 = vld [vmem:[%s202 + $0xf10] sm:$0xff]
        %v1125 = vld [vmem:[%s202 + $0xf18] sm:$0xff]
        %v1126 = vld [vmem:[%s202 + $0xf20] sm:$0xff]
        %v1127 = vld [vmem:[%s202 + $0xf28] sm:$0xff]
        %v1128 = vld [vmem:[%s202 + $0xf30] sm:$0xff]
        %v1129 = vld [vmem:[%s202 + $0xf38] sm:$0xff]
        %v1130 = vld [vmem:[%s202 + $0xf40] sm:$0xff]
        %v1131 = vld [vmem:[%s202 + $0xf48] sm:$0xff]
        %v1132 = vld [vmem:[%s202 + $0xf50] sm:$0xff]
        %v1133 = vld [vmem:[%s202 + $0xf58] sm:$0xff]
        %v1134 = vld [vmem:[%s202 + $0xf60] sm:$0xff]
        %v1135 = vld [vmem:[%s202 + $0xf68] sm:$0xff]
        %v1136 = vld [vmem:[%s202 + $0xf70] sm:$0xff]
        %v1137 = vld [vmem:[%s202 + $0xf78] sm:$0xff]
        %v1138 = vld [vmem:[%s202 + $0xf80] sm:$0xff]
        %v1139 = vld [vmem:[%s202 + $0xf88] sm:$0xff]
        %v1140 = vld [vmem:[%s202 + $0xf90] sm:$0xff]
        %v1141 = vld [vmem:[%s202 + $0xf98] sm:$0xff]
        %v1142 = vld [vmem:[%s202 + $0xfa0] sm:$0xff]
        %v1143 = vld [vmem:[%s202 + $0xfa8] sm:$0xff]
        %v1144 = vld [vmem:[%s202 + $0xfb0] sm:$0xff]
        %v1145 = vld [vmem:[%s202 + $0xfb8] sm:$0xff]
        %v1146 = vld [vmem:[%s202 + $0xfc0] sm:$0xff]
        %v1147 = vld [vmem:[%s202 + $0xfc8] sm:$0xff]
        %v1148 = vld [vmem:[%s202 + $0xfd0] sm:$0xff]
        %v1149 = vld [vmem:[%s202 + $0xfd8] sm:$0xff]
        %v1150 = vld [vmem:[%s202 + $0xfe0] sm:$0xff]
        %v1151 = vld [vmem:[%s202 + $0xfe8] sm:$0xff]
        %v1152 = vld [vmem:[%s202 + $0xff0] sm:$0xff]
        %v1153 = vld [vmem:[%s202 + $0xff8] sm:$0xff]
        %v1154 = vld [vmem:[%s211] sm:$0x3]
        %v1156 = vlaneseq
        %v1157 = vshrl.u32 %v1156, 7
        %v1158 = vsub.s32 0, %v1157
        %v1159 = vrot.slane %v1154, %v1158
        %v1160 = vlaneseq
        %v1161 = vshrl.u32 %v1160, 7
        %v1162 = vsub.s32 1, %v1161
        %v1163 = vrot.slane %v1154, %v1162
        %1166 = vmatprep.subr.mxu0 %v643
        %1167 = vmatpush1.msra.mxu0 %v642
        %1168 = vmatprep.subr.mxu0 %v645
        %1169 = vmatpush1.msra.mxu0 %v644
        %1170 = vmatprep.subr.mxu0 %v647
        %1171 = vmatpush1.msra.mxu0 %v646
        %1172 = vmatprep.subr.mxu0 %v649
        %1173 = vmatpush1.msra.mxu0 %v648
        %1174 = vmatprep.subr.mxu0 %v651
        %1175 = vmatpush1.msra.mxu0 %v650
        %1176 = vmatprep.subr.mxu0 %v653
        %1177 = vmatpush1.msra.mxu0 %v652
        %1178 = vmatprep.subr.mxu0 %v655
        %1179 = vmatpush1.msra.mxu0 %v654
        %1180 = vmatprep.subr.mxu0 %v657
        %1181 = vmatpush1.msra.mxu0 %v656
        %1182 = vmatprep.subr.mxu0 %v659
        %1183 = vmatpush1.msra.mxu0 %v658
        %1184 = vmatprep.subr.mxu0 %v661
        %1185 = vmatpush1.msra.mxu0 %v660
        %1186 = vmatprep.subr.mxu0 %v663
        %1187 = vmatpush1.msra.mxu0 %v662
        %1188 = vmatprep.subr.mxu0 %v665
        %1189 = vmatpush1.msra.mxu0 %v664
        %1190 = vmatprep.subr.mxu0 %v667
        %1191 = vmatpush1.msra.mxu0 %v666
        %1192 = vmatprep.subr.mxu0 %v669
        %1193 = vmatpush1.msra.mxu0 %v668
        %1194 = vmatprep.subr.mxu0 %v671
        %1195 = vmatpush1.msra.mxu0 %v670
        %1196 = vmatprep.subr.mxu0 %v673
        %1197 = vmatpush1.msra.mxu0 %v672
        %1198 = vmatprep.subr.mxu0 %v675
        %1199 = vmatpush1.msra.mxu0 %v674
        %1200 = vmatprep.subr.mxu0 %v677
        %1201 = vmatpush1.msra.mxu0 %v676
        %1202 = vmatprep.subr.mxu0 %v679
        %1203 = vmatpush1.msra.mxu0 %v678
        %1204 = vmatprep.subr.mxu0 %v681
        %1205 = vmatpush1.msra.mxu0 %v680
        %1206 = vmatprep.subr.mxu0 %v683
        %1207 = vmatpush1.msra.mxu0 %v682
        %1208 = vmatprep.subr.mxu0 %v685
        %1209 = vmatpush1.msra.mxu0 %v684
        %1210 = vmatprep.subr.mxu0 %v687
        %1211 = vmatpush1.msra.mxu0 %v686
        %1212 = vmatprep.subr.mxu0 %v689
        %1213 = vmatpush1.msra.mxu0 %v688
        %1214 = vmatprep.subr.mxu0 %v691
        %1215 = vmatpush1.msra.mxu0 %v690
        %1216 = vmatprep.subr.mxu0 %v693
        %1217 = vmatpush1.msra.mxu0 %v692
        %1218 = vmatprep.subr.mxu0 %v695
        %1219 = vmatpush1.msra.mxu0 %v694
        %1220 = vmatprep.subr.mxu0 %v697
        %1221 = vmatpush1.msra.mxu0 %v696
        %1222 = vmatprep.subr.mxu0 %v699
        %1223 = vmatpush1.msra.mxu0 %v698
        %1224 = vmatprep.subr.mxu0 %v701
        %1225 = vmatpush1.msra.mxu0 %v700
        %1226 = vmatprep.subr.mxu0 %v703
        %1227 = vmatpush1.msra.mxu0 %v702
        %1228 = vmatprep.subr.mxu0 %v705
        %1229 = vmatpush1.msra.mxu0 %v704
        %1230 = vmatprep.mubr.f32.mxu0 %v243
        %1231 = vmatmul.mubr.f32.gmra.mrb[0].mxu0 %v242
        %v1232 = vpop.f32.mrb[0].mxu0
        %v1233 = vadd.f32 %v1159, %v1232
        %v1234 = vpop.f32.mrb[0].mxu0
        %v1235 = vadd.f32 %v1163, %v1234
        %1236 = vmatprep.mubr.f32.mxu0 %v259
        %1237 = vmatmul.mubr.f32.gmra.mrb[0].mxu0 %v258
        %v1238 = vpop.f32.mrb[0].mxu0
        %v1239 = vadd.f32 %v1159, %v1238
        %v1240 = vpop.f32.mrb[0].mxu0
        %v1241 = vadd.f32 %v1163, %v1240
        %1242 = vmatprep.mubr.f32.mxu0 %v275
        %1243 = vmatmul.mubr.f32.gmra.mrb[0].mxu0 %v274
        %v1244 = vpop.f32.mrb[0].mxu0
        %v1245 = vadd.f32 %v1159, %v1244
        %v1246 = vpop.f32.mrb[0].mxu0
        %v1247 = vadd.f32 %v1163, %v1246
        %1248 = vmatprep.mubr.f32.mxu0 %v291
        %1249 = vmatmul.mubr.f32.gmra.mrb[0].mxu0 %v290
        %v1250 = vpop.f32.mrb[0].mxu0
        %v1251 = vadd.f32 %v1159, %v1250
        %v1252 = vpop.f32.mrb[0].mxu0
        %v1253 = vadd.f32 %v1163, %v1252
        %1254 = vmatprep.mubr.f32.mxu0 %v307
        %1255 = vmatmul.mubr.f32.gmra.mrb[0].mxu0 %v306
        %v1256 = vpop.f32.mrb[0].mxu0
        %v1257 = vadd.f32 %v1159, %v1256
        %v1258 = vpop.f32.mrb[0].mxu0
        %v1259 = vadd.f32 %v1163, %v1258
        %1260 = vmatprep.mubr.f32.mxu0 %v323
        %1261 = vmatmul.mubr.f32.gmra.mrb[0].mxu0 %v322
        %v1262 = vpop.f32.mrb[0].mxu0
        %v1263 = vadd.f32 %v1159, %v1262
        %v1264 = vpop.f32.mrb[0].mxu0
        %v1265 = vadd.f32 %v1163, %v1264
        %1266 = vmatprep.mubr.f32.mxu0 %v339
        %1267 = vmatmul.mubr.f32.gmra.mrb[0].mxu0 %v338
        %v1268 = vpop.f32.mrb[0].mxu0
        %v1269 = vadd.f32 %v1159, %v1268
        %v1270 = vpop.f32.mrb[0].mxu0
        %v1271 = vadd.f32 %v1163, %v1270
        %1272 = vmatprep.mubr.f32.mxu0 %v355
        %1273 = vmatmul.mubr.f32.gmra.mrb[0].mxu0 %v354
        %v1274 = vpop.f32.mrb[0].mxu0
        %v1275 = vadd.f32 %v1159, %v1274
        %v1276 = vpop.f32.mrb[0].mxu0
        %v1277 = vadd.f32 %v1163, %v1276
        %1278 = vmatprep.mubr.f32.mxu0 %v371
        %1279 = vmatmul.mubr.f32.gmra.mrb[0].mxu0 %v370
        %v1280 = vpop.f32.mrb[0].mxu0
        %v1281 = vadd.f32 %v1159, %v1280
        %v1282 = vpop.f32.mrb[0].mxu0
        %v1283 = vadd.f32 %v1163, %v1282
        %1284 = vmatprep.mubr.f32.mxu0 %v387
        %1285 = vmatmul.mubr.f32.gmra.mrb[0].mxu0 %v386
        %v1286 = vpop.f32.mrb[0].mxu0
        %v1287 = vadd.f32 %v1159, %v1286
        %v1288 = vpop.f32.mrb[0].mxu0
        %v1289 = vadd.f32 %v1163, %v1288
        %1290 = vmatprep.mubr.f32.mxu0 %v403
        %1291 = vmatmul.mubr.f32.gmra.mrb[0].mxu0 %v402
        %v1292 = vpop.f32.mrb[0].mxu0
        %v1293 = vadd.f32 %v1159, %v1292
        %v1294 = vpop.f32.mrb[0].mxu0
        %v1295 = vadd.f32 %v1163, %v1294
        %1296 = vmatprep.mubr.f32.mxu0 %v419
        %1297 = vmatmul.mubr.f32.gmra.mrb[0].mxu0 %v418
        %v1298 = vpop.f32.mrb[0].mxu0
        %v1299 = vadd.f32 %v1159, %v1298
        %v1300 = vpop.f32.mrb[0].mxu0
        %v1301 = vadd.f32 %v1163, %v1300
        %1302 = vmatprep.mubr.f32.mxu0 %v435
        %1303 = vmatmul.mubr.f32.gmra.mrb[0].mxu0 %v434
        %v1304 = vpop.f32.mrb[0].mxu0
        %v1305 = vadd.f32 %v1159, %v1304
        %v1306 = vpop.f32.mrb[0].mxu0
        %v1307 = vadd.f32 %v1163, %v1306
        %1308 = vmatprep.mubr.f32.mxu0 %v451
        %1309 = vmatmul.mubr.f32.gmra.mrb[0].mxu0 %v450
        %v1310 = vpop.f32.mrb[0].mxu0
        %v1311 = vadd.f32 %v1159, %v1310
        %v1312 = vpop.f32.mrb[0].mxu0
        %v1313 = vadd.f32 %v1163, %v1312
        %1314 = vmatprep.mubr.f32.mxu0 %v467
        %1315 = vmatmul.mubr.f32.gmra.mrb[0].mxu0 %v466
        %v1316 = vpop.f32.mrb[0].mxu0
        %v1317 = vadd.f32 %v1159, %v1316
        %v1318 = vpop.f32.mrb[0].mxu0
        %v1319 = vadd.f32 %v1163, %v1318
        %1320 = vmatprep.mubr.f32.mxu0 %v483
        %1321 = vmatmul.mubr.f32.gmra.mrb[0].mxu0 %v482
        %v1322 = vpop.f32.mrb[0].mxu0
        %v1323 = vadd.f32 %v1159, %v1322
        %v1324 = vpop.f32.mrb[0].mxu0
        %v1325 = vadd.f32 %v1163, %v1324
        %1326 = vmatprep.mubr.f32.mxu0 %v499
        %1327 = vmatmul.mubr.f32.gmra.mrb[0].mxu0 %v498
        %v1328 = vpop.f32.mrb[0].mxu0
        %v1329 = vadd.f32 %v1159, %v1328
        %v1330 = vpop.f32.mrb[0].mxu0
        %v1331 = vadd.f32 %v1163, %v1330
        %1332 = vmatprep.mubr.f32.mxu0 %v515
        %1333 = vmatmul.mubr.f32.gmra.mrb[0].mxu0 %v514
        %v1334 = vpop.f32.mrb[0].mxu0
        %v1335 = vadd.f32 %v1159, %v1334
        %v1336 = vpop.f32.mrb[0].mxu0
        %v1337 = vadd.f32 %v1163, %v1336
        %1338 = vmatprep.mubr.f32.mxu0 %v531
        %1339 = vmatmul.mubr.f32.gmra.mrb[0].mxu0 %v530
        %v1340 = vpop.f32.mrb[0].mxu0
        %v1341 = vadd.f32 %v1159, %v1340
        %v1342 = vpop.f32.mrb[0].mxu0
        %v1343 = vadd.f32 %v1163, %v1342
        %1344 = vmatprep.mubr.f32.mxu0 %v547
        %1345 = vmatmul.mubr.f32.gmra.mrb[0].mxu0 %v546
        %v1346 = vpop.f32.mrb[0].mxu0
        %v1347 = vadd.f32 %v1159, %v1346
        %v1348 = vpop.f32.mrb[0].mxu0
        %v1349 = vadd.f32 %v1163, %v1348
        %1350 = vmatprep.mubr.f32.mxu0 %v563
        %1351 = vmatmul.mubr.f32.gmra.mrb[0].mxu0 %v562
        %v1352 = vpop.f32.mrb[0].mxu0
        %v1353 = vadd.f32 %v1159, %v1352
        %v1354 = vpop.f32.mrb[0].mxu0
        %v1355 = vadd.f32 %v1163, %v1354
        %1356 = vmatprep.mubr.f32.mxu0 %v579
        %1357 = vmatmul.mubr.f32.gmra.mrb[0].mxu0 %v578
        %v1358 = vpop.f32.mrb[0].mxu0
        %v1359 = vadd.f32 %v1159, %v1358
        %v1360 = vpop.f32.mrb[0].mxu0
        %v1361 = vadd.f32 %v1163, %v1360
        %1362 = vmatprep.mubr.f32.mxu0 %v595
        %1363 = vmatmul.mubr.f32.gmra.mrb[0].mxu0 %v594
        %v1364 = vpop.f32.mrb[0].mxu0
        %v1365 = vadd.f32 %v1159, %v1364
        %v1366 = vpop.f32.mrb[0].mxu0
        %v1367 = vadd.f32 %v1163, %v1366
        %1368 = vmatprep.mubr.f32.mxu0 %v611
        %1369 = vmatmul.mubr.f32.gmra.mrb[0].mxu0 %v610
        %v1370 = vpop.f32.mrb[0].mxu0
        %v1371 = vadd.f32 %v1159, %v1370
        %v1372 = vpop.f32.mrb[0].mxu0
        %v1373 = vadd.f32 %v1163, %v1372
        %1374 = vmatprep.mubr.f32.mxu0 %v627
        %1375 = vmatmul.mubr.f32.gmra.mrb[0].mxu0 %v626
        %v1376 = vpop.f32.mrb[0].mxu0
        %v1377 = vadd.f32 %v1159, %v1376
        %v1378 = vpop.f32.mrb[0].mxu0
        %v1379 = vadd.f32 %v1163, %v1378
        %1380 = vdwg.mxu0
        %1381 = vmatprep.subr.mxu0 %v707
        %1382 = vmatpush1.msra.mxu0 %v706
        %1383 = vmatprep.subr.mxu0 %v709
        %1384 = vmatpush1.msra.mxu0 %v708
        %1385 = vmatprep.subr.mxu0 %v711
        %1386 = vmatpush1.msra.mxu0 %v710
        %1387 = vmatprep.subr.mxu0 %v713
        %1388 = vmatpush1.msra.mxu0 %v712
        %1389 = vmatprep.subr.mxu0 %v715
        %1390 = vmatpush1.msra.mxu0 %v714
        %1391 = vmatprep.subr.mxu0 %v717
        %1392 = vmatpush1.msra.mxu0 %v716
        %1393 = vmatprep.subr.mxu0 %v719
        %1394 = vmatpush1.msra.mxu0 %v718
        %1395 = vmatprep.subr.mxu0 %v721
        %1396 = vmatpush1.msra.mxu0 %v720
        %1397 = vmatprep.subr.mxu0 %v723
        %1398 = vmatpush1.msra.mxu0 %v722
        %1399 = vmatprep.subr.mxu0 %v725
        %1400 = vmatpush1.msra.mxu0 %v724
        %1401 = vmatprep.subr.mxu0 %v727
        %1402 = vmatpush1.msra.mxu0 %v726
        %1403 = vmatprep.subr.mxu0 %v729
        %1404 = vmatpush1.msra.mxu0 %v728
        %1405 = vmatprep.subr.mxu0 %v731
        %1406 = vmatpush1.msra.mxu0 %v730
        %1407 = vmatprep.subr.mxu0 %v733
        %1408 = vmatpush1.msra.mxu0 %v732
        %1409 = vmatprep.subr.mxu0 %v735
        %1410 = vmatpush1.msra.mxu0 %v734
        %1411 = vmatprep.subr.mxu0 %v737
        %1412 = vmatpush1.msra.mxu0 %v736
        %1413 = vmatprep.subr.mxu0 %v739
        %1414 = vmatpush1.msra.mxu0 %v738
        %1415 = vmatprep.subr.mxu0 %v741
        %1416 = vmatpush1.msra.mxu0 %v740
        %1417 = vmatprep.subr.mxu0 %v743
        %1418 = vmatpush1.msra.mxu0 %v742
        %1419 = vmatprep.subr.mxu0 %v745
        %1420 = vmatpush1.msra.mxu0 %v744
        %1421 = vmatprep.subr.mxu0 %v747
        %1422 = vmatpush1.msra.mxu0 %v746
        %1423 = vmatprep.subr.mxu0 %v749
        %1424 = vmatpush1.msra.mxu0 %v748
        %1425 = vmatprep.subr.mxu0 %v751
        %1426 = vmatpush1.msra.mxu0 %v750
        %1427 = vmatprep.subr.mxu0 %v753
        %1428 = vmatpush1.msra.mxu0 %v752
        %1429 = vmatprep.subr.mxu0 %v755
        %1430 = vmatpush1.msra.mxu0 %v754
        %1431 = vmatprep.subr.mxu0 %v757
        %1432 = vmatpush1.msra.mxu0 %v756
        %1433 = vmatprep.subr.mxu0 %v759
        %1434 = vmatpush1.msra.mxu0 %v758
        %1435 = vmatprep.subr.mxu0 %v761
        %1436 = vmatpush1.msra.mxu0 %v760
        %1437 = vmatprep.subr.mxu0 %v763
        %1438 = vmatpush1.msra.mxu0 %v762
        %1439 = vmatprep.subr.mxu0 %v765
        %1440 = vmatpush1.msra.mxu0 %v764
        %1441 = vmatprep.subr.mxu0 %v767
        %1442 = vmatpush1.msra.mxu0 %v766
        %1443 = vmatprep.subr.mxu0 %v769
        %1444 = vmatpush1.msra.mxu0 %v768
        %1445 = vmatprep.mubr.f32.mxu0 %v245
        %1446 = vmatmul.mubr.f32.gmra.mrb[0].mxu0 %v244
        %v1447 = vpop.f32.mrb[0].mxu0
        %v1448 = vadd.f32 %v1233, %v1447
        %v1449 = vpop.f32.mrb[0].mxu0
        %v1450 = vadd.f32 %v1235, %v1449
        %1451 = vmatprep.mubr.f32.mxu0 %v261
        %1452 = vmatmul.mubr.f32.gmra.mrb[0].mxu0 %v260
        %v1453 = vpop.f32.mrb[0].mxu0
        %v1454 = vadd.f32 %v1239, %v1453
        %v1455 = vpop.f32.mrb[0].mxu0
        %v1456 = vadd.f32 %v1241, %v1455
        %1457 = vmatprep.mubr.f32.mxu0 %v277
        %1458 = vmatmul.mubr.f32.gmra.mrb[0].mxu0 %v276
        %v1459 = vpop.f32.mrb[0].mxu0
        %v1460 = vadd.f32 %v1245, %v1459
        %v1461 = vpop.f32.mrb[0].mxu0
        %v1462 = vadd.f32 %v1247, %v1461
        %1463 = vmatprep.mubr.f32.mxu0 %v293
        %1464 = vmatmul.mubr.f32.gmra.mrb[0].mxu0 %v292
        %v1465 = vpop.f32.mrb[0].mxu0
        %v1466 = vadd.f32 %v1251, %v1465
        %v1467 = vpop.f32.mrb[0].mxu0
        %v1468 = vadd.f32 %v1253, %v1467
        %1469 = vmatprep.mubr.f32.mxu0 %v309
        %1470 = vmatmul.mubr.f32.gmra.mrb[0].mxu0 %v308
        %v1471 = vpop.f32.mrb[0].mxu0
        %v1472 = vadd.f32 %v1257, %v1471
        %v1473 = vpop.f32.mrb[0].mxu0
        %v1474 = vadd.f32 %v1259, %v1473
        %1475 = vmatprep.mubr.f32.mxu0 %v325
        %1476 = vmatmul.mubr.f32.gmra.mrb[0].mxu0 %v324
        %v1477 = vpop.f32.mrb[0].mxu0
        %v1478 = vadd.f32 %v1263, %v1477
        %v1479 = vpop.f32.mrb[0].mxu0
        %v1480 = vadd.f32 %v1265, %v1479
        %1481 = vmatprep.mubr.f32.mxu0 %v341
        %1482 = vmatmul.mubr.f32.gmra.mrb[0].mxu0 %v340
        %v1483 = vpop.f32.mrb[0].mxu0
        %v1484 = vadd.f32 %v1269, %v1483
        %v1485 = vpop.f32.mrb[0].mxu0
        %v1486 = vadd.f32 %v1271, %v1485
        %1487 = vmatprep.mubr.f32.mxu0 %v357
        %1488 = vmatmul.mubr.f32.gmra.mrb[0].mxu0 %v356
        %v1489 = vpop.f32.mrb[0].mxu0
        %v1490 = vadd.f32 %v1275, %v1489
        %v1491 = vpop.f32.mrb[0].mxu0
        %v1492 = vadd.f32 %v1277, %v1491
        %1493 = vmatprep.mubr.f32.mxu0 %v373
        %1494 = vmatmul.mubr.f32.gmra.mrb[0].mxu0 %v372
        %v1495 = vpop.f32.mrb[0].mxu0
        %v1496 = vadd.f32 %v1281, %v1495
        %v1497 = vpop.f32.mrb[0].mxu0
        %v1498 = vadd.f32 %v1283, %v1497
        %1499 = vmatprep.mubr.f32.mxu0 %v389
        %1500 = vmatmul.mubr.f32.gmra.mrb[0].mxu0 %v388
        %v1501 = vpop.f32.mrb[0].mxu0
        %v1502 = vadd.f32 %v1287, %v1501
        %v1503 = vpop.f32.mrb[0].mxu0
        %v1504 = vadd.f32 %v1289, %v1503
        %1505 = vmatprep.mubr.f32.mxu0 %v405
        %1506 = vmatmul.mubr.f32.gmra.mrb[0].mxu0 %v404
        %v1507 = vpop.f32.mrb[0].mxu0
        %v1508 = vadd.f32 %v1293, %v1507
        %v1509 = vpop.f32.mrb[0].mxu0
        %v1510 = vadd.f32 %v1295, %v1509
        %1511 = vmatprep.mubr.f32.mxu0 %v421
        %1512 = vmatmul.mubr.f32.gmra.mrb[0].mxu0 %v420
        %v1513 = vpop.f32.mrb[0].mxu0
        %v1514 = vadd.f32 %v1299, %v1513
        %v1515 = vpop.f32.mrb[0].mxu0
        %v1516 = vadd.f32 %v1301, %v1515
        %1517 = vmatprep.mubr.f32.mxu0 %v437
        %1518 = vmatmul.mubr.f32.gmra.mrb[0].mxu0 %v436
        %v1519 = vpop.f32.mrb[0].mxu0
        %v1520 = vadd.f32 %v1305, %v1519
        %v1521 = vpop.f32.mrb[0].mxu0
        %v1522 = vadd.f32 %v1307, %v1521
        %1523 = vmatprep.mubr.f32.mxu0 %v453
        %1524 = vmatmul.mubr.f32.gmra.mrb[0].mxu0 %v452
        %v1525 = vpop.f32.mrb[0].mxu0
        %v1526 = vadd.f32 %v1311, %v1525
        %v1527 = vpop.f32.mrb[0].mxu0
        %v1528 = vadd.f32 %v1313, %v1527
        %1529 = vmatprep.mubr.f32.mxu0 %v469
        %1530 = vmatmul.mubr.f32.gmra.mrb[0].mxu0 %v468
        %v1531 = vpop.f32.mrb[0].mxu0
        %v1532 = vadd.f32 %v1317, %v1531
        %v1533 = vpop.f32.mrb[0].mxu0
        %v1534 = vadd.f32 %v1319, %v1533
        %1535 = vmatprep.mubr.f32.mxu0 %v485
        %1536 = vmatmul.mubr.f32.gmra.mrb[0].mxu0 %v484
        %v1537 = vpop.f32.mrb[0].mxu0
        %v1538 = vadd.f32 %v1323, %v1537
        %v1539 = vpop.f32.mrb[0].mxu0
        %v1540 = vadd.f32 %v1325, %v1539
        %1541 = vmatprep.mubr.f32.mxu0 %v501
        %1542 = vmatmul.mubr.f32.gmra.mrb[0].mxu0 %v500
        %v1543 = vpop.f32.mrb[0].mxu0
        %v1544 = vadd.f32 %v1329, %v1543
        %v1545 = vpop.f32.mrb[0].mxu0
        %v1546 = vadd.f32 %v1331, %v1545
        %1547 = vmatprep.mubr.f32.mxu0 %v517
        %1548 = vmatmul.mubr.f32.gmra.mrb[0].mxu0 %v516
        %v1549 = vpop.f32.mrb[0].mxu0
        %v1550 = vadd.f32 %v1335, %v1549
        %v1551 = vpop.f32.mrb[0].mxu0
        %v1552 = vadd.f32 %v1337, %v1551
        %1553 = vmatprep.mubr.f32.mxu0 %v533
        %1554 = vmatmul.mubr.f32.gmra.mrb[0].mxu0 %v532
        %v1555 = vpop.f32.mrb[0].mxu0
        %v1556 = vadd.f32 %v1341, %v1555
        %v1557 = vpop.f32.mrb[0].mxu0
        %v1558 = vadd.f32 %v1343, %v1557
        %1559 = vmatprep.mubr.f32.mxu0 %v549
        %1560 = vmatmul.mubr.f32.gmra.mrb[0].mxu0 %v548
        %v1561 = vpop.f32.mrb[0].mxu0
        %v1562 = vadd.f32 %v1347, %v1561
        %v1563 = vpop.f32.mrb[0].mxu0
        %v1564 = vadd.f32 %v1349, %v1563
        %1565 = vmatprep.mubr.f32.mxu0 %v565
        %1566 = vmatmul.mubr.f32.gmra.mrb[0].mxu0 %v564
        %v1567 = vpop.f32.mrb[0].mxu0
        %v1568 = vadd.f32 %v1353, %v1567
        %v1569 = vpop.f32.mrb[0].mxu0
        %v1570 = vadd.f32 %v1355, %v1569
        %1571 = vmatprep.mubr.f32.mxu0 %v581
        %1572 = vmatmul.mubr.f32.gmra.mrb[0].mxu0 %v580
        %v1573 = vpop.f32.mrb[0].mxu0
        %v1574 = vadd.f32 %v1359, %v1573
        %v1575 = vpop.f32.mrb[0].mxu0
        %v1576 = vadd.f32 %v1361, %v1575
        %1577 = vmatprep.mubr.f32.mxu0 %v597
        %1578 = vmatmul.mubr.f32.gmra.mrb[0].mxu0 %v596
        %v1579 = vpop.f32.mrb[0].mxu0
        %v1580 = vadd.f32 %v1365, %v1579
        %v1581 = vpop.f32.mrb[0].mxu0
        %v1582 = vadd.f32 %v1367, %v1581
        %1583 = vmatprep.mubr.f32.mxu0 %v613
        %1584 = vmatmul.mubr.f32.gmra.mrb[0].mxu0 %v612
        %v1585 = vpop.f32.mrb[0].mxu0
        %v1586 = vadd.f32 %v1371, %v1585
        %v1587 = vpop.f32.mrb[0].mxu0
        %v1588 = vadd.f32 %v1373, %v1587
        %1589 = vmatprep.mubr.f32.mxu0 %v629
        %1590 = vmatmul.mubr.f32.gmra.mrb[0].mxu0 %v628
        %v1591 = vpop.f32.mrb[0].mxu0
        %v1592 = vadd.f32 %v1377, %v1591
        %v1593 = vpop.f32.mrb[0].mxu0
        %v1594 = vadd.f32 %v1379, %v1593
        %1595 = vdwg.mxu0
        %1596 = vmatprep.subr.mxu0 %v771
        %1597 = vmatpush1.msra.mxu0 %v770
        %1598 = vmatprep.subr.mxu0 %v773
        %1599 = vmatpush1.msra.mxu0 %v772
        %1600 = vmatprep.subr.mxu0 %v775
        %1601 = vmatpush1.msra.mxu0 %v774
        %1602 = vmatprep.subr.mxu0 %v777
        %1603 = vmatpush1.msra.mxu0 %v776
        %1604 = vmatprep.subr.mxu0 %v779
        %1605 = vmatpush1.msra.mxu0 %v778
        %1606 = vmatprep.subr.mxu0 %v781
        %1607 = vmatpush1.msra.mxu0 %v780
        %1608 = vmatprep.subr.mxu0 %v783
        %1609 = vmatpush1.msra.mxu0 %v782
        %1610 = vmatprep.subr.mxu0 %v785
        %1611 = vmatpush1.msra.mxu0 %v784
        %1612 = vmatprep.subr.mxu0 %v787
        %1613 = vmatpush1.msra.mxu0 %v786
        %1614 = vmatprep.subr.mxu0 %v789
        %1615 = vmatpush1.msra.mxu0 %v788
        %1616 = vmatprep.subr.mxu0 %v791
        %1617 = vmatpush1.msra.mxu0 %v790
        %1618 = vmatprep.subr.mxu0 %v793
        %1619 = vmatpush1.msra.mxu0 %v792
        %1620 = vmatprep.subr.mxu0 %v795
        %1621 = vmatpush1.msra.mxu0 %v794
        %1622 = vmatprep.subr.mxu0 %v797
        %1623 = vmatpush1.msra.mxu0 %v796
        %1624 = vmatprep.subr.mxu0 %v799
        %1625 = vmatpush1.msra.mxu0 %v798
        %1626 = vmatprep.subr.mxu0 %v801
        %1627 = vmatpush1.msra.mxu0 %v800
        %1628 = vmatprep.subr.mxu0 %v803
        %1629 = vmatpush1.msra.mxu0 %v802
        %1630 = vmatprep.subr.mxu0 %v805
        %1631 = vmatpush1.msra.mxu0 %v804
        %1632 = vmatprep.subr.mxu0 %v807
        %1633 = vmatpush1.msra.mxu0 %v806
        %1634 = vmatprep.subr.mxu0 %v809
        %1635 = vmatpush1.msra.mxu0 %v808
        %1636 = vmatprep.subr.mxu0 %v811
        %1637 = vmatpush1.msra.mxu0 %v810
        %1638 = vmatprep.subr.mxu0 %v813
        %1639 = vmatpush1.msra.mxu0 %v812
        %1640 = vmatprep.subr.mxu0 %v815
        %1641 = vmatpush1.msra.mxu0 %v814
        %1642 = vmatprep.subr.mxu0 %v817
        %1643 = vmatpush1.msra.mxu0 %v816
        %1644 = vmatprep.subr.mxu0 %v819
        %1645 = vmatpush1.msra.mxu0 %v818
        %1646 = vmatprep.subr.mxu0 %v821
        %1647 = vmatpush1.msra.mxu0 %v820
        %1648 = vmatprep.subr.mxu0 %v823
        %1649 = vmatpush1.msra.mxu0 %v822
        %1650 = vmatprep.subr.mxu0 %v825
        %1651 = vmatpush1.msra.mxu0 %v824
        %1652 = vmatprep.subr.mxu0 %v827
        %1653 = vmatpush1.msra.mxu0 %v826
        %1654 = vmatprep.subr.mxu0 %v829
        %1655 = vmatpush1.msra.mxu0 %v828
        %1656 = vmatprep.subr.mxu0 %v831
        %1657 = vmatpush1.msra.mxu0 %v830
        %1658 = vmatprep.subr.mxu0 %v833
        %1659 = vmatpush1.msra.mxu0 %v832
        %1660 = vmatprep.mubr.f32.mxu0 %v247
        %1661 = vmatmul.mubr.f32.gmra.mrb[0].mxu0 %v246
        %v1662 = vpop.f32.mrb[0].mxu0
        %v1663 = vadd.f32 %v1448, %v1662
        %v1664 = vpop.f32.mrb[0].mxu0
        %v1665 = vadd.f32 %v1450, %v1664
        %1666 = vmatprep.mubr.f32.mxu0 %v263
        %1667 = vmatmul.mubr.f32.gmra.mrb[0].mxu0 %v262
        %v1668 = vpop.f32.mrb[0].mxu0
        %v1669 = vadd.f32 %v1454, %v1668
        %v1670 = vpop.f32.mrb[0].mxu0
        %v1671 = vadd.f32 %v1456, %v1670
        %1672 = vmatprep.mubr.f32.mxu0 %v279
        %1673 = vmatmul.mubr.f32.gmra.mrb[0].mxu0 %v278
        %v1674 = vpop.f32.mrb[0].mxu0
        %v1675 = vadd.f32 %v1460, %v1674
        %v1676 = vpop.f32.mrb[0].mxu0
        %v1677 = vadd.f32 %v1462, %v1676
        %1678 = vmatprep.mubr.f32.mxu0 %v295
        %1679 = vmatmul.mubr.f32.gmra.mrb[0].mxu0 %v294
        %v1680 = vpop.f32.mrb[0].mxu0
        %v1681 = vadd.f32 %v1466, %v1680
        %v1682 = vpop.f32.mrb[0].mxu0
        %v1683 = vadd.f32 %v1468, %v1682
        %1684 = vmatprep.mubr.f32.mxu0 %v311
        %1685 = vmatmul.mubr.f32.gmra.mrb[0].mxu0 %v310
        %v1686 = vpop.f32.mrb[0].mxu0
        %v1687 = vadd.f32 %v1472, %v1686
        %v1688 = vpop.f32.mrb[0].mxu0
        %v1689 = vadd.f32 %v1474, %v1688
        %1690 = vmatprep.mubr.f32.mxu0 %v327
        %1691 = vmatmul.mubr.f32.gmra.mrb[0].mxu0 %v326
        %v1692 = vpop.f32.mrb[0].mxu0
        %v1693 = vadd.f32 %v1478, %v1692
        %v1694 = vpop.f32.mrb[0].mxu0
        %v1695 = vadd.f32 %v1480, %v1694
        %1696 = vmatprep.mubr.f32.mxu0 %v343
        %1697 = vmatmul.mubr.f32.gmra.mrb[0].mxu0 %v342
        %v1698 = vpop.f32.mrb[0].mxu0
        %v1699 = vadd.f32 %v1484, %v1698
        %v1700 = vpop.f32.mrb[0].mxu0
        %v1701 = vadd.f32 %v1486, %v1700
        %1702 = vmatprep.mubr.f32.mxu0 %v359
        %1703 = vmatmul.mubr.f32.gmra.mrb[0].mxu0 %v358
        %v1704 = vpop.f32.mrb[0].mxu0
        %v1705 = vadd.f32 %v1490, %v1704
        %v1706 = vpop.f32.mrb[0].mxu0
        %v1707 = vadd.f32 %v1492, %v1706
        %1708 = vmatprep.mubr.f32.mxu0 %v375
        %1709 = vmatmul.mubr.f32.gmra.mrb[0].mxu0 %v374
        %v1710 = vpop.f32.mrb[0].mxu0
        %v1711 = vadd.f32 %v1496, %v1710
        %v1712 = vpop.f32.mrb[0].mxu0
        %v1713 = vadd.f32 %v1498, %v1712
        %1714 = vmatprep.mubr.f32.mxu0 %v391
        %1715 = vmatmul.mubr.f32.gmra.mrb[0].mxu0 %v390
        %v1716 = vpop.f32.mrb[0].mxu0
        %v1717 = vadd.f32 %v1502, %v1716
        %v1718 = vpop.f32.mrb[0].mxu0
        %v1719 = vadd.f32 %v1504, %v1718
        %1720 = vmatprep.mubr.f32.mxu0 %v407
        %1721 = vmatmul.mubr.f32.gmra.mrb[0].mxu0 %v406
        %v1722 = vpop.f32.mrb[0].mxu0
        %v1723 = vadd.f32 %v1508, %v1722
        %v1724 = vpop.f32.mrb[0].mxu0
        %v1725 = vadd.f32 %v1510, %v1724
        %1726 = vmatprep.mubr.f32.mxu0 %v423
        %1727 = vmatmul.mubr.f32.gmra.mrb[0].mxu0 %v422
        %v1728 = vpop.f32.mrb[0].mxu0
        %v1729 = vadd.f32 %v1514, %v1728
        %v1730 = vpop.f32.mrb[0].mxu0
        %v1731 = vadd.f32 %v1516, %v1730
        %1732 = vmatprep.mubr.f32.mxu0 %v439
        %1733 = vmatmul.mubr.f32.gmra.mrb[0].mxu0 %v438
        %v1734 = vpop.f32.mrb[0].mxu0
        %v1735 = vadd.f32 %v1520, %v1734
        %v1736 = vpop.f32.mrb[0].mxu0
        %v1737 = vadd.f32 %v1522, %v1736
        %1738 = vmatprep.mubr.f32.mxu0 %v455
        %1739 = vmatmul.mubr.f32.gmra.mrb[0].mxu0 %v454
        %v1740 = vpop.f32.mrb[0].mxu0
        %v1741 = vadd.f32 %v1526, %v1740
        %v1742 = vpop.f32.mrb[0].mxu0
        %v1743 = vadd.f32 %v1528, %v1742
        %1744 = vmatprep.mubr.f32.mxu0 %v471
        %1745 = vmatmul.mubr.f32.gmra.mrb[0].mxu0 %v470
        %v1746 = vpop.f32.mrb[0].mxu0
        %v1747 = vadd.f32 %v1532, %v1746
        %v1748 = vpop.f32.mrb[0].mxu0
        %v1749 = vadd.f32 %v1534, %v1748
        %1750 = vmatprep.mubr.f32.mxu0 %v487
        %1751 = vmatmul.mubr.f32.gmra.mrb[0].mxu0 %v486
        %v1752 = vpop.f32.mrb[0].mxu0
        %v1753 = vadd.f32 %v1538, %v1752
        %v1754 = vpop.f32.mrb[0].mxu0
        %v1755 = vadd.f32 %v1540, %v1754
        %1756 = vmatprep.mubr.f32.mxu0 %v503
        %1757 = vmatmul.mubr.f32.gmra.mrb[0].mxu0 %v502
        %v1758 = vpop.f32.mrb[0].mxu0
        %v1759 = vadd.f32 %v1544, %v1758
        %v1760 = vpop.f32.mrb[0].mxu0
        %v1761 = vadd.f32 %v1546, %v1760
        %1762 = vmatprep.mubr.f32.mxu0 %v519
        %1763 = vmatmul.mubr.f32.gmra.mrb[0].mxu0 %v518
        %v1764 = vpop.f32.mrb[0].mxu0
        %v1765 = vadd.f32 %v1550, %v1764
        %v1766 = vpop.f32.mrb[0].mxu0
        %v1767 = vadd.f32 %v1552, %v1766
        %1768 = vmatprep.mubr.f32.mxu0 %v535
        %1769 = vmatmul.mubr.f32.gmra.mrb[0].mxu0 %v534
        %v1770 = vpop.f32.mrb[0].mxu0
        %v1771 = vadd.f32 %v1556, %v1770
        %v1772 = vpop.f32.mrb[0].mxu0
        %v1773 = vadd.f32 %v1558, %v1772
        %1774 = vmatprep.mubr.f32.mxu0 %v551
        %1775 = vmatmul.mubr.f32.gmra.mrb[0].mxu0 %v550
        %v1776 = vpop.f32.mrb[0].mxu0
        %v1777 = vadd.f32 %v1562, %v1776
        %v1778 = vpop.f32.mrb[0].mxu0
        %v1779 = vadd.f32 %v1564, %v1778
        %1780 = vmatprep.mubr.f32.mxu0 %v567
        %1781 = vmatmul.mubr.f32.gmra.mrb[0].mxu0 %v566
        %v1782 = vpop.f32.mrb[0].mxu0
        %v1783 = vadd.f32 %v1568, %v1782
        %v1784 = vpop.f32.mrb[0].mxu0
        %v1785 = vadd.f32 %v1570, %v1784
        %1786 = vmatprep.mubr.f32.mxu0 %v583
        %1787 = vmatmul.mubr.f32.gmra.mrb[0].mxu0 %v582
        %v1788 = vpop.f32.mrb[0].mxu0
        %v1789 = vadd.f32 %v1574, %v1788
        %v1790 = vpop.f32.mrb[0].mxu0
        %v1791 = vadd.f32 %v1576, %v1790
        %1792 = vmatprep.mubr.f32.mxu0 %v599
        %1793 = vmatmul.mubr.f32.gmra.mrb[0].mxu0 %v598
        %v1794 = vpop.f32.mrb[0].mxu0
        %v1795 = vadd.f32 %v1580, %v1794
        %v1796 = vpop.f32.mrb[0].mxu0
        %v1797 = vadd.f32 %v1582, %v1796
        %1798 = vmatprep.mubr.f32.mxu0 %v615
        %1799 = vmatmul.mubr.f32.gmra.mrb[0].mxu0 %v614
        %v1800 = vpop.f32.mrb[0].mxu0
        %v1801 = vadd.f32 %v1586, %v1800
        %v1802 = vpop.f32.mrb[0].mxu0
        %v1803 = vadd.f32 %v1588, %v1802
        %1804 = vmatprep.mubr.f32.mxu0 %v631
        %1805 = vmatmul.mubr.f32.gmra.mrb[0].mxu0 %v630
        %v1806 = vpop.f32.mrb[0].mxu0
        %v1807 = vadd.f32 %v1592, %v1806
        %v1808 = vpop.f32.mrb[0].mxu0
        %v1809 = vadd.f32 %v1594, %v1808
        %1810 = vdwg.mxu0
        %1811 = vmatprep.subr.mxu0 %v835
        %1812 = vmatpush1.msra.mxu0 %v834
        %1813 = vmatprep.subr.mxu0 %v837
        %1814 = vmatpush1.msra.mxu0 %v836
        %1815 = vmatprep.subr.mxu0 %v839
        %1816 = vmatpush1.msra.mxu0 %v838
        %1817 = vmatprep.subr.mxu0 %v841
        %1818 = vmatpush1.msra.mxu0 %v840
        %1819 = vmatprep.subr.mxu0 %v843
        %1820 = vmatpush1.msra.mxu0 %v842
        %1821 = vmatprep.subr.mxu0 %v845
        %1822 = vmatpush1.msra.mxu0 %v844
        %1823 = vmatprep.subr.mxu0 %v847
        %1824 = vmatpush1.msra.mxu0 %v846
        %1825 = vmatprep.subr.mxu0 %v849
        %1826 = vmatpush1.msra.mxu0 %v848
        %1827 = vmatprep.subr.mxu0 %v851
        %1828 = vmatpush1.msra.mxu0 %v850
        %1829 = vmatprep.subr.mxu0 %v853
        %1830 = vmatpush1.msra.mxu0 %v852
        %1831 = vmatprep.subr.mxu0 %v855
        %1832 = vmatpush1.msra.mxu0 %v854
        %1833 = vmatprep.subr.mxu0 %v857
        %1834 = vmatpush1.msra.mxu0 %v856
        %1835 = vmatprep.subr.mxu0 %v859
        %1836 = vmatpush1.msra.mxu0 %v858
        %1837 = vmatprep.subr.mxu0 %v861
        %1838 = vmatpush1.msra.mxu0 %v860
        %1839 = vmatprep.subr.mxu0 %v863
        %1840 = vmatpush1.msra.mxu0 %v862
        %1841 = vmatprep.subr.mxu0 %v865
        %1842 = vmatpush1.msra.mxu0 %v864
        %1843 = vmatprep.subr.mxu0 %v867
        %1844 = vmatpush1.msra.mxu0 %v866
        %1845 = vmatprep.subr.mxu0 %v869
        %1846 = vmatpush1.msra.mxu0 %v868
        %1847 = vmatprep.subr.mxu0 %v871
        %1848 = vmatpush1.msra.mxu0 %v870
        %1849 = vmatprep.subr.mxu0 %v873
        %1850 = vmatpush1.msra.mxu0 %v872
        %1851 = vmatprep.subr.mxu0 %v875
        %1852 = vmatpush1.msra.mxu0 %v874
        %1853 = vmatprep.subr.mxu0 %v877
        %1854 = vmatpush1.msra.mxu0 %v876
        %1855 = vmatprep.subr.mxu0 %v879
        %1856 = vmatpush1.msra.mxu0 %v878
        %1857 = vmatprep.subr.mxu0 %v881
        %1858 = vmatpush1.msra.mxu0 %v880
        %1859 = vmatprep.subr.mxu0 %v883
        %1860 = vmatpush1.msra.mxu0 %v882
        %1861 = vmatprep.subr.mxu0 %v885
        %1862 = vmatpush1.msra.mxu0 %v884
        %1863 = vmatprep.subr.mxu0 %v887
        %1864 = vmatpush1.msra.mxu0 %v886
        %1865 = vmatprep.subr.mxu0 %v889
        %1866 = vmatpush1.msra.mxu0 %v888
        %1867 = vmatprep.subr.mxu0 %v891
        %1868 = vmatpush1.msra.mxu0 %v890
        %1869 = vmatprep.subr.mxu0 %v893
        %1870 = vmatpush1.msra.mxu0 %v892
        %1871 = vmatprep.subr.mxu0 %v895
        %1872 = vmatpush1.msra.mxu0 %v894
        %1873 = vmatprep.subr.mxu0 %v897
        %1874 = vmatpush1.msra.mxu0 %v896
        %1875 = vmatprep.mubr.f32.mxu0 %v249
        %1876 = vmatmul.mubr.f32.gmra.mrb[0].mxu0 %v248
        %v1877 = vpop.f32.mrb[0].mxu0
        %v1878 = vadd.f32 %v1663, %v1877
        %v1879 = vpop.f32.mrb[0].mxu0
        %v1880 = vadd.f32 %v1665, %v1879
        %1881 = vmatprep.mubr.f32.mxu0 %v265
        %1882 = vmatmul.mubr.f32.gmra.mrb[0].mxu0 %v264
        %v1883 = vpop.f32.mrb[0].mxu0
        %v1884 = vadd.f32 %v1669, %v1883
        %v1885 = vpop.f32.mrb[0].mxu0
        %v1886 = vadd.f32 %v1671, %v1885
        %1887 = vmatprep.mubr.f32.mxu0 %v281
        %1888 = vmatmul.mubr.f32.gmra.mrb[0].mxu0 %v280
        %v1889 = vpop.f32.mrb[0].mxu0
        %v1890 = vadd.f32 %v1675, %v1889
        %v1891 = vpop.f32.mrb[0].mxu0
        %v1892 = vadd.f32 %v1677, %v1891
        %1893 = vmatprep.mubr.f32.mxu0 %v297
        %1894 = vmatmul.mubr.f32.gmra.mrb[0].mxu0 %v296
        %v1895 = vpop.f32.mrb[0].mxu0
        %v1896 = vadd.f32 %v1681, %v1895
        %v1897 = vpop.f32.mrb[0].mxu0
        %v1898 = vadd.f32 %v1683, %v1897
        %1899 = vmatprep.mubr.f32.mxu0 %v313
        %1900 = vmatmul.mubr.f32.gmra.mrb[0].mxu0 %v312
        %v1901 = vpop.f32.mrb[0].mxu0
        %v1902 = vadd.f32 %v1687, %v1901
        %v1903 = vpop.f32.mrb[0].mxu0
        %v1904 = vadd.f32 %v1689, %v1903
        %1905 = vmatprep.mubr.f32.mxu0 %v329
        %1906 = vmatmul.mubr.f32.gmra.mrb[0].mxu0 %v328
        %v1907 = vpop.f32.mrb[0].mxu0
        %v1908 = vadd.f32 %v1693, %v1907
        %v1909 = vpop.f32.mrb[0].mxu0
        %v1910 = vadd.f32 %v1695, %v1909
        %1911 = vmatprep.mubr.f32.mxu0 %v345
        %1912 = vmatmul.mubr.f32.gmra.mrb[0].mxu0 %v344
        %v1913 = vpop.f32.mrb[0].mxu0
        %v1914 = vadd.f32 %v1699, %v1913
        %v1915 = vpop.f32.mrb[0].mxu0
        %v1916 = vadd.f32 %v1701, %v1915
        %1917 = vmatprep.mubr.f32.mxu0 %v361
        %1918 = vmatmul.mubr.f32.gmra.mrb[0].mxu0 %v360
        %v1919 = vpop.f32.mrb[0].mxu0
        %v1920 = vadd.f32 %v1705, %v1919
        %v1921 = vpop.f32.mrb[0].mxu0
        %v1922 = vadd.f32 %v1707, %v1921
        %1923 = vmatprep.mubr.f32.mxu0 %v377
        %1924 = vmatmul.mubr.f32.gmra.mrb[0].mxu0 %v376
        %v1925 = vpop.f32.mrb[0].mxu0
        %v1926 = vadd.f32 %v1711, %v1925
        %v1927 = vpop.f32.mrb[0].mxu0
        %v1928 = vadd.f32 %v1713, %v1927
        %1929 = vmatprep.mubr.f32.mxu0 %v393
        %1930 = vmatmul.mubr.f32.gmra.mrb[0].mxu0 %v392
        %v1931 = vpop.f32.mrb[0].mxu0
        %v1932 = vadd.f32 %v1717, %v1931
        %v1933 = vpop.f32.mrb[0].mxu0
        %v1934 = vadd.f32 %v1719, %v1933
        %1935 = vmatprep.mubr.f32.mxu0 %v409
        %1936 = vmatmul.mubr.f32.gmra.mrb[0].mxu0 %v408
        %v1937 = vpop.f32.mrb[0].mxu0
        %v1938 = vadd.f32 %v1723, %v1937
        %v1939 = vpop.f32.mrb[0].mxu0
        %v1940 = vadd.f32 %v1725, %v1939
        %1941 = vmatprep.mubr.f32.mxu0 %v425
        %1942 = vmatmul.mubr.f32.gmra.mrb[0].mxu0 %v424
        %v1943 = vpop.f32.mrb[0].mxu0
        %v1944 = vadd.f32 %v1729, %v1943
        %v1945 = vpop.f32.mrb[0].mxu0
        %v1946 = vadd.f32 %v1731, %v1945
        %1947 = vmatprep.mubr.f32.mxu0 %v441
        %1948 = vmatmul.mubr.f32.gmra.mrb[0].mxu0 %v440
        %v1949 = vpop.f32.mrb[0].mxu0
        %v1950 = vadd.f32 %v1735, %v1949
        %v1951 = vpop.f32.mrb[0].mxu0
        %v1952 = vadd.f32 %v1737, %v1951
        %1953 = vmatprep.mubr.f32.mxu0 %v457
        %1954 = vmatmul.mubr.f32.gmra.mrb[0].mxu0 %v456
        %v1955 = vpop.f32.mrb[0].mxu0
        %v1956 = vadd.f32 %v1741, %v1955
        %v1957 = vpop.f32.mrb[0].mxu0
        %v1958 = vadd.f32 %v1743, %v1957
        %1959 = vmatprep.mubr.f32.mxu0 %v473
        %1960 = vmatmul.mubr.f32.gmra.mrb[0].mxu0 %v472
        %v1961 = vpop.f32.mrb[0].mxu0
        %v1962 = vadd.f32 %v1747, %v1961
        %v1963 = vpop.f32.mrb[0].mxu0
        %v1964 = vadd.f32 %v1749, %v1963
        %1965 = vmatprep.mubr.f32.mxu0 %v489
        %1966 = vmatmul.mubr.f32.gmra.mrb[0].mxu0 %v488
        %v1967 = vpop.f32.mrb[0].mxu0
        %v1968 = vadd.f32 %v1753, %v1967
        %v1969 = vpop.f32.mrb[0].mxu0
        %v1970 = vadd.f32 %v1755, %v1969
        %1971 = vmatprep.mubr.f32.mxu0 %v505
        %1972 = vmatmul.mubr.f32.gmra.mrb[0].mxu0 %v504
        %v1973 = vpop.f32.mrb[0].mxu0
        %v1974 = vadd.f32 %v1759, %v1973
        %v1975 = vpop.f32.mrb[0].mxu0
        %v1976 = vadd.f32 %v1761, %v1975
        %1977 = vmatprep.mubr.f32.mxu0 %v521
        %1978 = vmatmul.mubr.f32.gmra.mrb[0].mxu0 %v520
        %v1979 = vpop.f32.mrb[0].mxu0
        %v1980 = vadd.f32 %v1765, %v1979
        %v1981 = vpop.f32.mrb[0].mxu0
        %v1982 = vadd.f32 %v1767, %v1981
        %1983 = vmatprep.mubr.f32.mxu0 %v537
        %1984 = vmatmul.mubr.f32.gmra.mrb[0].mxu0 %v536
        %v1985 = vpop.f32.mrb[0].mxu0
        %v1986 = vadd.f32 %v1771, %v1985
        %v1987 = vpop.f32.mrb[0].mxu0
        %v1988 = vadd.f32 %v1773, %v1987
        %1989 = vmatprep.mubr.f32.mxu0 %v553
        %1990 = vmatmul.mubr.f32.gmra.mrb[0].mxu0 %v552
        %v1991 = vpop.f32.mrb[0].mxu0
        %v1992 = vadd.f32 %v1777, %v1991
        %v1993 = vpop.f32.mrb[0].mxu0
        %v1994 = vadd.f32 %v1779, %v1993
        %1995 = vmatprep.mubr.f32.mxu0 %v569
        %1996 = vmatmul.mubr.f32.gmra.mrb[0].mxu0 %v568
        %v1997 = vpop.f32.mrb[0].mxu0
        %v1998 = vadd.f32 %v1783, %v1997
        %v1999 = vpop.f32.mrb[0].mxu0
        %v2000 = vadd.f32 %v1785, %v1999
        %2001 = vmatprep.mubr.f32.mxu0 %v585
        %2002 = vmatmul.mubr.f32.gmra.mrb[0].mxu0 %v584
        %v2003 = vpop.f32.mrb[0].mxu0
        %v2004 = vadd.f32 %v1789, %v2003
        %v2005 = vpop.f32.mrb[0].mxu0
        %v2006 = vadd.f32 %v1791, %v2005
        %2007 = vmatprep.mubr.f32.mxu0 %v601
        %2008 = vmatmul.mubr.f32.gmra.mrb[0].mxu0 %v600
        %v2009 = vpop.f32.mrb[0].mxu0
        %v2010 = vadd.f32 %v1795, %v2009
        %v2011 = vpop.f32.mrb[0].mxu0
        %v2012 = vadd.f32 %v1797, %v2011
        %2013 = vmatprep.mubr.f32.mxu0 %v617
        %2014 = vmatmul.mubr.f32.gmra.mrb[0].mxu0 %v616
        %v2015 = vpop.f32.mrb[0].mxu0
        %v2016 = vadd.f32 %v1801, %v2015
        %v2017 = vpop.f32.mrb[0].mxu0
        %v2018 = vadd.f32 %v1803, %v2017
        %2019 = vmatprep.mubr.f32.mxu0 %v633
        %2020 = vmatmul.mubr.f32.gmra.mrb[0].mxu0 %v632
        %v2021 = vpop.f32.mrb[0].mxu0
        %v2022 = vadd.f32 %v1807, %v2021
        %v2023 = vpop.f32.mrb[0].mxu0
        %v2024 = vadd.f32 %v1809, %v2023
        %2025 = vdwg.mxu0
        %2026 = vmatprep.subr.mxu0 %v899
        %2027 = vmatpush1.msra.mxu0 %v898
        %2028 = vmatprep.subr.mxu0 %v901
        %2029 = vmatpush1.msra.mxu0 %v900
        %2030 = vmatprep.subr.mxu0 %v903
        %2031 = vmatpush1.msra.mxu0 %v902
        %2032 = vmatprep.subr.mxu0 %v905
        %2033 = vmatpush1.msra.mxu0 %v904
        %2034 = vmatprep.subr.mxu0 %v907
        %2035 = vmatpush1.msra.mxu0 %v906
        %2036 = vmatprep.subr.mxu0 %v909
        %2037 = vmatpush1.msra.mxu0 %v908
        %2038 = vmatprep.subr.mxu0 %v911
        %2039 = vmatpush1.msra.mxu0 %v910
        %2040 = vmatprep.subr.mxu0 %v913
        %2041 = vmatpush1.msra.mxu0 %v912
        %2042 = vmatprep.subr.mxu0 %v915
        %2043 = vmatpush1.msra.mxu0 %v914
        %2044 = vmatprep.subr.mxu0 %v917
        %2045 = vmatpush1.msra.mxu0 %v916
        %2046 = vmatprep.subr.mxu0 %v919
        %2047 = vmatpush1.msra.mxu0 %v918
        %2048 = vmatprep.subr.mxu0 %v921
        %2049 = vmatpush1.msra.mxu0 %v920
        %2050 = vmatprep.subr.mxu0 %v923
        %2051 = vmatpush1.msra.mxu0 %v922
        %2052 = vmatprep.subr.mxu0 %v925
        %2053 = vmatpush1.msra.mxu0 %v924
        %2054 = vmatprep.subr.mxu0 %v927
        %2055 = vmatpush1.msra.mxu0 %v926
        %2056 = vmatprep.subr.mxu0 %v929
        %2057 = vmatpush1.msra.mxu0 %v928
        %2058 = vmatprep.subr.mxu0 %v931
        %2059 = vmatpush1.msra.mxu0 %v930
        %2060 = vmatprep.subr.mxu0 %v933
        %2061 = vmatpush1.msra.mxu0 %v932
        %2062 = vmatprep.subr.mxu0 %v935
        %2063 = vmatpush1.msra.mxu0 %v934
        %2064 = vmatprep.subr.mxu0 %v937
        %2065 = vmatpush1.msra.mxu0 %v936
        %2066 = vmatprep.subr.mxu0 %v939
        %2067 = vmatpush1.msra.mxu0 %v938
        %2068 = vmatprep.subr.mxu0 %v941
        %2069 = vmatpush1.msra.mxu0 %v940
        %2070 = vmatprep.subr.mxu0 %v943
        %2071 = vmatpush1.msra.mxu0 %v942
        %2072 = vmatprep.subr.mxu0 %v945
        %2073 = vmatpush1.msra.mxu0 %v944
        %2074 = vmatprep.subr.mxu0 %v947
        %2075 = vmatpush1.msra.mxu0 %v946
        %2076 = vmatprep.subr.mxu0 %v949
        %2077 = vmatpush1.msra.mxu0 %v948
        %2078 = vmatprep.subr.mxu0 %v951
        %2079 = vmatpush1.msra.mxu0 %v950
        %2080 = vmatprep.subr.mxu0 %v953
        %2081 = vmatpush1.msra.mxu0 %v952
        %2082 = vmatprep.subr.mxu0 %v955
        %2083 = vmatpush1.msra.mxu0 %v954
        %2084 = vmatprep.subr.mxu0 %v957
        %2085 = vmatpush1.msra.mxu0 %v956
        %2086 = vmatprep.subr.mxu0 %v959
        %2087 = vmatpush1.msra.mxu0 %v958
        %2088 = vmatprep.subr.mxu0 %v961
        %2089 = vmatpush1.msra.mxu0 %v960
        %2090 = vmatprep.mubr.f32.mxu0 %v251
        %2091 = vmatmul.mubr.f32.gmra.mrb[0].mxu0 %v250
        %v2092 = vpop.f32.mrb[0].mxu0
        %v2093 = vadd.f32 %v1878, %v2092
        %v2094 = vpop.f32.mrb[0].mxu0
        %v2095 = vadd.f32 %v1880, %v2094
        %2096 = vmatprep.mubr.f32.mxu0 %v267
        %2097 = vmatmul.mubr.f32.gmra.mrb[0].mxu0 %v266
        %v2098 = vpop.f32.mrb[0].mxu0
        %v2099 = vadd.f32 %v1884, %v2098
        %v2100 = vpop.f32.mrb[0].mxu0
        %v2101 = vadd.f32 %v1886, %v2100
        %2102 = vmatprep.mubr.f32.mxu0 %v283
        %2103 = vmatmul.mubr.f32.gmra.mrb[0].mxu0 %v282
        %v2104 = vpop.f32.mrb[0].mxu0
        %v2105 = vadd.f32 %v1890, %v2104
        %v2106 = vpop.f32.mrb[0].mxu0
        %v2107 = vadd.f32 %v1892, %v2106
        %2108 = vmatprep.mubr.f32.mxu0 %v299
        %2109 = vmatmul.mubr.f32.gmra.mrb[0].mxu0 %v298
        %v2110 = vpop.f32.mrb[0].mxu0
        %v2111 = vadd.f32 %v1896, %v2110
        %v2112 = vpop.f32.mrb[0].mxu0
        %v2113 = vadd.f32 %v1898, %v2112
        %2114 = vmatprep.mubr.f32.mxu0 %v315
        %2115 = vmatmul.mubr.f32.gmra.mrb[0].mxu0 %v314
        %v2116 = vpop.f32.mrb[0].mxu0
        %v2117 = vadd.f32 %v1902, %v2116
        %v2118 = vpop.f32.mrb[0].mxu0
        %v2119 = vadd.f32 %v1904, %v2118
        %2120 = vmatprep.mubr.f32.mxu0 %v331
        %2121 = vmatmul.mubr.f32.gmra.mrb[0].mxu0 %v330
        %v2122 = vpop.f32.mrb[0].mxu0
        %v2123 = vadd.f32 %v1908, %v2122
        %v2124 = vpop.f32.mrb[0].mxu0
        %v2125 = vadd.f32 %v1910, %v2124
        %2126 = vmatprep.mubr.f32.mxu0 %v347
        %2127 = vmatmul.mubr.f32.gmra.mrb[0].mxu0 %v346
        %v2128 = vpop.f32.mrb[0].mxu0
        %v2129 = vadd.f32 %v1914, %v2128
        %v2130 = vpop.f32.mrb[0].mxu0
        %v2131 = vadd.f32 %v1916, %v2130
        %2132 = vmatprep.mubr.f32.mxu0 %v363
        %2133 = vmatmul.mubr.f32.gmra.mrb[0].mxu0 %v362
        %v2134 = vpop.f32.mrb[0].mxu0
        %v2135 = vadd.f32 %v1920, %v2134
        %v2136 = vpop.f32.mrb[0].mxu0
        %v2137 = vadd.f32 %v1922, %v2136
        %2138 = vmatprep.mubr.f32.mxu0 %v379
        %2139 = vmatmul.mubr.f32.gmra.mrb[0].mxu0 %v378
        %v2140 = vpop.f32.mrb[0].mxu0
        %v2141 = vadd.f32 %v1926, %v2140
        %v2142 = vpop.f32.mrb[0].mxu0
        %v2143 = vadd.f32 %v1928, %v2142
        %2144 = vmatprep.mubr.f32.mxu0 %v395
        %2145 = vmatmul.mubr.f32.gmra.mrb[0].mxu0 %v394
        %v2146 = vpop.f32.mrb[0].mxu0
        %v2147 = vadd.f32 %v1932, %v2146
        %v2148 = vpop.f32.mrb[0].mxu0
        %v2149 = vadd.f32 %v1934, %v2148
        %2150 = vmatprep.mubr.f32.mxu0 %v411
        %2151 = vmatmul.mubr.f32.gmra.mrb[0].mxu0 %v410
        %v2152 = vpop.f32.mrb[0].mxu0
        %v2153 = vadd.f32 %v1938, %v2152
        %v2154 = vpop.f32.mrb[0].mxu0
        %v2155 = vadd.f32 %v1940, %v2154
        %2156 = vmatprep.mubr.f32.mxu0 %v427
        %2157 = vmatmul.mubr.f32.gmra.mrb[0].mxu0 %v426
        %v2158 = vpop.f32.mrb[0].mxu0
        %v2159 = vadd.f32 %v1944, %v2158
        %v2160 = vpop.f32.mrb[0].mxu0
        %v2161 = vadd.f32 %v1946, %v2160
        %2162 = vmatprep.mubr.f32.mxu0 %v443
        %2163 = vmatmul.mubr.f32.gmra.mrb[0].mxu0 %v442
        %v2164 = vpop.f32.mrb[0].mxu0
        %v2165 = vadd.f32 %v1950, %v2164
        %v2166 = vpop.f32.mrb[0].mxu0
        %v2167 = vadd.f32 %v1952, %v2166
        %2168 = vmatprep.mubr.f32.mxu0 %v459
        %2169 = vmatmul.mubr.f32.gmra.mrb[0].mxu0 %v458
        %v2170 = vpop.f32.mrb[0].mxu0
        %v2171 = vadd.f32 %v1956, %v2170
        %v2172 = vpop.f32.mrb[0].mxu0
        %v2173 = vadd.f32 %v1958, %v2172
        %2174 = vmatprep.mubr.f32.mxu0 %v475
        %2175 = vmatmul.mubr.f32.gmra.mrb[0].mxu0 %v474
        %v2176 = vpop.f32.mrb[0].mxu0
        %v2177 = vadd.f32 %v1962, %v2176
        %v2178 = vpop.f32.mrb[0].mxu0
        %v2179 = vadd.f32 %v1964, %v2178
        %2180 = vmatprep.mubr.f32.mxu0 %v491
        %2181 = vmatmul.mubr.f32.gmra.mrb[0].mxu0 %v490
        %v2182 = vpop.f32.mrb[0].mxu0
        %v2183 = vadd.f32 %v1968, %v2182
        %v2184 = vpop.f32.mrb[0].mxu0
        %v2185 = vadd.f32 %v1970, %v2184
        %2186 = vmatprep.mubr.f32.mxu0 %v507
        %2187 = vmatmul.mubr.f32.gmra.mrb[0].mxu0 %v506
        %v2188 = vpop.f32.mrb[0].mxu0
        %v2189 = vadd.f32 %v1974, %v2188
        %v2190 = vpop.f32.mrb[0].mxu0
        %v2191 = vadd.f32 %v1976, %v2190
        %2192 = vmatprep.mubr.f32.mxu0 %v523
        %2193 = vmatmul.mubr.f32.gmra.mrb[0].mxu0 %v522
        %v2194 = vpop.f32.mrb[0].mxu0
        %v2195 = vadd.f32 %v1980, %v2194
        %v2196 = vpop.f32.mrb[0].mxu0
        %v2197 = vadd.f32 %v1982, %v2196
        %2198 = vmatprep.mubr.f32.mxu0 %v539
        %2199 = vmatmul.mubr.f32.gmra.mrb[0].mxu0 %v538
        %v2200 = vpop.f32.mrb[0].mxu0
        %v2201 = vadd.f32 %v1986, %v2200
        %v2202 = vpop.f32.mrb[0].mxu0
        %v2203 = vadd.f32 %v1988, %v2202
        %2204 = vmatprep.mubr.f32.mxu0 %v555
        %2205 = vmatmul.mubr.f32.gmra.mrb[0].mxu0 %v554
        %v2206 = vpop.f32.mrb[0].mxu0
        %v2207 = vadd.f32 %v1992, %v2206
        %v2208 = vpop.f32.mrb[0].mxu0
        %v2209 = vadd.f32 %v1994, %v2208
        %2210 = vmatprep.mubr.f32.mxu0 %v571
        %2211 = vmatmul.mubr.f32.gmra.mrb[0].mxu0 %v570
        %v2212 = vpop.f32.mrb[0].mxu0
        %v2213 = vadd.f32 %v1998, %v2212
        %v2214 = vpop.f32.mrb[0].mxu0
        %v2215 = vadd.f32 %v2000, %v2214
        %2216 = vmatprep.mubr.f32.mxu0 %v587
        %2217 = vmatmul.mubr.f32.gmra.mrb[0].mxu0 %v586
        %v2218 = vpop.f32.mrb[0].mxu0
        %v2219 = vadd.f32 %v2004, %v2218
        %v2220 = vpop.f32.mrb[0].mxu0
        %v2221 = vadd.f32 %v2006, %v2220
        %2222 = vmatprep.mubr.f32.mxu0 %v603
        %2223 = vmatmul.mubr.f32.gmra.mrb[0].mxu0 %v602
        %v2224 = vpop.f32.mrb[0].mxu0
        %v2225 = vadd.f32 %v2010, %v2224
        %v2226 = vpop.f32.mrb[0].mxu0
        %v2227 = vadd.f32 %v2012, %v2226
        %2228 = vmatprep.mubr.f32.mxu0 %v619
        %2229 = vmatmul.mubr.f32.gmra.mrb[0].mxu0 %v618
        %v2230 = vpop.f32.mrb[0].mxu0
        %v2231 = vadd.f32 %v2016, %v2230
        %v2232 = vpop.f32.mrb[0].mxu0
        %v2233 = vadd.f32 %v2018, %v2232
        %2234 = vmatprep.mubr.f32.mxu0 %v635
        %2235 = vmatmul.mubr.f32.gmra.mrb[0].mxu0 %v634
        %v2236 = vpop.f32.mrb[0].mxu0
        %v2237 = vadd.f32 %v2022, %v2236
        %v2238 = vpop.f32.mrb[0].mxu0
        %v2239 = vadd.f32 %v2024, %v2238
        %2240 = vdwg.mxu0
        %2241 = vmatprep.subr.mxu0 %v963
        %2242 = vmatpush1.msra.mxu0 %v962
        %2243 = vmatprep.subr.mxu0 %v965
        %2244 = vmatpush1.msra.mxu0 %v964
        %2245 = vmatprep.subr.mxu0 %v967
        %2246 = vmatpush1.msra.mxu0 %v966
        %2247 = vmatprep.subr.mxu0 %v969
        %2248 = vmatpush1.msra.mxu0 %v968
        %2249 = vmatprep.subr.mxu0 %v971
        %2250 = vmatpush1.msra.mxu0 %v970
        %2251 = vmatprep.subr.mxu0 %v973
        %2252 = vmatpush1.msra.mxu0 %v972
        %2253 = vmatprep.subr.mxu0 %v975
        %2254 = vmatpush1.msra.mxu0 %v974
        %2255 = vmatprep.subr.mxu0 %v977
        %2256 = vmatpush1.msra.mxu0 %v976
        %2257 = vmatprep.subr.mxu0 %v979
        %2258 = vmatpush1.msra.mxu0 %v978
        %2259 = vmatprep.subr.mxu0 %v981
        %2260 = vmatpush1.msra.mxu0 %v980
        %2261 = vmatprep.subr.mxu0 %v983
        %2262 = vmatpush1.msra.mxu0 %v982
        %2263 = vmatprep.subr.mxu0 %v985
        %2264 = vmatpush1.msra.mxu0 %v984
        %2265 = vmatprep.subr.mxu0 %v987
        %2266 = vmatpush1.msra.mxu0 %v986
        %2267 = vmatprep.subr.mxu0 %v989
        %2268 = vmatpush1.msra.mxu0 %v988
        %2269 = vmatprep.subr.mxu0 %v991
        %2270 = vmatpush1.msra.mxu0 %v990
        %2271 = vmatprep.subr.mxu0 %v993
        %2272 = vmatpush1.msra.mxu0 %v992
        %2273 = vmatprep.subr.mxu0 %v995
        %2274 = vmatpush1.msra.mxu0 %v994
        %2275 = vmatprep.subr.mxu0 %v997
        %2276 = vmatpush1.msra.mxu0 %v996
        %2277 = vmatprep.subr.mxu0 %v999
        %2278 = vmatpush1.msra.mxu0 %v998
        %2279 = vmatprep.subr.mxu0 %v1001
        %2280 = vmatpush1.msra.mxu0 %v1000
        %2281 = vmatprep.subr.mxu0 %v1003
        %2282 = vmatpush1.msra.mxu0 %v1002
        %2283 = vmatprep.subr.mxu0 %v1005
        %2284 = vmatpush1.msra.mxu0 %v1004
        %2285 = vmatprep.subr.mxu0 %v1007
        %2286 = vmatpush1.msra.mxu0 %v1006
        %2287 = vmatprep.subr.mxu0 %v1009
        %2288 = vmatpush1.msra.mxu0 %v1008
        %2289 = vmatprep.subr.mxu0 %v1011
        %2290 = vmatpush1.msra.mxu0 %v1010
        %2291 = vmatprep.subr.mxu0 %v1013
        %2292 = vmatpush1.msra.mxu0 %v1012
        %2293 = vmatprep.subr.mxu0 %v1015
        %2294 = vmatpush1.msra.mxu0 %v1014
        %2295 = vmatprep.subr.mxu0 %v1017
        %2296 = vmatpush1.msra.mxu0 %v1016
        %2297 = vmatprep.subr.mxu0 %v1019
        %2298 = vmatpush1.msra.mxu0 %v1018
        %2299 = vmatprep.subr.mxu0 %v1021
        %2300 = vmatpush1.msra.mxu0 %v1020
        %2301 = vmatprep.subr.mxu0 %v1023
        %2302 = vmatpush1.msra.mxu0 %v1022
        %2303 = vmatprep.subr.mxu0 %v1025
        %2304 = vmatpush1.msra.mxu0 %v1024
        %2305 = vmatprep.mubr.f32.mxu0 %v253
        %2306 = vmatmul.mubr.f32.gmra.mrb[0].mxu0 %v252
        %v2307 = vpop.f32.mrb[0].mxu0
        %v2308 = vadd.f32 %v2093, %v2307
        %v2309 = vpop.f32.mrb[0].mxu0
        %v2310 = vadd.f32 %v2095, %v2309
        %2311 = vmatprep.mubr.f32.mxu0 %v269
        %2312 = vmatmul.mubr.f32.gmra.mrb[0].mxu0 %v268
        %v2313 = vpop.f32.mrb[0].mxu0
        %v2314 = vadd.f32 %v2099, %v2313
        %v2315 = vpop.f32.mrb[0].mxu0
        %v2316 = vadd.f32 %v2101, %v2315
        %2317 = vmatprep.mubr.f32.mxu0 %v285
        %2318 = vmatmul.mubr.f32.gmra.mrb[0].mxu0 %v284
        %v2319 = vpop.f32.mrb[0].mxu0
        %v2320 = vadd.f32 %v2105, %v2319
        %v2321 = vpop.f32.mrb[0].mxu0
        %v2322 = vadd.f32 %v2107, %v2321
        %2323 = vmatprep.mubr.f32.mxu0 %v301
        %2324 = vmatmul.mubr.f32.gmra.mrb[0].mxu0 %v300
        %v2325 = vpop.f32.mrb[0].mxu0
        %v2326 = vadd.f32 %v2111, %v2325
        %v2327 = vpop.f32.mrb[0].mxu0
        %v2328 = vadd.f32 %v2113, %v2327
        %2329 = vmatprep.mubr.f32.mxu0 %v317
        %2330 = vmatmul.mubr.f32.gmra.mrb[0].mxu0 %v316
        %v2331 = vpop.f32.mrb[0].mxu0
        %v2332 = vadd.f32 %v2117, %v2331
        %v2333 = vpop.f32.mrb[0].mxu0
        %v2334 = vadd.f32 %v2119, %v2333
        %2335 = vmatprep.mubr.f32.mxu0 %v333
        %2336 = vmatmul.mubr.f32.gmra.mrb[0].mxu0 %v332
        %v2337 = vpop.f32.mrb[0].mxu0
        %v2338 = vadd.f32 %v2123, %v2337
        %v2339 = vpop.f32.mrb[0].mxu0
        %v2340 = vadd.f32 %v2125, %v2339
        %2341 = vmatprep.mubr.f32.mxu0 %v349
        %2342 = vmatmul.mubr.f32.gmra.mrb[0].mxu0 %v348
        %v2343 = vpop.f32.mrb[0].mxu0
        %v2344 = vadd.f32 %v2129, %v2343
        %v2345 = vpop.f32.mrb[0].mxu0
        %v2346 = vadd.f32 %v2131, %v2345
        %2347 = vmatprep.mubr.f32.mxu0 %v365
        %2348 = vmatmul.mubr.f32.gmra.mrb[0].mxu0 %v364
        %v2349 = vpop.f32.mrb[0].mxu0
        %v2350 = vadd.f32 %v2135, %v2349
        %v2351 = vpop.f32.mrb[0].mxu0
        %v2352 = vadd.f32 %v2137, %v2351
        %2353 = vmatprep.mubr.f32.mxu0 %v381
        %2354 = vmatmul.mubr.f32.gmra.mrb[0].mxu0 %v380
        %v2355 = vpop.f32.mrb[0].mxu0
        %v2356 = vadd.f32 %v2141, %v2355
        %v2357 = vpop.f32.mrb[0].mxu0
        %v2358 = vadd.f32 %v2143, %v2357
        %2359 = vmatprep.mubr.f32.mxu0 %v397
        %2360 = vmatmul.mubr.f32.gmra.mrb[0].mxu0 %v396
        %v2361 = vpop.f32.mrb[0].mxu0
        %v2362 = vadd.f32 %v2147, %v2361
        %v2363 = vpop.f32.mrb[0].mxu0
        %v2364 = vadd.f32 %v2149, %v2363
        %2365 = vmatprep.mubr.f32.mxu0 %v413
        %2366 = vmatmul.mubr.f32.gmra.mrb[0].mxu0 %v412
        %v2367 = vpop.f32.mrb[0].mxu0
        %v2368 = vadd.f32 %v2153, %v2367
        %v2369 = vpop.f32.mrb[0].mxu0
        %v2370 = vadd.f32 %v2155, %v2369
        %2371 = vmatprep.mubr.f32.mxu0 %v429
        %2372 = vmatmul.mubr.f32.gmra.mrb[0].mxu0 %v428
        %v2373 = vpop.f32.mrb[0].mxu0
        %v2374 = vadd.f32 %v2159, %v2373
        %v2375 = vpop.f32.mrb[0].mxu0
        %v2376 = vadd.f32 %v2161, %v2375
        %2377 = vmatprep.mubr.f32.mxu0 %v445
        %2378 = vmatmul.mubr.f32.gmra.mrb[0].mxu0 %v444
        %v2379 = vpop.f32.mrb[0].mxu0
        %v2380 = vadd.f32 %v2165, %v2379
        %v2381 = vpop.f32.mrb[0].mxu0
        %v2382 = vadd.f32 %v2167, %v2381
        %2383 = vmatprep.mubr.f32.mxu0 %v461
        %2384 = vmatmul.mubr.f32.gmra.mrb[0].mxu0 %v460
        %v2385 = vpop.f32.mrb[0].mxu0
        %v2386 = vadd.f32 %v2171, %v2385
        %v2387 = vpop.f32.mrb[0].mxu0
        %v2388 = vadd.f32 %v2173, %v2387
        %2389 = vmatprep.mubr.f32.mxu0 %v477
        %2390 = vmatmul.mubr.f32.gmra.mrb[0].mxu0 %v476
        %v2391 = vpop.f32.mrb[0].mxu0
        %v2392 = vadd.f32 %v2177, %v2391
        %v2393 = vpop.f32.mrb[0].mxu0
        %v2394 = vadd.f32 %v2179, %v2393
        %2395 = vmatprep.mubr.f32.mxu0 %v493
        %2396 = vmatmul.mubr.f32.gmra.mrb[0].mxu0 %v492
        %v2397 = vpop.f32.mrb[0].mxu0
        %v2398 = vadd.f32 %v2183, %v2397
        %v2399 = vpop.f32.mrb[0].mxu0
        %v2400 = vadd.f32 %v2185, %v2399
        %2401 = vmatprep.mubr.f32.mxu0 %v509
        %2402 = vmatmul.mubr.f32.gmra.mrb[0].mxu0 %v508
        %v2403 = vpop.f32.mrb[0].mxu0
        %v2404 = vadd.f32 %v2189, %v2403
        %v2405 = vpop.f32.mrb[0].mxu0
        %v2406 = vadd.f32 %v2191, %v2405
        %2407 = vmatprep.mubr.f32.mxu0 %v525
        %2408 = vmatmul.mubr.f32.gmra.mrb[0].mxu0 %v524
        %v2409 = vpop.f32.mrb[0].mxu0
        %v2410 = vadd.f32 %v2195, %v2409
        %v2411 = vpop.f32.mrb[0].mxu0
        %v2412 = vadd.f32 %v2197, %v2411
        %2413 = vmatprep.mubr.f32.mxu0 %v541
        %2414 = vmatmul.mubr.f32.gmra.mrb[0].mxu0 %v540
        %v2415 = vpop.f32.mrb[0].mxu0
        %v2416 = vadd.f32 %v2201, %v2415
        %v2417 = vpop.f32.mrb[0].mxu0
        %v2418 = vadd.f32 %v2203, %v2417
        %2419 = vmatprep.mubr.f32.mxu0 %v557
        %2420 = vmatmul.mubr.f32.gmra.mrb[0].mxu0 %v556
        %v2421 = vpop.f32.mrb[0].mxu0
        %v2422 = vadd.f32 %v2207, %v2421
        %v2423 = vpop.f32.mrb[0].mxu0
        %v2424 = vadd.f32 %v2209, %v2423
        %2425 = vmatprep.mubr.f32.mxu0 %v573
        %2426 = vmatmul.mubr.f32.gmra.mrb[0].mxu0 %v572
        %v2427 = vpop.f32.mrb[0].mxu0
        %v2428 = vadd.f32 %v2213, %v2427
        %v2429 = vpop.f32.mrb[0].mxu0
        %v2430 = vadd.f32 %v2215, %v2429
        %2431 = vmatprep.mubr.f32.mxu0 %v589
        %2432 = vmatmul.mubr.f32.gmra.mrb[0].mxu0 %v588
        %v2433 = vpop.f32.mrb[0].mxu0
        %v2434 = vadd.f32 %v2219, %v2433
        %v2435 = vpop.f32.mrb[0].mxu0
        %v2436 = vadd.f32 %v2221, %v2435
        %2437 = vmatprep.mubr.f32.mxu0 %v605
        %2438 = vmatmul.mubr.f32.gmra.mrb[0].mxu0 %v604
        %v2439 = vpop.f32.mrb[0].mxu0
        %v2440 = vadd.f32 %v2225, %v2439
        %v2441 = vpop.f32.mrb[0].mxu0
        %v2442 = vadd.f32 %v2227, %v2441
        %2443 = vmatprep.mubr.f32.mxu0 %v621
        %2444 = vmatmul.mubr.f32.gmra.mrb[0].mxu0 %v620
        %v2445 = vpop.f32.mrb[0].mxu0
        %v2446 = vadd.f32 %v2231, %v2445
        %v2447 = vpop.f32.mrb[0].mxu0
        %v2448 = vadd.f32 %v2233, %v2447
        %2449 = vmatprep.mubr.f32.mxu0 %v637
        %2450 = vmatmul.mubr.f32.gmra.mrb[0].mxu0 %v636
        %v2451 = vpop.f32.mrb[0].mxu0
        %v2452 = vadd.f32 %v2237, %v2451
        %v2453 = vpop.f32.mrb[0].mxu0
        %v2454 = vadd.f32 %v2239, %v2453
        %2455 = vdwg.mxu0
        %2456 = vmatprep.subr.mxu0 %v1027
        %2457 = vmatpush1.msra.mxu0 %v1026
        %2458 = vmatprep.subr.mxu0 %v1029
        %2459 = vmatpush1.msra.mxu0 %v1028
        %2460 = vmatprep.subr.mxu0 %v1031
        %2461 = vmatpush1.msra.mxu0 %v1030
        %2462 = vmatprep.subr.mxu0 %v1033
        %2463 = vmatpush1.msra.mxu0 %v1032
        %2464 = vmatprep.subr.mxu0 %v1035
        %2465 = vmatpush1.msra.mxu0 %v1034
        %2466 = vmatprep.subr.mxu0 %v1037
        %2467 = vmatpush1.msra.mxu0 %v1036
        %2468 = vmatprep.subr.mxu0 %v1039
        %2469 = vmatpush1.msra.mxu0 %v1038
        %2470 = vmatprep.subr.mxu0 %v1041
        %2471 = vmatpush1.msra.mxu0 %v1040
        %2472 = vmatprep.subr.mxu0 %v1043
        %2473 = vmatpush1.msra.mxu0 %v1042
        %2474 = vmatprep.subr.mxu0 %v1045
        %2475 = vmatpush1.msra.mxu0 %v1044
        %2476 = vmatprep.subr.mxu0 %v1047
        %2477 = vmatpush1.msra.mxu0 %v1046
        %2478 = vmatprep.subr.mxu0 %v1049
        %2479 = vmatpush1.msra.mxu0 %v1048
        %2480 = vmatprep.subr.mxu0 %v1051
        %2481 = vmatpush1.msra.mxu0 %v1050
        %2482 = vmatprep.subr.mxu0 %v1053
        %2483 = vmatpush1.msra.mxu0 %v1052
        %2484 = vmatprep.subr.mxu0 %v1055
        %2485 = vmatpush1.msra.mxu0 %v1054
        %2486 = vmatprep.subr.mxu0 %v1057
        %2487 = vmatpush1.msra.mxu0 %v1056
        %2488 = vmatprep.subr.mxu0 %v1059
        %2489 = vmatpush1.msra.mxu0 %v1058
        %2490 = vmatprep.subr.mxu0 %v1061
        %2491 = vmatpush1.msra.mxu0 %v1060
        %2492 = vmatprep.subr.mxu0 %v1063
        %2493 = vmatpush1.msra.mxu0 %v1062
        %2494 = vmatprep.subr.mxu0 %v1065
        %2495 = vmatpush1.msra.mxu0 %v1064
        %2496 = vmatprep.subr.mxu0 %v1067
        %2497 = vmatpush1.msra.mxu0 %v1066
        %2498 = vmatprep.subr.mxu0 %v1069
        %2499 = vmatpush1.msra.mxu0 %v1068
        %2500 = vmatprep.subr.mxu0 %v1071
        %2501 = vmatpush1.msra.mxu0 %v1070
        %2502 = vmatprep.subr.mxu0 %v1073
        %2503 = vmatpush1.msra.mxu0 %v1072
        %2504 = vmatprep.subr.mxu0 %v1075
        %2505 = vmatpush1.msra.mxu0 %v1074
        %2506 = vmatprep.subr.mxu0 %v1077
        %2507 = vmatpush1.msra.mxu0 %v1076
        %2508 = vmatprep.subr.mxu0 %v1079
        %2509 = vmatpush1.msra.mxu0 %v1078
        %2510 = vmatprep.subr.mxu0 %v1081
        %2511 = vmatpush1.msra.mxu0 %v1080
        %2512 = vmatprep.subr.mxu0 %v1083
        %2513 = vmatpush1.msra.mxu0 %v1082
        %2514 = vmatprep.subr.mxu0 %v1085
        %2515 = vmatpush1.msra.mxu0 %v1084
        %2516 = vmatprep.subr.mxu0 %v1087
        %2517 = vmatpush1.msra.mxu0 %v1086
        %2518 = vmatprep.subr.mxu0 %v1089
        %2519 = vmatpush1.msra.mxu0 %v1088
        %2520 = vmatprep.mubr.f32.mxu0 %v255
        %2521 = vmatmul.mubr.f32.gmra.mrb[0].mxu0 %v254
        %v2522 = vpop.f32.mrb[0].mxu0
        %v2523 = vadd.f32 %v2308, %v2522
        %v2524 = vpop.f32.mrb[0].mxu0
        %v2525 = vadd.f32 %v2310, %v2524
        %2526 = vmatprep.mubr.f32.mxu0 %v271
        %2527 = vmatmul.mubr.f32.gmra.mrb[0].mxu0 %v270
        %v2528 = vpop.f32.mrb[0].mxu0
        %v2529 = vadd.f32 %v2314, %v2528
        %v2530 = vpop.f32.mrb[0].mxu0
        %v2531 = vadd.f32 %v2316, %v2530
        %2532 = vmatprep.mubr.f32.mxu0 %v287
        %2533 = vmatmul.mubr.f32.gmra.mrb[0].mxu0 %v286
        %v2534 = vpop.f32.mrb[0].mxu0
        %v2535 = vadd.f32 %v2320, %v2534
        %v2536 = vpop.f32.mrb[0].mxu0
        %v2537 = vadd.f32 %v2322, %v2536
        %2538 = vmatprep.mubr.f32.mxu0 %v303
        %2539 = vmatmul.mubr.f32.gmra.mrb[0].mxu0 %v302
        %v2540 = vpop.f32.mrb[0].mxu0
        %v2541 = vadd.f32 %v2326, %v2540
        %v2542 = vpop.f32.mrb[0].mxu0
        %v2543 = vadd.f32 %v2328, %v2542
        %2544 = vmatprep.mubr.f32.mxu0 %v319
        %2545 = vmatmul.mubr.f32.gmra.mrb[0].mxu0 %v318
        %v2546 = vpop.f32.mrb[0].mxu0
        %v2547 = vadd.f32 %v2332, %v2546
        %v2548 = vpop.f32.mrb[0].mxu0
        %v2549 = vadd.f32 %v2334, %v2548
        %2550 = vmatprep.mubr.f32.mxu0 %v335
        %2551 = vmatmul.mubr.f32.gmra.mrb[0].mxu0 %v334
        %v2552 = vpop.f32.mrb[0].mxu0
        %v2553 = vadd.f32 %v2338, %v2552
        %v2554 = vpop.f32.mrb[0].mxu0
        %v2555 = vadd.f32 %v2340, %v2554
        %2556 = vmatprep.mubr.f32.mxu0 %v351
        %2557 = vmatmul.mubr.f32.gmra.mrb[0].mxu0 %v350
        %v2558 = vpop.f32.mrb[0].mxu0
        %v2559 = vadd.f32 %v2344, %v2558
        %v2560 = vpop.f32.mrb[0].mxu0
        %v2561 = vadd.f32 %v2346, %v2560
        %2562 = vmatprep.mubr.f32.mxu0 %v367
        %2563 = vmatmul.mubr.f32.gmra.mrb[0].mxu0 %v366
        %v2564 = vpop.f32.mrb[0].mxu0
        %v2565 = vadd.f32 %v2350, %v2564
        %v2566 = vpop.f32.mrb[0].mxu0
        %v2567 = vadd.f32 %v2352, %v2566
        %2568 = vmatprep.mubr.f32.mxu0 %v383
        %2569 = vmatmul.mubr.f32.gmra.mrb[0].mxu0 %v382
        %v2570 = vpop.f32.mrb[0].mxu0
        %v2571 = vadd.f32 %v2356, %v2570
        %v2572 = vpop.f32.mrb[0].mxu0
        %v2573 = vadd.f32 %v2358, %v2572
        %2574 = vmatprep.mubr.f32.mxu0 %v399
        %2575 = vmatmul.mubr.f32.gmra.mrb[0].mxu0 %v398
        %v2576 = vpop.f32.mrb[0].mxu0
        %v2577 = vadd.f32 %v2362, %v2576
        %v2578 = vpop.f32.mrb[0].mxu0
        %v2579 = vadd.f32 %v2364, %v2578
        %2580 = vmatprep.mubr.f32.mxu0 %v415
        %2581 = vmatmul.mubr.f32.gmra.mrb[0].mxu0 %v414
        %v2582 = vpop.f32.mrb[0].mxu0
        %v2583 = vadd.f32 %v2368, %v2582
        %v2584 = vpop.f32.mrb[0].mxu0
        %v2585 = vadd.f32 %v2370, %v2584
        %2586 = vmatprep.mubr.f32.mxu0 %v431
        %2587 = vmatmul.mubr.f32.gmra.mrb[0].mxu0 %v430
        %v2588 = vpop.f32.mrb[0].mxu0
        %v2589 = vadd.f32 %v2374, %v2588
        %v2590 = vpop.f32.mrb[0].mxu0
        %v2591 = vadd.f32 %v2376, %v2590
        %2592 = vmatprep.mubr.f32.mxu0 %v447
        %2593 = vmatmul.mubr.f32.gmra.mrb[0].mxu0 %v446
        %v2594 = vpop.f32.mrb[0].mxu0
        %v2595 = vadd.f32 %v2380, %v2594
        %v2596 = vpop.f32.mrb[0].mxu0
        %v2597 = vadd.f32 %v2382, %v2596
        %2598 = vmatprep.mubr.f32.mxu0 %v463
        %2599 = vmatmul.mubr.f32.gmra.mrb[0].mxu0 %v462
        %v2600 = vpop.f32.mrb[0].mxu0
        %v2601 = vadd.f32 %v2386, %v2600
        %v2602 = vpop.f32.mrb[0].mxu0
        %v2603 = vadd.f32 %v2388, %v2602
        %2604 = vmatprep.mubr.f32.mxu0 %v479
        %2605 = vmatmul.mubr.f32.gmra.mrb[0].mxu0 %v478
        %v2606 = vpop.f32.mrb[0].mxu0
        %v2607 = vadd.f32 %v2392, %v2606
        %v2608 = vpop.f32.mrb[0].mxu0
        %v2609 = vadd.f32 %v2394, %v2608
        %2610 = vmatprep.mubr.f32.mxu0 %v495
        %2611 = vmatmul.mubr.f32.gmra.mrb[0].mxu0 %v494
        %v2612 = vpop.f32.mrb[0].mxu0
        %v2613 = vadd.f32 %v2398, %v2612
        %v2614 = vpop.f32.mrb[0].mxu0
        %v2615 = vadd.f32 %v2400, %v2614
        %2616 = vmatprep.mubr.f32.mxu0 %v511
        %2617 = vmatmul.mubr.f32.gmra.mrb[0].mxu0 %v510
        %v2618 = vpop.f32.mrb[0].mxu0
        %v2619 = vadd.f32 %v2404, %v2618
        %v2620 = vpop.f32.mrb[0].mxu0
        %v2621 = vadd.f32 %v2406, %v2620
        %2622 = vmatprep.mubr.f32.mxu0 %v527
        %2623 = vmatmul.mubr.f32.gmra.mrb[0].mxu0 %v526
        %v2624 = vpop.f32.mrb[0].mxu0
        %v2625 = vadd.f32 %v2410, %v2624
        %v2626 = vpop.f32.mrb[0].mxu0
        %v2627 = vadd.f32 %v2412, %v2626
        %2628 = vmatprep.mubr.f32.mxu0 %v543
        %2629 = vmatmul.mubr.f32.gmra.mrb[0].mxu0 %v542
        %v2630 = vpop.f32.mrb[0].mxu0
        %v2631 = vadd.f32 %v2416, %v2630
        %v2632 = vpop.f32.mrb[0].mxu0
        %v2633 = vadd.f32 %v2418, %v2632
        %2634 = vmatprep.mubr.f32.mxu0 %v559
        %2635 = vmatmul.mubr.f32.gmra.mrb[0].mxu0 %v558
        %v2636 = vpop.f32.mrb[0].mxu0
        %v2637 = vadd.f32 %v2422, %v2636
        %v2638 = vpop.f32.mrb[0].mxu0
        %v2639 = vadd.f32 %v2424, %v2638
        %2640 = vmatprep.mubr.f32.mxu0 %v575
        %2641 = vmatmul.mubr.f32.gmra.mrb[0].mxu0 %v574
        %v2642 = vpop.f32.mrb[0].mxu0
        %v2643 = vadd.f32 %v2428, %v2642
        %v2644 = vpop.f32.mrb[0].mxu0
        %v2645 = vadd.f32 %v2430, %v2644
        %2646 = vmatprep.mubr.f32.mxu0 %v591
        %2647 = vmatmul.mubr.f32.gmra.mrb[0].mxu0 %v590
        %v2648 = vpop.f32.mrb[0].mxu0
        %v2649 = vadd.f32 %v2434, %v2648
        %v2650 = vpop.f32.mrb[0].mxu0
        %v2651 = vadd.f32 %v2436, %v2650
        %2652 = vmatprep.mubr.f32.mxu0 %v607
        %2653 = vmatmul.mubr.f32.gmra.mrb[0].mxu0 %v606
        %v2654 = vpop.f32.mrb[0].mxu0
        %v2655 = vadd.f32 %v2440, %v2654
        %v2656 = vpop.f32.mrb[0].mxu0
        %v2657 = vadd.f32 %v2442, %v2656
        %2658 = vmatprep.mubr.f32.mxu0 %v623
        %2659 = vmatmul.mubr.f32.gmra.mrb[0].mxu0 %v622
        %v2660 = vpop.f32.mrb[0].mxu0
        %v2661 = vadd.f32 %v2446, %v2660
        %v2662 = vpop.f32.mrb[0].mxu0
        %v2663 = vadd.f32 %v2448, %v2662
        %2664 = vmatprep.mubr.f32.mxu0 %v639
        %2665 = vmatmul.mubr.f32.gmra.mrb[0].mxu0 %v638
        %v2666 = vpop.f32.mrb[0].mxu0
        %v2667 = vadd.f32 %v2452, %v2666
        %v2668 = vpop.f32.mrb[0].mxu0
        %v2669 = vadd.f32 %v2454, %v2668
        %2670 = vdwg.mxu0
        %2671 = vmatprep.subr.mxu0 %v1091
        %2672 = vmatpush1.msra.mxu0 %v1090
        %2673 = vmatprep.subr.mxu0 %v1093
        %2674 = vmatpush1.msra.mxu0 %v1092
        %2675 = vmatprep.subr.mxu0 %v1095
        %2676 = vmatpush1.msra.mxu0 %v1094
        %2677 = vmatprep.subr.mxu0 %v1097
        %2678 = vmatpush1.msra.mxu0 %v1096
        %2679 = vmatprep.subr.mxu0 %v1099
        %2680 = vmatpush1.msra.mxu0 %v1098
        %2681 = vmatprep.subr.mxu0 %v1101
        %2682 = vmatpush1.msra.mxu0 %v1100
        %2683 = vmatprep.subr.mxu0 %v1103
        %2684 = vmatpush1.msra.mxu0 %v1102
        %2685 = vmatprep.subr.mxu0 %v1105
        %2686 = vmatpush1.msra.mxu0 %v1104
        %2687 = vmatprep.subr.mxu0 %v1107
        %2688 = vmatpush1.msra.mxu0 %v1106
        %2689 = vmatprep.subr.mxu0 %v1109
        %2690 = vmatpush1.msra.mxu0 %v1108
        %2691 = vmatprep.subr.mxu0 %v1111
        %2692 = vmatpush1.msra.mxu0 %v1110
        %2693 = vmatprep.subr.mxu0 %v1113
        %2694 = vmatpush1.msra.mxu0 %v1112
        %2695 = vmatprep.subr.mxu0 %v1115
        %2696 = vmatpush1.msra.mxu0 %v1114
        %2697 = vmatprep.subr.mxu0 %v1117
        %2698 = vmatpush1.msra.mxu0 %v1116
        %2699 = vmatprep.subr.mxu0 %v1119
        %2700 = vmatpush1.msra.mxu0 %v1118
        %2701 = vmatprep.subr.mxu0 %v1121
        %2702 = vmatpush1.msra.mxu0 %v1120
        %2703 = vmatprep.subr.mxu0 %v1123
        %2704 = vmatpush1.msra.mxu0 %v1122
        %2705 = vmatprep.subr.mxu0 %v1125
        %2706 = vmatpush1.msra.mxu0 %v1124
        %2707 = vmatprep.subr.mxu0 %v1127
        %2708 = vmatpush1.msra.mxu0 %v1126
        %2709 = vmatprep.subr.mxu0 %v1129
        %2710 = vmatpush1.msra.mxu0 %v1128
        %2711 = vmatprep.subr.mxu0 %v1131
        %2712 = vmatpush1.msra.mxu0 %v1130
        %2713 = vmatprep.subr.mxu0 %v1133
        %2714 = vmatpush1.msra.mxu0 %v1132
        %2715 = vmatprep.subr.mxu0 %v1135
        %2716 = vmatpush1.msra.mxu0 %v1134
        %2717 = vmatprep.subr.mxu0 %v1137
        %2718 = vmatpush1.msra.mxu0 %v1136
        %2719 = vmatprep.subr.mxu0 %v1139
        %2720 = vmatpush1.msra.mxu0 %v1138
        %2721 = vmatprep.subr.mxu0 %v1141
        %2722 = vmatpush1.msra.mxu0 %v1140
        %2723 = vmatprep.subr.mxu0 %v1143
        %2724 = vmatpush1.msra.mxu0 %v1142
        %2725 = vmatprep.subr.mxu0 %v1145
        %2726 = vmatpush1.msra.mxu0 %v1144
        %2727 = vmatprep.subr.mxu0 %v1147
        %2728 = vmatpush1.msra.mxu0 %v1146
        %2729 = vmatprep.subr.mxu0 %v1149
        %2730 = vmatpush1.msra.mxu0 %v1148
        %2731 = vmatprep.subr.mxu0 %v1151
        %2732 = vmatpush1.msra.mxu0 %v1150
        %2733 = vmatprep.subr.mxu0 %v1153
        %2734 = vmatpush1.msra.mxu0 %v1152
        %2735 = vmatprep.mubr.f32.mxu0 %v257
        %2736 = vmatmul.mubr.f32.gmra.mrb[0].mxu0 %v256
        %v2737 = vpop.f32.mrb[0].mxu0
        %v2738 = vadd.f32 %v2523, %v2737
        %v2739 = vpop.f32.mrb[0].mxu0
        %v2740 = vadd.f32 %v2525, %v2739
        %2741 = vmatprep.mubr.f32.mxu0 %v273
        %2742 = vmatmul.mubr.f32.gmra.mrb[0].mxu0 %v272
        %v2743 = vpop.f32.mrb[0].mxu0
        %v2744 = vadd.f32 %v2529, %v2743
        %v2745 = vpop.f32.mrb[0].mxu0
        %v2746 = vadd.f32 %v2531, %v2745
        %2747 = vmatprep.mubr.f32.mxu0 %v289
        %2748 = vmatmul.mubr.f32.gmra.mrb[0].mxu0 %v288
        %v2749 = vpop.f32.mrb[0].mxu0
        %v2750 = vadd.f32 %v2535, %v2749
        %v2751 = vpop.f32.mrb[0].mxu0
        %v2752 = vadd.f32 %v2537, %v2751
        %2753 = vmatprep.mubr.f32.mxu0 %v305
        %2754 = vmatmul.mubr.f32.gmra.mrb[0].mxu0 %v304
        %v2755 = vpop.f32.mrb[0].mxu0
        %v2756 = vadd.f32 %v2541, %v2755
        %v2757 = vpop.f32.mrb[0].mxu0
        %v2758 = vadd.f32 %v2543, %v2757
        %2759 = vmatprep.mubr.f32.mxu0 %v321
        %2760 = vmatmul.mubr.f32.gmra.mrb[0].mxu0 %v320
        %v2761 = vpop.f32.mrb[0].mxu0
        %v2762 = vadd.f32 %v2547, %v2761
        %v2763 = vpop.f32.mrb[0].mxu0
        %v2764 = vadd.f32 %v2549, %v2763
        %2765 = vmatprep.mubr.f32.mxu0 %v337
        %2766 = vmatmul.mubr.f32.gmra.mrb[0].mxu0 %v336
        %v2767 = vpop.f32.mrb[0].mxu0
        %v2768 = vadd.f32 %v2553, %v2767
        %v2769 = vpop.f32.mrb[0].mxu0
        %v2770 = vadd.f32 %v2555, %v2769
        %2771 = vmatprep.mubr.f32.mxu0 %v353
        %2772 = vmatmul.mubr.f32.gmra.mrb[0].mxu0 %v352
        %v2773 = vpop.f32.mrb[0].mxu0
        %v2774 = vadd.f32 %v2559, %v2773
        %v2775 = vpop.f32.mrb[0].mxu0
        %v2776 = vadd.f32 %v2561, %v2775
        %2777 = vmatprep.mubr.f32.mxu0 %v369
        %2778 = vmatmul.mubr.f32.gmra.mrb[0].mxu0 %v368
        %v2779 = vpop.f32.mrb[0].mxu0
        %v2780 = vadd.f32 %v2565, %v2779
        %v2781 = vpop.f32.mrb[0].mxu0
        %v2782 = vadd.f32 %v2567, %v2781
        %2783 = vmatprep.mubr.f32.mxu0 %v385
        %2784 = vmatmul.mubr.f32.gmra.mrb[0].mxu0 %v384
        %v2785 = vpop.f32.mrb[0].mxu0
        %v2786 = vadd.f32 %v2571, %v2785
        %v2787 = vpop.f32.mrb[0].mxu0
        %v2788 = vadd.f32 %v2573, %v2787
        %2789 = vmatprep.mubr.f32.mxu0 %v401
        %2790 = vmatmul.mubr.f32.gmra.mrb[0].mxu0 %v400
        %v2791 = vpop.f32.mrb[0].mxu0
        %v2792 = vadd.f32 %v2577, %v2791
        %v2793 = vpop.f32.mrb[0].mxu0
        %v2794 = vadd.f32 %v2579, %v2793
        %2795 = vmatprep.mubr.f32.mxu0 %v417
        %2796 = vmatmul.mubr.f32.gmra.mrb[0].mxu0 %v416
        %v2797 = vpop.f32.mrb[0].mxu0
        %v2798 = vadd.f32 %v2583, %v2797
        %v2799 = vpop.f32.mrb[0].mxu0
        %v2800 = vadd.f32 %v2585, %v2799
        %2801 = vmatprep.mubr.f32.mxu0 %v433
        %2802 = vmatmul.mubr.f32.gmra.mrb[0].mxu0 %v432
        %v2803 = vpop.f32.mrb[0].mxu0
        %v2804 = vadd.f32 %v2589, %v2803
        %v2805 = vpop.f32.mrb[0].mxu0
        %v2806 = vadd.f32 %v2591, %v2805
        %2807 = vmatprep.mubr.f32.mxu0 %v449
        %2808 = vmatmul.mubr.f32.gmra.mrb[0].mxu0 %v448
        %v2809 = vpop.f32.mrb[0].mxu0
        %v2810 = vadd.f32 %v2595, %v2809
        %v2811 = vpop.f32.mrb[0].mxu0
        %v2812 = vadd.f32 %v2597, %v2811
        %2813 = vmatprep.mubr.f32.mxu0 %v465
        %2814 = vmatmul.mubr.f32.gmra.mrb[0].mxu0 %v464
        %v2815 = vpop.f32.mrb[0].mxu0
        %v2816 = vadd.f32 %v2601, %v2815
        %v2817 = vpop.f32.mrb[0].mxu0
        %v2818 = vadd.f32 %v2603, %v2817
        %2819 = vmatprep.mubr.f32.mxu0 %v481
        %2820 = vmatmul.mubr.f32.gmra.mrb[0].mxu0 %v480
        %v2821 = vpop.f32.mrb[0].mxu0
        %v2822 = vadd.f32 %v2607, %v2821
        %v2823 = vpop.f32.mrb[0].mxu0
        %v2824 = vadd.f32 %v2609, %v2823
        %2825 = vmatprep.mubr.f32.mxu0 %v497
        %2826 = vmatmul.mubr.f32.gmra.mrb[0].mxu0 %v496
        %v2827 = vpop.f32.mrb[0].mxu0
        %v2828 = vadd.f32 %v2613, %v2827
        %v2829 = vpop.f32.mrb[0].mxu0
        %v2830 = vadd.f32 %v2615, %v2829
        %2831 = vmatprep.mubr.f32.mxu0 %v513
        %2832 = vmatmul.mubr.f32.gmra.mrb[0].mxu0 %v512
        %v2833 = vpop.f32.mrb[0].mxu0
        %v2834 = vadd.f32 %v2619, %v2833
        %v2835 = vpop.f32.mrb[0].mxu0
        %v2836 = vadd.f32 %v2621, %v2835
        %2837 = vmatprep.mubr.f32.mxu0 %v529
        %2838 = vmatmul.mubr.f32.gmra.mrb[0].mxu0 %v528
        %v2839 = vpop.f32.mrb[0].mxu0
        %v2840 = vadd.f32 %v2625, %v2839
        %v2841 = vpop.f32.mrb[0].mxu0
        %v2842 = vadd.f32 %v2627, %v2841
        %2843 = vmatprep.mubr.f32.mxu0 %v545
        %2844 = vmatmul.mubr.f32.gmra.mrb[0].mxu0 %v544
        %v2845 = vpop.f32.mrb[0].mxu0
        %v2846 = vadd.f32 %v2631, %v2845
        %v2847 = vpop.f32.mrb[0].mxu0
        %v2848 = vadd.f32 %v2633, %v2847
        %2849 = vmatprep.mubr.f32.mxu0 %v561
        %2850 = vmatmul.mubr.f32.gmra.mrb[0].mxu0 %v560
        %v2851 = vpop.f32.mrb[0].mxu0
        %v2852 = vadd.f32 %v2637, %v2851
        %v2853 = vpop.f32.mrb[0].mxu0
        %v2854 = vadd.f32 %v2639, %v2853
        %2855 = vmatprep.mubr.f32.mxu0 %v577
        %2856 = vmatmul.mubr.f32.gmra.mrb[0].mxu0 %v576
        %v2857 = vpop.f32.mrb[0].mxu0
        %v2858 = vadd.f32 %v2643, %v2857
        %v2859 = vpop.f32.mrb[0].mxu0
        %v2860 = vadd.f32 %v2645, %v2859
        %2861 = vmatprep.mubr.f32.mxu0 %v593
        %2862 = vmatmul.mubr.f32.gmra.mrb[0].mxu0 %v592
        %v2863 = vpop.f32.mrb[0].mxu0
        %v2864 = vadd.f32 %v2649, %v2863
        %v2865 = vpop.f32.mrb[0].mxu0
        %v2866 = vadd.f32 %v2651, %v2865
        %2867 = vmatprep.mubr.f32.mxu0 %v609
        %2868 = vmatmul.mubr.f32.gmra.mrb[0].mxu0 %v608
        %v2869 = vpop.f32.mrb[0].mxu0
        %v2870 = vadd.f32 %v2655, %v2869
        %v2871 = vpop.f32.mrb[0].mxu0
        %v2872 = vadd.f32 %v2657, %v2871
        %2873 = vmatprep.mubr.f32.mxu0 %v625
        %2874 = vmatmul.mubr.f32.gmra.mrb[0].mxu0 %v624
        %v2875 = vpop.f32.mrb[0].mxu0
        %v2876 = vadd.f32 %v2661, %v2875
        %v2877 = vpop.f32.mrb[0].mxu0
        %v2878 = vadd.f32 %v2663, %v2877
        %2879 = vmatprep.mubr.f32.mxu0 %v641
        %2880 = vmatmul.mubr.f32.gmra.mrb[0].mxu0 %v640
        %v2881 = vpop.f32.mrb[0].mxu0
        %v2882 = vadd.f32 %v2667, %v2881
        %v2883 = vpop.f32.mrb[0].mxu0
        %v2884 = vadd.f32 %v2669, %v2883
        %2885 = vdwg.mxu0
        %2886 = vst [vmem:[%s238] sm:$0xff] %v2738
        %2887 = vst [vmem:[%s238 + $0x8] sm:$0xff] %v2740
        %2888 = vst [vmem:[%s238 + $0x10] sm:$0xff] %v2744
        %2889 = vst [vmem:[%s238 + $0x18] sm:$0xff] %v2746
        %2890 = vst [vmem:[%s238 + $0x20] sm:$0xff] %v2750
        %2891 = vst [vmem:[%s238 + $0x28] sm:$0xff] %v2752
        %2892 = vst [vmem:[%s238 + $0x30] sm:$0xff] %v2756
        %2893 = vst [vmem:[%s238 + $0x38] sm:$0xff] %v2758
        %2894 = vst [vmem:[%s238 + $0x40] sm:$0xff] %v2762
        %2895 = vst [vmem:[%s238 + $0x48] sm:$0xff] %v2764
        %2896 = vst [vmem:[%s238 + $0x50] sm:$0xff] %v2768
        %2897 = vst [vmem:[%s238 + $0x58] sm:$0xff] %v2770
        %2898 = vst [vmem:[%s238 + $0x60] sm:$0xff] %v2774
        %2899 = vst [vmem:[%s238 + $0x68] sm:$0xff] %v2776
        %2900 = vst [vmem:[%s238 + $0x70] sm:$0xff] %v2780
        %2901 = vst [vmem:[%s238 + $0x78] sm:$0xff] %v2782
        %2902 = vst [vmem:[%s238 + $0x80] sm:$0xff] %v2786
        %2903 = vst [vmem:[%s238 + $0x88] sm:$0xff] %v2788
        %2904 = vst [vmem:[%s238 + $0x90] sm:$0xff] %v2792
        %2905 = vst [vmem:[%s238 + $0x98] sm:$0xff] %v2794
        %2906 = vst [vmem:[%s238 + $0xa0] sm:$0xff] %v2798
        %2907 = vst [vmem:[%s238 + $0xa8] sm:$0xff] %v2800
        %2908 = vst [vmem:[%s238 + $0xb0] sm:$0xff] %v2804
        %2909 = vst [vmem:[%s238 + $0xb8] sm:$0xff] %v2806
        %2910 = vst [vmem:[%s238 + $0xc0] sm:$0xff] %v2810
        %2911 = vst [vmem:[%s238 + $0xc8] sm:$0xff] %v2812
        %2912 = vst [vmem:[%s238 + $0xd0] sm:$0xff] %v2816
        %2913 = vst [vmem:[%s238 + $0xd8] sm:$0xff] %v2818
        %2914 = vst [vmem:[%s238 + $0xe0] sm:$0xff] %v2822
        %2915 = vst [vmem:[%s238 + $0xe8] sm:$0xff] %v2824
        %2916 = vst [vmem:[%s238 + $0xf0] sm:$0xff] %v2828
        %2917 = vst [vmem:[%s238 + $0xf8] sm:$0xff] %v2830
        %2918 = vst [vmem:[%s238 + $0x100] sm:$0xff] %v2834
        %2919 = vst [vmem:[%s238 + $0x108] sm:$0xff] %v2836
        %2920 = vst [vmem:[%s238 + $0x110] sm:$0xff] %v2840
        %2921 = vst [vmem:[%s238 + $0x118] sm:$0xff] %v2842
        %2922 = vst [vmem:[%s238 + $0x120] sm:$0xff] %v2846
        %2923 = vst [vmem:[%s238 + $0x128] sm:$0xff] %v2848
        %2924 = vst [vmem:[%s238 + $0x130] sm:$0xff] %v2852
        %2925 = vst [vmem:[%s238 + $0x138] sm:$0xff] %v2854
        %2926 = vst [vmem:[%s238 + $0x140] sm:$0xff] %v2858
        %2927 = vst [vmem:[%s238 + $0x148] sm:$0xff] %v2860
        %2928 = vst [vmem:[%s238 + $0x150] sm:$0xff] %v2864
        %2929 = vst [vmem:[%s238 + $0x158] sm:$0xff] %v2866
        %2930 = vst [vmem:[%s238 + $0x160] sm:$0xff] %v2870
        %2931 = vst [vmem:[%s238 + $0x168] sm:$0xff] %v2872
        %2932 = vst [vmem:[%s238 + $0x170] sm:$0xff] %v2876
        %2933 = vst [vmem:[%s238 + $0x178] sm:$0xff] %v2878
        %2934 = vst [vmem:[%s238 + $0x180] sm:$0xf] %v2882
        %2935 = vst [vmem:[%s238 + $0x188] sm:$0xf] %v2884
        %s2936 = sand.u32 %s102, 1
        %s2937 = scalar_lea.sflag [#allocation4], %s2936
        %s2938 = sand.u32 %s102, 1
        %s2939 = smul.addr %s2938, 400
        %s2940 = scalar_lea.vmem [#allocation8], %s2939
        // Predicated region
        $region45: #{tpu_custom_call.1} parent=31 // pred_check
          %p2941 = pneg %p112
        $region46: #{tpu_custom_call.1} parent=31 // pred_check_branch
          %2943 = sbr.rel (%p2941) target = $region48
        $region47: #{tpu_custom_call.1} parent=31 // pred_region
          %s2944 = smul.u32 2, %s21
          %s2946 = ssub.s32 6400, 6400
          %2947 = vsyncadd %s2937, %s2946
          %s2948 = smul.addr %s2944, 128
          %s2949 = scalar_lea.hbm %s3, %s2948
          %s2950 = sshll.u32 %s2940, 4
          %s2951 = int_to_ptr.vmem [resolvable:$true] %s2950
          %2956 = dma.vmem_to_hbm [thread:$0]  %s2951, 6400, %s2949, %s2937, 256, 512, 16
        $region48: #{tpu_custom_call.1} parent=31 // pred_fallthru
          _
      $region32: #{tpu_custom_call.1} parent=5 // pred_fallthru
        _
      %p2957 = scmp.le.s32.totalorder 2, %s16
      // Predicated region
      $region49: #{tpu_custom_call.1} parent=5 // pred_check
        %p2958 = pneg %p2957
      $region50: #{tpu_custom_call.1} parent=5 // pred_check_branch
        %2960 = sbr.rel (%p2958) target = $region52
      $region51: #{tpu_custom_call.1} parent=5 // pred_region
        %s2961 = ssub.s32 %s16, 2
        // Predicated region
        $region53: #{tpu_custom_call.1} parent=51 // pred_check
          %p2962 = pneg %p118
        $region54: #{tpu_custom_call.1} parent=51 // pred_check_branch
          %2964 = sbr.rel (%p2962) target = $region56
        $region55: #{tpu_custom_call.1} parent=51 // pred_region
          %s2965 = sand.u32 %s103, 1
          %s2966 = scalar_lea.sflag [#allocation4], %s2965
          %s2967 = sand.u32 %s103, 1
          %s2968 = smul.addr %s2967, 400
          %s2969 = scalar_lea.vmem [#allocation8], %s2968
          %2970 = dma.done %s2966, 6400
        $region56: #{tpu_custom_call.1} parent=51 // pred_fallthru
          _
      $region52: #{tpu_custom_call.1} parent=5 // pred_fallthru
        _
    $region6: #{tpu_custom_call.1} parent=1 // loop_footer
      %s20 = sadd.s32 1, %s16
    $region7: #{tpu_custom_call.1} parent=1 // loop_footer_branch
      %15 = sbr.rel target = $region3
    $region8: #{tpu_custom_call.1} parent=1 // loop_exit
      _
    %2971 = vsyncpa [#allocation3], 1
    %s2972 = scalar_lea.sflag [#allocation3], 1
    %2973 = vsyncpa %s2972, 1
    %2974 = vsyncpa [#allocation6], 1
    %s2975 = scalar_lea.sflag [#allocation6], 1
    %2976 = vsyncpa %s2975, 1
    %2977 = vsyncpa [#allocation4], 1
    %s2978 = scalar_lea.sflag [#allocation4], 1
    %2979 = vsyncpa %s2978, 1

</llo_original>
